<compile_context>
chip_gen: v7x
topology: tpu7x:2x2x1
jax: 0.10.0
libtpu: 0.0.40
codegen_flags: <defaults>
</compile_context>

<pallas_src>
import functools

import jax
import jax.numpy as jnp
from jax.experimental import pallas as pl
from jax.experimental.pallas import tpu as pltpu

_LANE = 128
_TM_MIN = 16          # bf16 native tile is (16, 128): keep M tiles multiples of 16
_TK_SPLIT = 512       # K tile when a full-K block does not fit the VMEM budget


def _round_up(x, m):
    return (x + m - 1) // m * m


def _cdiv(a, b):
    return -(-a // b)


@functools.lru_cache(maxsize=None)
def _hw_params():
    """(vmem_capacity_bytes, tensorcores_per_chip) with conservative fallbacks."""
    vmem_cap = 128 * 1024 * 1024
    num_cores = 1
    try:
        info = pltpu.get_tpu_info()
        vmem_cap = int(getattr(info, "vmem_capacity_bytes", vmem_cap))
    except Exception:
        pass
    try:
        kind = jax.devices()[0].device_kind.lower()
    except Exception:
        kind = ""
    if any(tag in kind for tag in ("v7", "v4", "v5p")):
        num_cores = 2                                # 2 TensorCores share the chip
    if "v7" in kind:
        vmem_cap = min(vmem_cap, 64 * 1024 * 1024)   # 64 MiB per TC on v7x
    vmem_cap = max(vmem_cap, 32 * 1024 * 1024)       # sanity clamp
    return vmem_cap, num_cores


def _pick_tm(m, *, num_cores, tm_max):
    """Pick the M tile: multiple of 16, minimal padded-row waste, and (on 2-TC
    chips) a grid length divisible by the core count so the 'parallel' M axis
    shards evenly instead of idling one TensorCore on an odd step count."""
    m = max(int(m), _TM_MIN)
    best_key, best_tm = None, min(_round_up(m, _TM_MIN), tm_max)
    for steps in range(1, min(_cdiv(m, _TM_MIN), 4096) + 1):
        tm = _round_up(_cdiv(m, steps), _TM_MIN)
        if tm > tm_max:
            continue
        grid = _cdiv(m, tm)
        m_pad = grid * tm
        key = (grid % num_cores != 0,               # prefer an even TC split
               round((m_pad - m) / m_pad, 3),       # then minimal wasted rows
               grid)                                # then biggest tiles / fewest steps
        if best_key is None or key < best_key:
            best_key, best_tm = key, tm
    return best_tm


def _vmem_need(tm, tk, cout_pad, out_bytes, split):
    """Per-step VMEM bytes: double-buffered bf16 inputs + bias + output (+ acc)."""
    need = (2 * tm * tk * 2            # patches tile, double-buffered, bf16
            + 2 * tk * cout_pad * 2    # weight tile, double-buffered, bf16
            + 2 * cout_pad * 4         # folded-BN bias row, f32
            + 2 * tm * cout_pad * out_bytes)   # output tile, double-buffered
    if split:
        need += tm * cout_pad * 4      # f32 accumulator scratch
    return need


# ----------------------------------------------------------------------------
# Pallas kernels: fused matmul (MXU, f32 acc) + folded-BN bias + ReLU
# ----------------------------------------------------------------------------
def _conv_bn_relu_kernel(p_ref, w_ref, b_ref, o_ref):
    """Single-pass fast path (full K resident in one block -- every conv here).

    No accumulator scratch and no pl.when: this removes the zero-store, the
    read-modify-write and the acc->out copy the old accumulator path did per
    tile, i.e. ~3 extra full-tile VPU/vector-store passes around a tiny matmul
    (the binding slot on v5e, which has 1 vst per bundle)."""
    acc = jnp.dot(p_ref[...], w_ref[...], preferred_element_type=jnp.float32)
    o_ref[...] = jnp.maximum(acc + b_ref[...], 0.0).astype(o_ref.dtype)


def _conv_bn_relu_split_kernel(p_ref, w_ref, b_ref, o_ref, acc_ref):
    """Split-K variant (K grid axis last, 'arbitrary'); only used when a full-K
    tile would blow the per-generation VMEM budget."""
    kk = pl.program_id(1)

    @pl.when(kk == 0)
    def _():
        acc_ref[...] = jnp.zeros_like(acc_ref)

    acc_ref[...] += jnp.dot(p_ref[...], w_ref[...],
                            preferred_element_type=jnp.float32)

    @pl.when(kk == pl.num_programs(1) - 1)
    def _():
        o_ref[...] = jnp.maximum(acc_ref[...] + b_ref[...], 0.0).astype(o_ref.dtype)


# ----------------------------------------------------------------------------
# Glue: im2col, parameter folding, wrapper around pallas_call
# ----------------------------------------------------------------------------
def _im2col(x_nhwc, ksize, stride, padding):
    if padding > 0:
        x_nhwc = jnp.pad(
            x_nhwc, ((0, 0), (padding, padding), (padding, padding), (0, 0)))
    n, h, w, c = x_nhwc.shape
    oh = (h - ksize) // stride + 1
    ow = (w - ksize) // stride + 1
    cols = []
    for dy in range(ksize):
        for dx in range(ksize):
            cols.append(
                x_nhwc[:,
                       dy:dy + stride * (oh - 1) + 1:stride,
                       dx:dx + stride * (ow - 1) + 1:stride, :])
    # TODO(synk): for the 3x3 convs this still materializes a 9x-duplicated bf16
    # patches array in HBM; fully fusing the tap gather needs overlapping /
    # strided input row-bands (manual make_async_copy or a 2x2 space-to-depth
    # repack) that plain Blocked BlockSpecs cannot express -- kept the proven
    # im2col + 2-D MXU-tile path to guarantee clean lowering.
    patches = jnp.concatenate(cols, axis=-1)  # feature order = (kh, kw, cin)
    return patches.reshape(n * oh * ow, ksize * ksize * c), (n, oh, ow)


def conv_bn_relu(x_nhwc, w_oihw, scale, bias, *, stride=1, padding=0,
                 out_dtype=jnp.float32):
    """_BasicConv2d: Conv2d(bias=False) + BatchNorm2d(eps=1e-3, eval) + ReLU."""
    cout, cin, ksize, _ = w_oihw.shape
    # bf16 MXU operands; accumulation is f32 in-kernel.  Intermediate layers ask
    # for bf16 outputs so the next layer reads half the bytes (the f32->bf16
    # rounding happens in the epilogue instead of a separate XLA convert).
    patches, (n, oh, ow) = _im2col(
        x_nhwc.astype(jnp.bfloat16), ksize, stride, padding)
    k = ksize * ksize * cin
    m = patches.shape[0]

    vmem_cap, num_cores = _hw_params()
    vmem_limit = int(vmem_cap * 3 // 4)      # ~96 MiB on v5e/v6e, 48 MiB on v7x
    budget = vmem_limit - (8 << 20)          # headroom for Mosaic-internal scratch
    tm_max = 1024 if vmem_cap >= (100 << 20) else 512

    cout_pad = _round_up(cout, _LANE)        # lane-dense output -> unmasked vst
    out_bytes = jnp.dtype(out_dtype).itemsize
    tm = _pick_tm(m, num_cores=num_cores, tm_max=tm_max)

    if _vmem_need(tm, k, cout_pad, out_bytes, split=False) <= budget:
        split, tk, k_pad = False, k, k       # full-K single block -> fast path
    else:
        split = True
        tk = _TK_SPLIT
        k_pad = _round_up(k, tk)
        while tm > _TM_MIN and _vmem_need(tm, tk, cout_pad, out_bytes, True) > budget:
            tm = max(_TM_MIN, _round_up(tm // 2, _TM_MIN))

    m_pad = _round_up(m, tm)
    patches = jnp.pad(patches, ((0, m_pad - m), (0, k_pad - k)))

    # torch OIHW -> (KH, KW, Cin, Cout) to match the im2col feature order, then
    # fold the eval-mode BN scale into the weight columns:
    #   P @ (W * s) + b == (P @ W) * s + b   (bias stays f32 in the epilogue).
    w_mat = jnp.transpose(w_oihw, (2, 3, 1, 0)).reshape(k, cout)
    w_mat = (w_mat * scale[None, :]).astype(jnp.bfloat16)
    w_mat = jnp.pad(w_mat, ((0, k_pad - k), (0, cout_pad - cout)))
    b2 = jnp.pad(bias.astype(jnp.float32),
                 (0, cout_pad - cout)).reshape(1, cout_pad)

    if not split:
        out = pl.pallas_call(
            _conv_bn_relu_kernel,
            out_shape=jax.ShapeDtypeStruct((m_pad, cout_pad), out_dtype),
            grid=(m_pad // tm,),
            in_specs=[
                pl.BlockSpec((tm, k_pad), lambda i: (i, 0)),
                pl.BlockSpec((k_pad, cout_pad), lambda i: (0, 0)),
                pl.BlockSpec((1, cout_pad), lambda i: (0, 0)),
            ],
            out_specs=pl.BlockSpec((tm, cout_pad), lambda i: (i, 0)),
            compiler_params=pltpu.CompilerParams(
                dimension_semantics=("parallel",),
                vmem_limit_bytes=vmem_limit),
        )(patches, w_mat, b2)
    else:
        out = pl.pallas_call(
            _conv_bn_relu_split_kernel,
            out_shape=jax.ShapeDtypeStruct((m_pad, cout_pad), out_dtype),
            grid=(m_pad // tm, k_pad // tk),
            in_specs=[
                pl.BlockSpec((tm, tk), lambda i, kk: (i, kk)),
                pl.BlockSpec((tk, cout_pad), lambda i, kk: (kk, 0)),
                pl.BlockSpec((1, cout_pad), lambda i, kk: (0, 0)),
            ],
            out_specs=pl.BlockSpec((tm, cout_pad), lambda i, kk: (i, 0)),
            scratch_shapes=[pltpu.VMEM((tm, cout_pad), jnp.float32)],
            compiler_params=pltpu.CompilerParams(
                dimension_semantics=("parallel", "arbitrary"),
                vmem_limit_bytes=vmem_limit),
        )(patches, w_mat, b2)

    return out[:m, :cout].reshape(n, oh, ow, cout)


def maxpool_3x3_s2(x_nhwc):
    """F.max_pool2d(x, kernel_size=3, stride=2) in NHWC.

    Kept in plain JAX per the perf review: a grid=(1,) whole-array Pallas block
    could not be pipelined or megacore-sharded and would blow VMEM at realistic
    sizes, while with tiny C it uses ~3% of the vector lanes.  A 9-way
    jnp.maximum fold is trivial for XLA and fuses with the neighbours.
    """
    n, h, w, c = x_nhwc.shape
    oh = (h - 3) // 2 + 1
    ow = (w - 3) // 2 + 1
    out = None
    for dy in range(3):
        for dx in range(3):
            win = x_nhwc[:, dy:dy + 2 * (oh - 1) + 1:2,
                         dx:dx + 2 * (ow - 1) + 1:2, :]
            out = win if out is None else jnp.maximum(out, win)
    return out


@jax.jit
def inception_b_forward(x_nchw, p_3x3_1, p_dbl_1, p_dbl_2, p_dbl_3):
    """Forward pass of _InceptionB.  Returns NCHW like the torch module."""
    x = jnp.transpose(x_nchw, (0, 2, 3, 1))  # NCHW -> NHWC

    branch3x3 = conv_bn_relu(x, *p_3x3_1, stride=2, padding=0)

    # Intermediate convs emit bf16 (halves HBM writeback and the next layer's
    # read; f32 accumulation inside the kernel is unchanged).
    d = conv_bn_relu(x, *p_dbl_1, stride=1, padding=0, out_dtype=jnp.bfloat16)
    d = conv_bn_relu(d, *p_dbl_2, stride=1, padding=1, out_dtype=jnp.bfloat16)
    d = conv_bn_relu(d, *p_dbl_3, stride=2, padding=0)
    # TODO(synk): dbl_1 (1x1, K=4) could be fused into dbl_2's prologue (compute
    # relu(x @ W1 + b1) into VMEM scratch, run the 9-tap dbl_2 matmuls on it)
    # once the 3x3 tap gather itself is fused in-kernel.

    # _ShortcutRestore: is_client path is identity.
    # TODO(synk): non-client path needs root_module.calc_input_orders (channel
    # regrouping/averaging) which has no standalone definition here.
    branch_pool = maxpool_3x3_s2(x)

    out = jnp.concatenate([branch3x3, d, branch_pool], axis=-1)
    return jnp.transpose(out, (0, 3, 1, 2))  # NHWC -> NCHW (torch.cat dim=1)


# ----------------------------------------------------------------------------
# Pure-JAX reference (for a sanity check) and deterministic parameter init
# ----------------------------------------------------------------------------
def _ref_cbr(x_nchw, w, scale, bias, stride, padding):
    y = jax.lax.conv_general_dilated(
        x_nchw, w, (stride, stride), [(padding, padding)] * 2,
        dimension_numbers=("NCHW", "OIHW", "NCHW"),
        precision=jax.lax.Precision.HIGHEST)
    y = y * scale[None, :, None, None] + bias[None, :, None, None]
    return jnp.maximum(y, 0.0)


def _ref_forward(x, p1, p2, p3, p4):
    b3 = _ref_cbr(x, *p1, 2, 0)
    d = _ref_cbr(x, *p2, 1, 0)
    d = _ref_cbr(d, *p3, 1, 1)
    d = _ref_cbr(d, *p4, 2, 0)
    bp = jax.lax.reduce_window(x, -jnp.inf, jax.lax.max,
                               (1, 1, 3, 3), (1, 1, 2, 2), "VALID")
    return jnp.concatenate([b3, d, bp], axis=1)


def _init_conv_bn(key, cin, cout, ksize):
    k1, k2, k3, k4, k5 = jax.random.split(key, 5)
    fan_in = cin * ksize * ksize
    w = jax.random.normal(k1, (cout, cin, ksize, ksize), jnp.float32) / jnp.sqrt(fan_in)
    gamma = 1.0 + 0.1 * jax.random.normal(k2, (cout,), jnp.float32)
    beta = 0.1 * jax.random.normal(k3, (cout,), jnp.float32)
    running_mean = 0.1 * jax.random.normal(k4, (cout,), jnp.float32)
    running_var = jnp.abs(jax.random.normal(k5, (cout,), jnp.float32)) + 0.5
    eps = 0.001  # matches _MatchableBatchNorm2d(eps=0.001)
    scale = gamma / jnp.sqrt(running_var + eps)   # eval-mode BN folded into epilogue
    bias = beta - running_mean * scale
    return (w, scale, bias)


if __name__ == "__main__":
    key = jax.random.PRNGKey(0)
    ks = jax.random.split(key, 8)

    # Small shapes consistent with the module: batch=2, in_channels=4, spatial=17.
    N, CIN, H, W = 2, 4, 17, 17
    x = jax.random.normal(ks[0], (N, CIN, H, W), jnp.float32)

    p_3x3_1 = _init_conv_bn(ks[1], CIN, 384, 3)   # branch3x3_1: k3 s2
    p_dbl_1 = _init_conv_bn(ks[2], CIN, 64, 1)    # branch3x3dbl_1: k1
    p_dbl_2 = _init_conv_bn(ks[3], 64, 96, 3)     # branch3x3dbl_2: k3 p1
    p_dbl_3 = _init_conv_bn(ks[4], 96, 96, 3)     # branch3x3dbl_3: k3 s2

    out = inception_b_forward(x, p_3x3_1, p_dbl_1, p_dbl_2, p_dbl_3)
    out = jax.block_until_ready(out)

    ref = _ref_forward(x, p_3x3_1, p_dbl_1, p_dbl_2, p_dbl_3)
    assert out.shape == ref.shape == (N, 384 + 96 + CIN, 8, 8), out.shape
    # Tolerance covers chained bf16-operand matmuls (f32 accumulation, bf16
    # intermediate activations) vs the HIGHEST-precision f32 reference across
    # the 3-conv double-3x3 branch.
    assert jnp.allclose(out, ref, atol=3e-2, rtol=3e-2), float(jnp.max(jnp.abs(out - ref)))

    print("KERNEL_OK")
</pallas_src>

<mosaic_0001>
module attributes {stable_mosaic.version = 11 : i64} {
  func.func @_conv_bn_relu_kernel(%arg0: i32, %arg1: memref<592x4xbf16, #tpu.memory_space<vmem>>, %arg2: memref<4x128xbf16, #tpu.memory_space<vmem>>, %arg3: memref<1x128xf32, #tpu.memory_space<vmem>>, %arg4: memref<592x128xbf16, #tpu.memory_space<vmem>>) attributes {dimension_semantics = [#tpu.dimension_semantics<parallel>], iteration_bounds = array<i64: 1>, scalar_prefetch = 0 : i64, scratch_operands = 0 : i64, tpu.core_type = #tpu.core_type<tc>, window_params = [{transform_indices = @transform_0, window_bounds = array<i64: 592, 4>}, {pipeline_mode = #tpu.pipeline_mode<synchronous>, transform_indices = @transform_1, window_bounds = array<i64: 4, 128>}, {pipeline_mode = #tpu.pipeline_mode<synchronous>, transform_indices = @transform_2, window_bounds = array<i64: 1, 128>}, {transform_indices = @transform_3, window_bounds = array<i64: 592, 128>}]} {
    %c0 = arith.constant 0 : index
    %c0_0 = arith.constant 0 : index
    %0 = vector.load %arg1[%c0, %c0_0] : memref<592x4xbf16, #tpu.memory_space<vmem>>, vector<592x4xbf16>
    %c0_1 = arith.constant 0 : index
    %c0_2 = arith.constant 0 : index
    %1 = vector.load %arg2[%c0_1, %c0_2] : memref<4x128xbf16, #tpu.memory_space<vmem>>, vector<4x128xbf16>
    %cst = arith.constant dense<0.000000e+00> : vector<592x128xf32>
    %2 = tpu.matmul %0, %1, %cst {dimension_numbers = #tpu.dot_dimension_numbers<[1], [0], [0], [1], [0, 0, 1, 1], [], []>} : vector<592x4xbf16>, vector<4x128xbf16>, vector<592x128xf32> -> vector<592x128xf32>
    %c0_3 = arith.constant 0 : index
    %c0_4 = arith.constant 0 : index
    %3 = vector.load %arg3[%c0_3, %c0_4] : memref<1x128xf32, #tpu.memory_space<vmem>>, vector<1x128xf32>
    %4 = vector.broadcast %3 : vector<1x128xf32> to vector<592x128xf32>
    %5 = arith.addf %2, %4 : vector<592x128xf32>
    %cst_5 = arith.constant 0.000000e+00 : f32
    %6 = vector.broadcast %cst_5 : f32 to vector<592x128xf32>
    %7 = arith.maximumf %5, %6 : vector<592x128xf32>
    %8 = arith.truncf %7 : vector<592x128xf32> to vector<592x128xbf16>
    %c0_6 = arith.constant 0 : index
    %c0_7 = arith.constant 0 : index
    %9 = vector.load %arg4[%c0_6, %c0_7] : memref<592x128xbf16, #tpu.memory_space<vmem>>, vector<592x128xbf16>
    tpu.vector_store %arg4[%c0_6, %c0_7], %8 {strides = array<i32>} : memref<592x128xbf16, #tpu.memory_space<vmem>>, vector<592x128xbf16>,
    return
  }
  func.func @transform_0(%arg0: i32) -> (i32, i32) {
    %c0_i32 = arith.constant 0 : i32
    %c0_i32_0 = arith.constant 0 : i32
    return %arg0, %c0_i32 : i32, i32
  }
  func.func @transform_1(%arg0: i32) -> (i32, i32) {
    %c0_i32 = arith.constant 0 : i32
    %c0_i32_0 = arith.constant 0 : i32
    %c0_i32_1 = arith.constant 0 : i32
    return %c0_i32, %c0_i32_0 : i32, i32
  }
  func.func @transform_2(%arg0: i32) -> (i32, i32) {
    %c0_i32 = arith.constant 0 : i32
    %c0_i32_0 = arith.constant 0 : i32
    %c0_i32_1 = arith.constant 0 : i32
    return %c0_i32, %c0_i32_0 : i32, i32
  }
  func.func @transform_3(%arg0: i32) -> (i32, i32) {
    %c0_i32 = arith.constant 0 : i32
    %c0_i32_0 = arith.constant 0 : i32
    return %arg0, %c0_i32 : i32, i32
  }
}

module attributes {stable_mosaic.version = 11 : i64} {
  func.func @_conv_bn_relu_kernel(%arg0: i32, %arg1: memref<592x576xbf16, #tpu.memory_space<vmem>>, %arg2: memref<576x128xbf16, #tpu.memory_space<vmem>>, %arg3: memref<1x128xf32, #tpu.memory_space<vmem>>, %arg4: memref<592x128xbf16, #tpu.memory_space<vmem>>) attributes {dimension_semantics = [#tpu.dimension_semantics<parallel>], iteration_bounds = array<i64: 1>, scalar_prefetch = 0 : i64, scratch_operands = 0 : i64, tpu.core_type = #tpu.core_type<tc>, window_params = [{transform_indices = @transform_0, window_bounds = array<i64: 592, 576>}, {pipeline_mode = #tpu.pipeline_mode<synchronous>, transform_indices = @transform_1, window_bounds = array<i64: 576, 128>}, {pipeline_mode = #tpu.pipeline_mode<synchronous>, transform_indices = @transform_2, window_bounds = array<i64: 1, 128>}, {transform_indices = @transform_3, window_bounds = array<i64: 592, 128>}]} {
    %c0 = arith.constant 0 : index
    %c0_0 = arith.constant 0 : index
    %0 = vector.load %arg1[%c0, %c0_0] : memref<592x576xbf16, #tpu.memory_space<vmem>>, vector<592x576xbf16>
    %c0_1 = arith.constant 0 : index
    %c0_2 = arith.constant 0 : index
    %1 = vector.load %arg2[%c0_1, %c0_2] : memref<576x128xbf16, #tpu.memory_space<vmem>>, vector<576x128xbf16>
    %cst = arith.constant dense<0.000000e+00> : vector<592x128xf32>
    %2 = tpu.matmul %0, %1, %cst {dimension_numbers = #tpu.dot_dimension_numbers<[1], [0], [0], [1], [0, 0, 1, 1], [], []>} : vector<592x576xbf16>, vector<576x128xbf16>, vector<592x128xf32> -> vector<592x128xf32>
    %c0_3 = arith.constant 0 : index
    %c0_4 = arith.constant 0 : index
    %3 = vector.load %arg3[%c0_3, %c0_4] : memref<1x128xf32, #tpu.memory_space<vmem>>, vector<1x128xf32>
    %4 = vector.broadcast %3 : vector<1x128xf32> to vector<592x128xf32>
    %5 = arith.addf %2, %4 : vector<592x128xf32>
    %cst_5 = arith.constant 0.000000e+00 : f32
    %6 = vector.broadcast %cst_5 : f32 to vector<592x128xf32>
    %7 = arith.maximumf %5, %6 : vector<592x128xf32>
    %8 = arith.truncf %7 : vector<592x128xf32> to vector<592x128xbf16>
    %c0_6 = arith.constant 0 : index
    %c0_7 = arith.constant 0 : index
    %9 = vector.load %arg4[%c0_6, %c0_7] : memref<592x128xbf16, #tpu.memory_space<vmem>>, vector<592x128xbf16>
    tpu.vector_store %arg4[%c0_6, %c0_7], %8 {strides = array<i32>} : memref<592x128xbf16, #tpu.memory_space<vmem>>, vector<592x128xbf16>,
    return
  }
  func.func @transform_0(%arg0: i32) -> (i32, i32) {
    %c0_i32 = arith.constant 0 : i32
    %c0_i32_0 = arith.constant 0 : i32
    return %arg0, %c0_i32 : i32, i32
  }
  func.func @transform_1(%arg0: i32) -> (i32, i32) {
    %c0_i32 = arith.constant 0 : i32
    %c0_i32_0 = arith.constant 0 : i32
    %c0_i32_1 = arith.constant 0 : i32
    return %c0_i32, %c0_i32_0 : i32, i32
  }
  func.func @transform_2(%arg0: i32) -> (i32, i32) {
    %c0_i32 = arith.constant 0 : i32
    %c0_i32_0 = arith.constant 0 : i32
    %c0_i32_1 = arith.constant 0 : i32
    return %c0_i32, %c0_i32_0 : i32, i32
  }
  func.func @transform_3(%arg0: i32) -> (i32, i32) {
    %c0_i32 = arith.constant 0 : i32
    %c0_i32_0 = arith.constant 0 : i32
    return %arg0, %c0_i32 : i32, i32
  }
}

module attributes {stable_mosaic.version = 11 : i64} {
  func.func @_conv_bn_relu_kernel(%arg0: i32, %arg1: memref<128x864xbf16, #tpu.memory_space<vmem>>, %arg2: memref<864x128xbf16, #tpu.memory_space<vmem>>, %arg3: memref<1x128xf32, #tpu.memory_space<vmem>>, %arg4: memref<128x128xf32, #tpu.memory_space<vmem>>) attributes {dimension_semantics = [#tpu.dimension_semantics<parallel>], iteration_bounds = array<i64: 1>, scalar_prefetch = 0 : i64, scratch_operands = 0 : i64, tpu.core_type = #tpu.core_type<tc>, window_params = [{transform_indices = @transform_0, window_bounds = array<i64: 128, 864>}, {pipeline_mode = #tpu.pipeline_mode<synchronous>, transform_indices = @transform_1, window_bounds = array<i64: 864, 128>}, {pipeline_mode = #tpu.pipeline_mode<synchronous>, transform_indices = @transform_2, window_bounds = array<i64: 1, 128>}, {transform_indices = @transform_3, window_bounds = array<i64: 128, 128>}]} {
    %c0 = arith.constant 0 : index
    %c0_0 = arith.constant 0 : index
    %0 = vector.load %arg1[%c0, %c0_0] : memref<128x864xbf16, #tpu.memory_space<vmem>>, vector<128x864xbf16>
    %c0_1 = arith.constant 0 : index
    %c0_2 = arith.constant 0 : index
    %1 = vector.load %arg2[%c0_1, %c0_2] : memref<864x128xbf16, #tpu.memory_space<vmem>>, vector<864x128xbf16>
    %cst = arith.constant dense<0.000000e+00> : vector<128x128xf32>
    %2 = tpu.matmul %0, %1, %cst {dimension_numbers = #tpu.dot_dimension_numbers<[1], [0], [0], [1], [0, 0, 1, 1], [], []>} : vector<128x864xbf16>, vector<864x128xbf16>, vector<128x128xf32> -> vector<128x128xf32>
    %c0_3 = arith.constant 0 : index
    %c0_4 = arith.constant 0 : index
    %3 = vector.load %arg3[%c0_3, %c0_4] : memref<1x128xf32, #tpu.memory_space<vmem>>, vector<1x128xf32>
    %4 = vector.broadcast %3 : vector<1x128xf32> to vector<128x128xf32>
    %5 = arith.addf %2, %4 : vector<128x128xf32>
    %cst_5 = arith.constant 0.000000e+00 : f32
    %6 = vector.broadcast %cst_5 : f32 to vector<128x128xf32>
    %7 = arith.maximumf %5, %6 : vector<128x128xf32>
    %c0_6 = arith.constant 0 : index
    %c0_7 = arith.constant 0 : index
    %8 = vector.load %arg4[%c0_6, %c0_7] : memref<128x128xf32, #tpu.memory_space<vmem>>, vector<128x128xf32>
    tpu.vector_store %arg4[%c0_6, %c0_7], %7 {strides = array<i32>} : memref<128x128xf32, #tpu.memory_space<vmem>>, vector<128x128xf32>,
    return
  }
  func.func @transform_0(%arg0: i32) -> (i32, i32) {
    %c0_i32 = arith.constant 0 : i32
    %c0_i32_0 = arith.constant 0 : i32
    return %arg0, %c0_i32 : i32, i32
  }
  func.func @transform_1(%arg0: i32) -> (i32, i32) {
    %c0_i32 = arith.constant 0 : i32
    %c0_i32_0 = arith.constant 0 : i32
    %c0_i32_1 = arith.constant 0 : i32
    return %c0_i32, %c0_i32_0 : i32, i32
  }
  func.func @transform_2(%arg0: i32) -> (i32, i32) {
    %c0_i32 = arith.constant 0 : i32
    %c0_i32_0 = arith.constant 0 : i32
    %c0_i32_1 = arith.constant 0 : i32
    return %c0_i32, %c0_i32_0 : i32, i32
  }
  func.func @transform_3(%arg0: i32) -> (i32, i32) {
    %c0_i32 = arith.constant 0 : i32
    %c0_i32_0 = arith.constant 0 : i32
    return %arg0, %c0_i32 : i32, i32
  }
}

module attributes {stable_mosaic.version = 11 : i64} {
  func.func @_conv_bn_relu_kernel(%arg0: i32, %arg1: memref<128x36xbf16, #tpu.memory_space<vmem>>, %arg2: memref<36x384xbf16, #tpu.memory_space<vmem>>, %arg3: memref<1x384xf32, #tpu.memory_space<vmem>>, %arg4: memref<128x384xf32, #tpu.memory_space<vmem>>) attributes {dimension_semantics = [#tpu.dimension_semantics<parallel>], iteration_bounds = array<i64: 1>, scalar_prefetch = 0 : i64, scratch_operands = 0 : i64, tpu.core_type = #tpu.core_type<tc>, window_params = [{transform_indices = @transform_0, window_bounds = array<i64: 128, 36>}, {pipeline_mode = #tpu.pipeline_mode<synchronous>, transform_indices = @transform_1, window_bounds = array<i64: 36, 384>}, {pipeline_mode = #tpu.pipeline_mode<synchronous>, transform_indices = @transform_2, window_bounds = array<i64: 1, 384>}, {transform_indices = @transform_3, window_bounds = array<i64: 128, 384>}]} {
    %c0 = arith.constant 0 : index
    %c0_0 = arith.constant 0 : index
    %0 = vector.load %arg1[%c0, %c0_0] : memref<128x36xbf16, #tpu.memory_space<vmem>>, vector<128x36xbf16>
    %c0_1 = arith.constant 0 : index
    %c0_2 = arith.constant 0 : index
    %1 = vector.load %arg2[%c0_1, %c0_2] : memref<36x384xbf16, #tpu.memory_space<vmem>>, vector<36x384xbf16>
    %cst = arith.constant dense<0.000000e+00> : vector<128x384xf32>
    %2 = tpu.matmul %0, %1, %cst {dimension_numbers = #tpu.dot_dimension_numbers<[1], [0], [0], [1], [0, 0, 1, 1], [], []>} : vector<128x36xbf16>, vector<36x384xbf16>, vector<128x384xf32> -> vector<128x384xf32>
    %c0_3 = arith.constant 0 : index
    %c0_4 = arith.constant 0 : index
    %3 = vector.load %arg3[%c0_3, %c0_4] : memref<1x384xf32, #tpu.memory_space<vmem>>, vector<1x384xf32>
    %4 = vector.broadcast %3 : vector<1x384xf32> to vector<128x384xf32>
    %5 = arith.addf %2, %4 : vector<128x384xf32>
    %cst_5 = arith.constant 0.000000e+00 : f32
    %6 = vector.broadcast %cst_5 : f32 to vector<128x384xf32>
    %7 = arith.maximumf %5, %6 : vector<128x384xf32>
    %c0_6 = arith.constant 0 : index
    %c0_7 = arith.constant 0 : index
    %8 = vector.load %arg4[%c0_6, %c0_7] : memref<128x384xf32, #tpu.memory_space<vmem>>, vector<128x384xf32>
    tpu.vector_store %arg4[%c0_6, %c0_7], %7 {strides = array<i32>} : memref<128x384xf32, #tpu.memory_space<vmem>>, vector<128x384xf32>,
    return
  }
  func.func @transform_0(%arg0: i32) -> (i32, i32) {
    %c0_i32 = arith.constant 0 : i32
    %c0_i32_0 = arith.constant 0 : i32
    return %arg0, %c0_i32 : i32, i32
  }
  func.func @transform_1(%arg0: i32) -> (i32, i32) {
    %c0_i32 = arith.constant 0 : i32
    %c0_i32_0 = arith.constant 0 : i32
    %c0_i32_1 = arith.constant 0 : i32
    return %c0_i32, %c0_i32_0 : i32, i32
  }
  func.func @transform_2(%arg0: i32) -> (i32, i32) {
    %c0_i32 = arith.constant 0 : i32
    %c0_i32_0 = arith.constant 0 : i32
    %c0_i32_1 = arith.constant 0 : i32
    return %c0_i32, %c0_i32_0 : i32, i32
  }
  func.func @transform_3(%arg0: i32) -> (i32, i32) {
    %c0_i32 = arith.constant 0 : i32
    %c0_i32_0 = arith.constant 0 : i32
    return %arg0, %c0_i32 : i32, i32
  }
}

</mosaic_0001>

<llo_original>
// kernel: inception_b_forward.5
$region0: #{inception_b_forward.5}
  #allocation0 [shape = 'u32[]', space=smem, size = 0x4, offset = 0x4, fixed_abs, tag = 'smem constant byte address 0x4 - core index']
  #allocation1 [shape = 'u32[144,128]{1,0:T(1,128)}', space=vmem, size = 0x12000, scoped, tag = 'internal scratch']
  %s0 = inlined_call_operand.hbm [shape: bf16[592,4], index: 0, kind: input, shape index: {}]
  %s1 = inlined_call_operand.hbm [shape: bf16[4,128], index: 1, kind: input, shape index: {}]
  %s2 = inlined_call_operand.hbm [shape: f32[1,128], index: 2, kind: input, shape index: {}]
  %s3 = inlined_call_operand.hbm [shape: bf16[592,128], index: 3, kind: output, shape index: {}]
  %s4 = sld [smem:[#allocation0]]
  $region34: #{inception_b_forward.5} parent=0
    _
  %s6 = ssub.s32 1, %s4
  %s7 = scalar_select 0, %s6, %s4
  $region1: #{inception_b_forward.5} parent=0
    #allocation2 [shape = 'u8[151552]{0}', space=vmem, size = 0x25000, scoped, tag = 'input window, operand 0, single buffered']
    #allocation3 [shape = 's32[1]{0}', space=sflag, size = 0x4, scoped, tag = 'scoped memory for inception_b_forward.5']
    #allocation4 [shape = 's32[1]{0}', space=sflag, size = 0x4, scoped, tag = 'scoped memory for inception_b_forward.5']
    #allocation5 [shape = 'u8[1024]{0}', space=vmem, size = 0x400, scoped, tag = 'input window, operand 1, single buffered']
    #allocation6 [shape = 's32[1]{0}', space=sflag, size = 0x4, scoped, tag = 'scoped memory for inception_b_forward.5']
    #allocation7 [shape = 'u8[512]{0}', space=vmem, size = 0x400, scoped, tag = 'input window, operand 2, single buffered']
    #allocation8 [shape = 'u8[151552]{0}', space=vmem, size = 0x25000, scoped, tag = 'output window, operand 0, single buffered']
    %8 = vsyncpa [#allocation3], 0
    %9 = vsyncpa [#allocation6], 0
    %10 = vsyncpa [#allocation4], 0
    // Predicated region
    $region2: #{inception_b_forward.5} parent=1 // pred_check
      _
    $region3: #{inception_b_forward.5} parent=1 // pred_check_branch
      %12 = sbr.rel (0) target = $region5
    $region4: #{inception_b_forward.5} parent=1 // pred_region
      %s14 = ssub.s32 4736, 4736
      %15 = vsyncadd [#allocation3], %s14
      %s16 = sshll.u32 [#allocation2], 4
      %s17 = int_to_ptr.vmem [resolvable:$true] %s16
      %22 = dma.hbm_to_vmem [thread:$0]  %s0, 4736, %s17, [#allocation3], 64, 64, 4
    $region5: #{inception_b_forward.5} parent=1 // pred_fallthru
      _
    // Predicated region
    $region6: #{inception_b_forward.5} parent=1 // pred_check
      _
    $region7: #{inception_b_forward.5} parent=1 // pred_check_branch
      %24 = sbr.rel (0) target = $region9
    $region8: #{inception_b_forward.5} parent=1 // pred_region
      %s26 = ssub.s32 32, 32
      %27 = vsyncadd [#allocation6], %s26
      %s29 = sshll.u32 [#allocation5], 4
      %s30 = int_to_ptr.vmem [resolvable:$true] %s29
      %32 = dma.hbm_to_vmem [thread:$0]  %s1, 32, %s30, [#allocation6]
    $region9: #{inception_b_forward.5} parent=1 // pred_fallthru
      _
    // Predicated region
    $region10: #{inception_b_forward.5} parent=1 // pred_check
      _
    $region11: #{inception_b_forward.5} parent=1 // pred_check_branch
      %34 = sbr.rel (0) target = $region13
    $region12: #{inception_b_forward.5} parent=1 // pred_region
      %s36 = ssub.s32 16, 16
      %37 = vsyncadd [#allocation6], %s36
      %s39 = sshll.u32 [#allocation7], 4
      %s40 = int_to_ptr.vmem [resolvable:$true] %s39
      %42 = dma.hbm_to_vmem [thread:$0]  %s2, 16, %s40, [#allocation6]
    $region13: #{inception_b_forward.5} parent=1 // pred_fallthru
      _
    // Predicated region
    $region14: #{inception_b_forward.5} parent=1 // pred_check
      _
    $region15: #{inception_b_forward.5} parent=1 // pred_check_branch
      %44 = sbr.rel (0) target = $region17
    $region16: #{inception_b_forward.5} parent=1 // pred_region
      %45 = dma.done [#allocation3], 4736
    $region17: #{inception_b_forward.5} parent=1 // pred_fallthru
      _
    // Predicated region
    $region18: #{inception_b_forward.5} parent=1 // pred_check
      _
    $region19: #{inception_b_forward.5} parent=1 // pred_check_branch
      %47 = sbr.rel (0) target = $region21
    $region20: #{inception_b_forward.5} parent=1 // pred_region
      %48 = dma.done [#allocation6], 32
    $region21: #{inception_b_forward.5} parent=1 // pred_fallthru
      _
    // Predicated region
    $region22: #{inception_b_forward.5} parent=1 // pred_check
      _
    $region23: #{inception_b_forward.5} parent=1 // pred_check_branch
      %50 = sbr.rel (0) target = $region25
    $region24: #{inception_b_forward.5} parent=1 // pred_region
      %51 = dma.done [#allocation6], 16
    $region25: #{inception_b_forward.5} parent=1 // pred_fallthru
      _
    %v53 = vld [vmem:[#allocation2] sm:$0xf]
    %v54 = vld [vmem:[#allocation2 + $0x4] sm:$0xf]
    %v55 = vld [vmem:[#allocation2 + $0x8] sm:$0xf]
    %v56 = vld [vmem:[#allocation2 + $0xc] sm:$0xf]
    %v57 = vld [vmem:[#allocation2 + $0x10] sm:$0xf]
    %v58 = vld [vmem:[#allocation2 + $0x14] sm:$0xf]
    %v59 = vld [vmem:[#allocation2 + $0x18] sm:$0xf]
    %v60 = vld [vmem:[#allocation2 + $0x1c] sm:$0xf]
    %v61 = vld [vmem:[#allocation2 + $0x20] sm:$0xf]
    %v62 = vld [vmem:[#allocation2 + $0x24] sm:$0xf]
    %v63 = vld [vmem:[#allocation2 + $0x28] sm:$0xf]
    %v64 = vld [vmem:[#allocation2 + $0x2c] sm:$0xf]
    %v65 = vld [vmem:[#allocation2 + $0x30] sm:$0xf]
    %v66 = vld [vmem:[#allocation2 + $0x34] sm:$0xf]
    %v67 = vld [vmem:[#allocation2 + $0x38] sm:$0xf]
    %v68 = vld [vmem:[#allocation2 + $0x3c] sm:$0xf]
    %v69 = vld [vmem:[#allocation2 + $0x40] sm:$0xf]
    %v70 = vld [vmem:[#allocation2 + $0x44] sm:$0xf]
    %v71 = vld [vmem:[#allocation2 + $0x48] sm:$0xf]
    %v72 = vld [vmem:[#allocation2 + $0x4c] sm:$0xf]
    %v73 = vld [vmem:[#allocation2 + $0x50] sm:$0xf]
    %v74 = vld [vmem:[#allocation2 + $0x54] sm:$0xf]
    %v75 = vld [vmem:[#allocation2 + $0x58] sm:$0xf]
    %v76 = vld [vmem:[#allocation2 + $0x5c] sm:$0xf]
    %v77 = vld [vmem:[#allocation2 + $0x60] sm:$0xf]
    %v78 = vld [vmem:[#allocation2 + $0x64] sm:$0xf]
    %v79 = vld [vmem:[#allocation2 + $0x68] sm:$0xf]
    %v80 = vld [vmem:[#allocation2 + $0x6c] sm:$0xf]
    %v81 = vld [vmem:[#allocation2 + $0x70] sm:$0xf]
    %v82 = vld [vmem:[#allocation2 + $0x74] sm:$0xf]
    %v83 = vld [vmem:[#allocation2 + $0x78] sm:$0xf]
    %v84 = vld [vmem:[#allocation2 + $0x7c] sm:$0xf]
    %v85 = vld [vmem:[#allocation2 + $0x80] sm:$0xf]
    %v86 = vld [vmem:[#allocation2 + $0x84] sm:$0xf]
    %v87 = vld [vmem:[#allocation2 + $0x88] sm:$0xf]
    %v88 = vld [vmem:[#allocation2 + $0x8c] sm:$0xf]
    %v89 = vld [vmem:[#allocation2 + $0x90] sm:$0xf]
    %v90 = vld [vmem:[#allocation2 + $0x94] sm:$0xf]
    %v91 = vld [vmem:[#allocation2 + $0x98] sm:$0xf]
    %v92 = vld [vmem:[#allocation2 + $0x9c] sm:$0xf]
    %v93 = vld [vmem:[#allocation2 + $0xa0] sm:$0xf]
    %v94 = vld [vmem:[#allocation2 + $0xa4] sm:$0xf]
    %v95 = vld [vmem:[#allocation2 + $0xa8] sm:$0xf]
    %v96 = vld [vmem:[#allocation2 + $0xac] sm:$0xf]
    %v97 = vld [vmem:[#allocation2 + $0xb0] sm:$0xf]
    %v98 = vld [vmem:[#allocation2 + $0xb4] sm:$0xf]
    %v99 = vld [vmem:[#allocation2 + $0xb8] sm:$0xf]
    %v100 = vld [vmem:[#allocation2 + $0xbc] sm:$0xf]
    %v101 = vld [vmem:[#allocation2 + $0xc0] sm:$0xf]
    %v102 = vld [vmem:[#allocation2 + $0xc4] sm:$0xf]
    %v103 = vld [vmem:[#allocation2 + $0xc8] sm:$0xf]
    %v104 = vld [vmem:[#allocation2 + $0xcc] sm:$0xf]
    %v105 = vld [vmem:[#allocation2 + $0xd0] sm:$0xf]
    %v106 = vld [vmem:[#allocation2 + $0xd4] sm:$0xf]
    %v107 = vld [vmem:[#allocation2 + $0xd8] sm:$0xf]
    %v108 = vld [vmem:[#allocation2 + $0xdc] sm:$0xf]
    %v109 = vld [vmem:[#allocation2 + $0xe0] sm:$0xf]
    %v110 = vld [vmem:[#allocation2 + $0xe4] sm:$0xf]
    %v111 = vld [vmem:[#allocation2 + $0xe8] sm:$0xf]
    %v112 = vld [vmem:[#allocation2 + $0xec] sm:$0xf]
    %v113 = vld [vmem:[#allocation2 + $0xf0] sm:$0xf]
    %v114 = vld [vmem:[#allocation2 + $0xf4] sm:$0xf]
    %v115 = vld [vmem:[#allocation2 + $0xf8] sm:$0xf]
    %v116 = vld [vmem:[#allocation2 + $0xfc] sm:$0xf]
    %v117 = vld [vmem:[#allocation2 + $0x100] sm:$0xf]
    %v118 = vld [vmem:[#allocation2 + $0x104] sm:$0xf]
    %v119 = vld [vmem:[#allocation2 + $0x108] sm:$0xf]
    %v120 = vld [vmem:[#allocation2 + $0x10c] sm:$0xf]
    %v121 = vld [vmem:[#allocation2 + $0x110] sm:$0xf]
    %v122 = vld [vmem:[#allocation2 + $0x114] sm:$0xf]
    %v123 = vld [vmem:[#allocation2 + $0x118] sm:$0xf]
    %v124 = vld [vmem:[#allocation2 + $0x11c] sm:$0xf]
    %v125 = vld [vmem:[#allocation2 + $0x120] sm:$0xf]
    %v126 = vld [vmem:[#allocation2 + $0x124] sm:$0xf]
    %v127 = vld [vmem:[#allocation5] sm:$0x3]
    %v128 = vld [vmem:[#allocation7] sm:$0x1]
    %v130 = vlaneseq
    %v131 = vshrl.u32 %v130, 7
    %v132 = vsub.s32 0, %v131
    %v133 = vrot.slane %v128, %v132
    %v209 = vunpack.c.l.b16 %v53
    %v210 = vunpack.c.l.b16 %v54
    %v211 = vunpack.c.l.b16 %v55
    %v212 = vunpack.c.l.b16 %v56
    %v213 = vunpack.c.l.b16 %v57
    %v214 = vunpack.c.l.b16 %v58
    %v215 = vunpack.c.l.b16 %v59
    %v216 = vunpack.c.l.b16 %v60
    %v217 = vunpack.c.l.b16 %v61
    %v218 = vunpack.c.l.b16 %v62
    %v219 = vunpack.c.l.b16 %v63
    %v220 = vunpack.c.l.b16 %v64
    %v221 = vunpack.c.l.b16 %v65
    %v222 = vunpack.c.l.b16 %v66
    %v223 = vunpack.c.l.b16 %v67
    %v224 = vunpack.c.l.b16 %v68
    %v225 = vunpack.c.l.b16 %v69
    %v226 = vunpack.c.l.b16 %v70
    %v227 = vunpack.c.l.b16 %v71
    %v228 = vunpack.c.l.b16 %v72
    %v229 = vunpack.c.l.b16 %v73
    %v230 = vunpack.c.l.b16 %v74
    %v231 = vunpack.c.l.b16 %v75
    %v232 = vunpack.c.l.b16 %v76
    %v233 = vunpack.c.l.b16 %v77
    %v234 = vunpack.c.l.b16 %v78
    %v235 = vunpack.c.l.b16 %v79
    %v236 = vunpack.c.l.b16 %v80
    %v237 = vunpack.c.l.b16 %v81
    %v238 = vunpack.c.l.b16 %v82
    %v239 = vunpack.c.l.b16 %v83
    %v240 = vunpack.c.l.b16 %v84
    %v241 = vunpack.c.l.b16 %v85
    %v242 = vunpack.c.l.b16 %v86
    %v243 = vunpack.c.l.b16 %v87
    %v244 = vunpack.c.l.b16 %v88
    %v245 = vunpack.c.l.b16 %v89
    %v246 = vunpack.c.l.b16 %v90
    %v247 = vunpack.c.l.b16 %v91
    %v248 = vunpack.c.l.b16 %v92
    %v249 = vunpack.c.l.b16 %v93
    %v250 = vunpack.c.l.b16 %v94
    %v251 = vunpack.c.l.b16 %v95
    %v252 = vunpack.c.l.b16 %v96
    %v253 = vunpack.c.l.b16 %v97
    %v254 = vunpack.c.l.b16 %v98
    %v255 = vunpack.c.l.b16 %v99
    %v256 = vunpack.c.l.b16 %v100
    %v257 = vunpack.c.l.b16 %v101
    %v258 = vunpack.c.l.b16 %v102
    %v259 = vunpack.c.l.b16 %v103
    %v260 = vunpack.c.l.b16 %v104
    %v261 = vunpack.c.l.b16 %v105
    %v262 = vunpack.c.l.b16 %v106
    %v263 = vunpack.c.l.b16 %v107
    %v264 = vunpack.c.l.b16 %v108
    %v265 = vunpack.c.l.b16 %v109
    %v266 = vunpack.c.l.b16 %v110
    %v267 = vunpack.c.l.b16 %v111
    %v268 = vunpack.c.l.b16 %v112
    %v269 = vunpack.c.l.b16 %v113
    %v270 = vunpack.c.l.b16 %v114
    %v271 = vunpack.c.l.b16 %v115
    %v272 = vunpack.c.l.b16 %v116
    %v273 = vunpack.c.l.b16 %v117
    %v274 = vunpack.c.l.b16 %v118
    %v275 = vunpack.c.l.b16 %v119
    %v276 = vunpack.c.l.b16 %v120
    %v277 = vunpack.c.l.b16 %v121
    %v278 = vunpack.c.l.b16 %v122
    %v279 = vunpack.c.l.b16 %v123
    %v280 = vunpack.c.l.b16 %v124
    %v281 = vunpack.c.l.b16 %v125
    %v282 = vunpack.c.l.b16 %v126
    %v283 = vpack.c.b16 %v210, %v209
    %v284 = vpack.c.b16 %v212, %v211
    %v285 = vpack.c.b16 %v214, %v213
    %v286 = vpack.c.b16 %v216, %v215
    %v287 = vpack.c.b16 %v218, %v217
    %v288 = vpack.c.b16 %v220, %v219
    %v289 = vpack.c.b16 %v222, %v221
    %v290 = vpack.c.b16 %v224, %v223
    %v291 = vpack.c.b16 %v226, %v225
    %v292 = vpack.c.b16 %v228, %v227
    %v293 = vpack.c.b16 %v230, %v229
    %v294 = vpack.c.b16 %v232, %v231
    %v295 = vpack.c.b16 %v234, %v233
    %v296 = vpack.c.b16 %v236, %v235
    %v297 = vpack.c.b16 %v238, %v237
    %v298 = vpack.c.b16 %v240, %v239
    %v299 = vpack.c.b16 %v242, %v241
    %v300 = vpack.c.b16 %v244, %v243
    %v301 = vpack.c.b16 %v246, %v245
    %v302 = vpack.c.b16 %v248, %v247
    %v303 = vpack.c.b16 %v250, %v249
    %v304 = vpack.c.b16 %v252, %v251
    %v305 = vpack.c.b16 %v254, %v253
    %v306 = vpack.c.b16 %v256, %v255
    %v307 = vpack.c.b16 %v258, %v257
    %v308 = vpack.c.b16 %v260, %v259
    %v309 = vpack.c.b16 %v262, %v261
    %v310 = vpack.c.b16 %v264, %v263
    %v311 = vpack.c.b16 %v266, %v265
    %v312 = vpack.c.b16 %v268, %v267
    %v313 = vpack.c.b16 %v270, %v269
    %v314 = vpack.c.b16 %v272, %v271
    %v315 = vpack.c.b16 %v274, %v273
    %v316 = vpack.c.b16 %v276, %v275
    %v317 = vpack.c.b16 %v278, %v277
    %v318 = vpack.c.b16 %v280, %v279
    %v319 = vpack.c.b16 %v282, %v281
    %vm320 = vcmask 31744
    %v322 = vsel %vm320, %v283, 0
    %v325 = vsel %vm320, %v284, 0
    %v328 = vsel %vm320, %v285, 0
    %v331 = vsel %vm320, %v286, 0
    %v334 = vsel %vm320, %v287, 0
    %v337 = vsel %vm320, %v288, 0
    %v340 = vsel %vm320, %v289, 0
    %v343 = vsel %vm320, %v290, 0
    %v346 = vsel %vm320, %v291, 0
    %v349 = vsel %vm320, %v292, 0
    %v352 = vsel %vm320, %v293, 0
    %v355 = vsel %vm320, %v294, 0
    %v358 = vsel %vm320, %v295, 0
    %v361 = vsel %vm320, %v296, 0
    %v364 = vsel %vm320, %v297, 0
    %v367 = vsel %vm320, %v298, 0
    %v370 = vsel %vm320, %v299, 0
    %v373 = vsel %vm320, %v300, 0
    %v376 = vsel %vm320, %v301, 0
    %v379 = vsel %vm320, %v302, 0
    %v382 = vsel %vm320, %v303, 0
    %v385 = vsel %vm320, %v304, 0
    %v388 = vsel %vm320, %v305, 0
    %v391 = vsel %vm320, %v306, 0
    %v394 = vsel %vm320, %v307, 0
    %v397 = vsel %vm320, %v308, 0
    %v400 = vsel %vm320, %v309, 0
    %v403 = vsel %vm320, %v310, 0
    %v406 = vsel %vm320, %v311, 0
    %v409 = vsel %vm320, %v312, 0
    %v412 = vsel %vm320, %v313, 0
    %v415 = vsel %vm320, %v314, 0
    %v418 = vsel %vm320, %v315, 0
    %v421 = vsel %vm320, %v316, 0
    %v424 = vsel %vm320, %v317, 0
    %v427 = vsel %vm320, %v318, 0
    %v430 = vsel %vm320, %v319, 0
    %vm432 = vcmask 1041408
    %v434 = vsel %vm432, %v127, 0
    %436 = vmatprep.subr.bf16.mxu0 0
    %437 = vmatpush1.bf16.msra.mxu0 %v434
    %438 = vmatprep.subr.bf16.mxu0 0
    %439 = vmatpush1.bf16.msra.mxu0 0
    %440 = vmatprep.subr.bf16.mxu0 0
    %441 = vmatpush1.bf16.msra.mxu0 0
    %442 = vmatprep.subr.bf16.mxu0 0
    %443 = vmatpush1.bf16.msra.mxu0 0
    %444 = vmatprep.subr.bf16.mxu0 0
    %445 = vmatpush1.bf16.msra.mxu0 0
    %446 = vmatprep.subr.bf16.mxu0 0
    %447 = vmatpush1.bf16.msra.mxu0 0
    %448 = vmatprep.subr.bf16.mxu0 0
    %449 = vmatpush1.bf16.msra.mxu0 0
    %450 = vmatprep.subr.bf16.mxu0 0
    %451 = vmatpush1.bf16.msra.mxu0 0
    %452 = vmatprep.subr.bf16.mxu0 0
    %453 = vmatpush1.bf16.msra.mxu0 0
    %454 = vmatprep.subr.bf16.mxu0 0
    %455 = vmatpush1.bf16.msra.mxu0 0
    %456 = vmatprep.subr.bf16.mxu0 0
    %457 = vmatpush1.bf16.msra.mxu0 0
    %458 = vmatprep.subr.bf16.mxu0 0
    %459 = vmatpush1.bf16.msra.mxu0 0
    %460 = vmatprep.subr.bf16.mxu0 0
    %461 = vmatpush1.bf16.msra.mxu0 0
    %462 = vmatprep.subr.bf16.mxu0 0
    %463 = vmatpush1.bf16.msra.mxu0 0
    %464 = vmatprep.subr.bf16.mxu0 0
    %465 = vmatpush1.bf16.msra.mxu0 0
    %466 = vmatprep.subr.bf16.mxu0 0
    %467 = vmatpush1.bf16.msra.mxu0 0
    %468 = vmatprep.mubr.bf16.mxu0 0
    %469 = vmatmul.mubr.bf16.gmra.mrb[0].mxu0 %v322
    %v470 = vpop.f32.mrb[0].mxu0
    %v471 = vadd.f32 %v133, %v470
    %v472 = vpop.f32.mrb[0].mxu0
    %v473 = vpop.f32.mrb[0].mxu0
    %v474 = vadd.f32 %v133, %v473
    %v475 = vpop.f32.mrb[0].mxu0
    %476 = vmatprep.mubr.bf16.mxu0 0
    %477 = vmatmul.mubr.bf16.gmra.mrb[0].mxu0 %v325
    %v478 = vpop.f32.mrb[0].mxu0
    %v479 = vadd.f32 %v133, %v478
    %v480 = vpop.f32.mrb[0].mxu0
    %v481 = vpop.f32.mrb[0].mxu0
    %v482 = vadd.f32 %v133, %v481
    %v483 = vpop.f32.mrb[0].mxu0
    %484 = vmatprep.mubr.bf16.mxu0 0
    %485 = vmatmul.mubr.bf16.gmra.mrb[0].mxu0 %v328
    %v486 = vpop.f32.mrb[0].mxu0
    %v487 = vadd.f32 %v133, %v486
    %v488 = vpop.f32.mrb[0].mxu0
    %v489 = vpop.f32.mrb[0].mxu0
    %v490 = vadd.f32 %v133, %v489
    %v491 = vpop.f32.mrb[0].mxu0
    %492 = vmatprep.mubr.bf16.mxu0 0
    %493 = vmatmul.mubr.bf16.gmra.mrb[0].mxu0 %v331
    %v494 = vpop.f32.mrb[0].mxu0
    %v495 = vadd.f32 %v133, %v494
    %v496 = vpop.f32.mrb[0].mxu0
    %v497 = vpop.f32.mrb[0].mxu0
    %v498 = vadd.f32 %v133, %v497
    %v499 = vpop.f32.mrb[0].mxu0
    %500 = vmatprep.mubr.bf16.mxu0 0
    %501 = vmatmul.mubr.bf16.gmra.mrb[0].mxu0 %v334
    %v502 = vpop.f32.mrb[0].mxu0
    %v503 = vadd.f32 %v133, %v502
    %v504 = vpop.f32.mrb[0].mxu0
    %v505 = vpop.f32.mrb[0].mxu0
    %v506 = vadd.f32 %v133, %v505
    %v507 = vpop.f32.mrb[0].mxu0
    %508 = vmatprep.mubr.bf16.mxu0 0
    %509 = vmatmul.mubr.bf16.gmra.mrb[0].mxu0 %v337
    %v510 = vpop.f32.mrb[0].mxu0
    %v511 = vadd.f32 %v133, %v510
    %v512 = vpop.f32.mrb[0].mxu0
    %v513 = vpop.f32.mrb[0].mxu0
    %v514 = vadd.f32 %v133, %v513
    %v515 = vpop.f32.mrb[0].mxu0
    %516 = vmatprep.mubr.bf16.mxu0 0
    %517 = vmatmul.mubr.bf16.gmra.mrb[0].mxu0 %v340
    %v518 = vpop.f32.mrb[0].mxu0
    %v519 = vadd.f32 %v133, %v518
    %v520 = vpop.f32.mrb[0].mxu0
    %v521 = vpop.f32.mrb[0].mxu0
    %v522 = vadd.f32 %v133, %v521
    %v523 = vpop.f32.mrb[0].mxu0
    %524 = vmatprep.mubr.bf16.mxu0 0
    %525 = vmatmul.mubr.bf16.gmra.mrb[0].mxu0 %v343
    %v526 = vpop.f32.mrb[0].mxu0
    %v527 = vadd.f32 %v133, %v526
    %v528 = vpop.f32.mrb[0].mxu0
    %v529 = vpop.f32.mrb[0].mxu0
    %v530 = vadd.f32 %v133, %v529
    %v531 = vpop.f32.mrb[0].mxu0
    %532 = vmatprep.mubr.bf16.mxu0 0
    %533 = vmatmul.mubr.bf16.gmra.mrb[0].mxu0 %v346
    %v534 = vpop.f32.mrb[0].mxu0
    %v535 = vadd.f32 %v133, %v534
    %v536 = vpop.f32.mrb[0].mxu0
    %v537 = vpop.f32.mrb[0].mxu0
    %v538 = vadd.f32 %v133, %v537
    %v539 = vpop.f32.mrb[0].mxu0
    %540 = vmatprep.mubr.bf16.mxu0 0
    %541 = vmatmul.mubr.bf16.gmra.mrb[0].mxu0 %v349
    %v542 = vpop.f32.mrb[0].mxu0
    %v543 = vadd.f32 %v133, %v542
    %v544 = vpop.f32.mrb[0].mxu0
    %v545 = vpop.f32.mrb[0].mxu0
    %v546 = vadd.f32 %v133, %v545
    %v547 = vpop.f32.mrb[0].mxu0
    %548 = vmatprep.mubr.bf16.mxu0 0
    %549 = vmatmul.mubr.bf16.gmra.mrb[0].mxu0 %v352
    %v550 = vpop.f32.mrb[0].mxu0
    %v551 = vadd.f32 %v133, %v550
    %v552 = vpop.f32.mrb[0].mxu0
    %v553 = vpop.f32.mrb[0].mxu0
    %v554 = vadd.f32 %v133, %v553
    %v555 = vpop.f32.mrb[0].mxu0
    %556 = vmatprep.mubr.bf16.mxu0 0
    %557 = vmatmul.mubr.bf16.gmra.mrb[0].mxu0 %v355
    %v558 = vpop.f32.mrb[0].mxu0
    %v559 = vadd.f32 %v133, %v558
    %v560 = vpop.f32.mrb[0].mxu0
    %v561 = vpop.f32.mrb[0].mxu0
    %v562 = vadd.f32 %v133, %v561
    %v563 = vpop.f32.mrb[0].mxu0
    %564 = vmatprep.mubr.bf16.mxu0 0
    %565 = vmatmul.mubr.bf16.gmra.mrb[0].mxu0 %v358
    %v566 = vpop.f32.mrb[0].mxu0
    %v567 = vadd.f32 %v133, %v566
    %v568 = vpop.f32.mrb[0].mxu0
    %v569 = vpop.f32.mrb[0].mxu0
    %v570 = vadd.f32 %v133, %v569
    %v571 = vpop.f32.mrb[0].mxu0
    %572 = vmatprep.mubr.bf16.mxu0 0
    %573 = vmatmul.mubr.bf16.gmra.mrb[0].mxu0 %v361
    %v574 = vpop.f32.mrb[0].mxu0
    %v575 = vadd.f32 %v133, %v574
    %v576 = vpop.f32.mrb[0].mxu0
    %v577 = vpop.f32.mrb[0].mxu0
    %v578 = vadd.f32 %v133, %v577
    %v579 = vpop.f32.mrb[0].mxu0
    %580 = vmatprep.mubr.bf16.mxu0 0
    %581 = vmatmul.mubr.bf16.gmra.mrb[0].mxu0 %v364
    %v582 = vpop.f32.mrb[0].mxu0
    %v583 = vadd.f32 %v133, %v582
    %v584 = vpop.f32.mrb[0].mxu0
    %v585 = vpop.f32.mrb[0].mxu0
    %v586 = vadd.f32 %v133, %v585
    %v587 = vpop.f32.mrb[0].mxu0
    %588 = vmatprep.mubr.bf16.mxu0 0
    %589 = vmatmul.mubr.bf16.gmra.mrb[0].mxu0 %v367
    %v590 = vpop.f32.mrb[0].mxu0
    %v591 = vadd.f32 %v133, %v590
    %v592 = vpop.f32.mrb[0].mxu0
    %v593 = vpop.f32.mrb[0].mxu0
    %v594 = vadd.f32 %v133, %v593
    %v595 = vpop.f32.mrb[0].mxu0
    %596 = vmatprep.mubr.bf16.mxu0 0
    %597 = vmatmul.mubr.bf16.gmra.mrb[0].mxu0 %v370
    %v598 = vpop.f32.mrb[0].mxu0
    %v599 = vadd.f32 %v133, %v598
    %v600 = vpop.f32.mrb[0].mxu0
    %v601 = vpop.f32.mrb[0].mxu0
    %v602 = vadd.f32 %v133, %v601
    %v603 = vpop.f32.mrb[0].mxu0
    %604 = vmatprep.mubr.bf16.mxu0 0
    %605 = vmatmul.mubr.bf16.gmra.mrb[0].mxu0 %v373
    %v606 = vpop.f32.mrb[0].mxu0
    %v607 = vadd.f32 %v133, %v606
    %v608 = vpop.f32.mrb[0].mxu0
    %v609 = vpop.f32.mrb[0].mxu0
    %v610 = vadd.f32 %v133, %v609
    %v611 = vpop.f32.mrb[0].mxu0
    %612 = vmatprep.mubr.bf16.mxu0 0
    %613 = vmatmul.mubr.bf16.gmra.mrb[0].mxu0 %v376
    %v614 = vpop.f32.mrb[0].mxu0
    %v615 = vadd.f32 %v133, %v614
    %v616 = vpop.f32.mrb[0].mxu0
    %v617 = vpop.f32.mrb[0].mxu0
    %v618 = vadd.f32 %v133, %v617
    %v619 = vpop.f32.mrb[0].mxu0
    %620 = vmatprep.mubr.bf16.mxu0 0
    %621 = vmatmul.mubr.bf16.gmra.mrb[0].mxu0 %v379
    %v622 = vpop.f32.mrb[0].mxu0
    %v623 = vadd.f32 %v133, %v622
    %v624 = vpop.f32.mrb[0].mxu0
    %v625 = vpop.f32.mrb[0].mxu0
    %v626 = vadd.f32 %v133, %v625
    %v627 = vpop.f32.mrb[0].mxu0
    %628 = vmatprep.mubr.bf16.mxu0 0
    %629 = vmatmul.mubr.bf16.gmra.mrb[0].mxu0 %v382
    %v630 = vpop.f32.mrb[0].mxu0
    %v631 = vadd.f32 %v133, %v630
    %v632 = vpop.f32.mrb[0].mxu0
    %v633 = vpop.f32.mrb[0].mxu0
    %v634 = vadd.f32 %v133, %v633
    %v635 = vpop.f32.mrb[0].mxu0
    %636 = vmatprep.mubr.bf16.mxu0 0
    %637 = vmatmul.mubr.bf16.gmra.mrb[0].mxu0 %v385
    %v638 = vpop.f32.mrb[0].mxu0
    %v639 = vadd.f32 %v133, %v638
    %v640 = vpop.f32.mrb[0].mxu0
    %v641 = vpop.f32.mrb[0].mxu0
    %v642 = vadd.f32 %v133, %v641
    %v643 = vpop.f32.mrb[0].mxu0
    %644 = vmatprep.mubr.bf16.mxu0 0
    %645 = vmatmul.mubr.bf16.gmra.mrb[0].mxu0 %v388
    %v646 = vpop.f32.mrb[0].mxu0
    %v647 = vadd.f32 %v133, %v646
    %v648 = vpop.f32.mrb[0].mxu0
    %v649 = vpop.f32.mrb[0].mxu0
    %v650 = vadd.f32 %v133, %v649
    %v651 = vpop.f32.mrb[0].mxu0
    %652 = vmatprep.mubr.bf16.mxu0 0
    %653 = vmatmul.mubr.bf16.gmra.mrb[0].mxu0 %v391
    %v654 = vpop.f32.mrb[0].mxu0
    %v655 = vadd.f32 %v133, %v654
    %v656 = vpop.f32.mrb[0].mxu0
    %v657 = vpop.f32.mrb[0].mxu0
    %v658 = vadd.f32 %v133, %v657
    %v659 = vpop.f32.mrb[0].mxu0
    %660 = vmatprep.mubr.bf16.mxu0 0
    %661 = vmatmul.mubr.bf16.gmra.mrb[0].mxu0 %v394
    %v662 = vpop.f32.mrb[0].mxu0
    %v663 = vadd.f32 %v133, %v662
    %v664 = vpop.f32.mrb[0].mxu0
    %v665 = vpop.f32.mrb[0].mxu0
    %v666 = vadd.f32 %v133, %v665
    %v667 = vpop.f32.mrb[0].mxu0
    %668 = vmatprep.mubr.bf16.mxu0 0
    %669 = vmatmul.mubr.bf16.gmra.mrb[0].mxu0 %v397
    %v670 = vpop.f32.mrb[0].mxu0
    %v671 = vadd.f32 %v133, %v670
    %v672 = vpop.f32.mrb[0].mxu0
    %v673 = vpop.f32.mrb[0].mxu0
    %v674 = vadd.f32 %v133, %v673
    %v675 = vpop.f32.mrb[0].mxu0
    %676 = vmatprep.mubr.bf16.mxu0 0
    %677 = vmatmul.mubr.bf16.gmra.mrb[0].mxu0 %v400
    %v678 = vpop.f32.mrb[0].mxu0
    %v679 = vadd.f32 %v133, %v678
    %v680 = vpop.f32.mrb[0].mxu0
    %v681 = vpop.f32.mrb[0].mxu0
    %v682 = vadd.f32 %v133, %v681
    %v683 = vpop.f32.mrb[0].mxu0
    %684 = vmatprep.mubr.bf16.mxu0 0
    %685 = vmatmul.mubr.bf16.gmra.mrb[0].mxu0 %v403
    %v686 = vpop.f32.mrb[0].mxu0
    %v687 = vadd.f32 %v133, %v686
    %v688 = vpop.f32.mrb[0].mxu0
    %v689 = vpop.f32.mrb[0].mxu0
    %v690 = vadd.f32 %v133, %v689
    %v691 = vpop.f32.mrb[0].mxu0
    %692 = vmatprep.mubr.bf16.mxu0 0
    %693 = vmatmul.mubr.bf16.gmra.mrb[0].mxu0 %v406
    %v694 = vpop.f32.mrb[0].mxu0
    %v695 = vadd.f32 %v133, %v694
    %v696 = vpop.f32.mrb[0].mxu0
    %v697 = vpop.f32.mrb[0].mxu0
    %v698 = vadd.f32 %v133, %v697
    %v699 = vpop.f32.mrb[0].mxu0
    %700 = vmatprep.mubr.bf16.mxu0 0
    %701 = vmatmul.mubr.bf16.gmra.mrb[0].mxu0 %v409
    %v702 = vpop.f32.mrb[0].mxu0
    %v703 = vadd.f32 %v133, %v702
    %v704 = vpop.f32.mrb[0].mxu0
    %v705 = vpop.f32.mrb[0].mxu0
    %v706 = vadd.f32 %v133, %v705
    %v707 = vpop.f32.mrb[0].mxu0
    %708 = vmatprep.mubr.bf16.mxu0 0
    %709 = vmatmul.mubr.bf16.gmra.mrb[0].mxu0 %v412
    %v710 = vpop.f32.mrb[0].mxu0
    %v711 = vadd.f32 %v133, %v710
    %v712 = vpop.f32.mrb[0].mxu0
    %v713 = vpop.f32.mrb[0].mxu0
    %v714 = vadd.f32 %v133, %v713
    %v715 = vpop.f32.mrb[0].mxu0
    %716 = vmatprep.mubr.bf16.mxu0 0
    %717 = vmatmul.mubr.bf16.gmra.mrb[0].mxu0 %v415
    %v718 = vpop.f32.mrb[0].mxu0
    %v719 = vadd.f32 %v133, %v718
    %v720 = vpop.f32.mrb[0].mxu0
    %v721 = vpop.f32.mrb[0].mxu0
    %v722 = vadd.f32 %v133, %v721
    %v723 = vpop.f32.mrb[0].mxu0
    %724 = vmatprep.mubr.bf16.mxu0 0
    %725 = vmatmul.mubr.bf16.gmra.mrb[0].mxu0 %v418
    %v726 = vpop.f32.mrb[0].mxu0
    %v727 = vadd.f32 %v133, %v726
    %v728 = vpop.f32.mrb[0].mxu0
    %v729 = vpop.f32.mrb[0].mxu0
    %v730 = vadd.f32 %v133, %v729
    %v731 = vpop.f32.mrb[0].mxu0
    %732 = vmatprep.mubr.bf16.mxu0 0
    %733 = vmatmul.mubr.bf16.gmra.mrb[0].mxu0 %v421
    %v734 = vpop.f32.mrb[0].mxu0
    %v735 = vadd.f32 %v133, %v734
    %v736 = vpop.f32.mrb[0].mxu0
    %v737 = vpop.f32.mrb[0].mxu0
    %v738 = vadd.f32 %v133, %v737
    %v739 = vpop.f32.mrb[0].mxu0
    %740 = vmatprep.mubr.bf16.mxu0 0
    %741 = vmatmul.mubr.bf16.gmra.mrb[0].mxu0 %v424
    %v742 = vpop.f32.mrb[0].mxu0
    %v743 = vadd.f32 %v133, %v742
    %v744 = vpop.f32.mrb[0].mxu0
    %v745 = vpop.f32.mrb[0].mxu0
    %v746 = vadd.f32 %v133, %v745
    %v747 = vpop.f32.mrb[0].mxu0
    %748 = vmatprep.mubr.bf16.mxu0 0
    %749 = vmatmul.mubr.bf16.gmra.mrb[0].mxu0 %v427
    %v750 = vpop.f32.mrb[0].mxu0
    %v751 = vadd.f32 %v133, %v750
    %v752 = vpop.f32.mrb[0].mxu0
    %v753 = vpop.f32.mrb[0].mxu0
    %v754 = vadd.f32 %v133, %v753
    %v755 = vpop.f32.mrb[0].mxu0
    %756 = vmatprep.mubr.bf16.mxu0 0
    %757 = vmatmul.mubr.bf16.gmra.mrb[0].mxu0 %v430
    %v758 = vpop.f32.mrb[0].mxu0
    %v759 = vadd.f32 %v133, %v758
    %v760 = vpop.f32.mrb[0].mxu0
    %v761 = vpop.f32.mrb[0].mxu0
    %v762 = vadd.f32 %v133, %v761
    %v763 = vpop.f32.mrb[0].mxu0
    %764 = vdwg.mxu0
    %v765 = vmax.f32 %v471, 0.0
    %v766 = vmax.f32 %v474, 0.0
    %v767 = vmax.f32 %v479, 0.0
    %v768 = vmax.f32 %v482, 0.0
    %v769 = vmax.f32 %v487, 0.0
    %v770 = vmax.f32 %v490, 0.0
    %v771 = vmax.f32 %v495, 0.0
    %v772 = vmax.f32 %v498, 0.0
    %v773 = vmax.f32 %v503, 0.0
    %v774 = vmax.f32 %v506, 0.0
    %v775 = vmax.f32 %v511, 0.0
    %v776 = vmax.f32 %v514, 0.0
    %v777 = vmax.f32 %v519, 0.0
    %v778 = vmax.f32 %v522, 0.0
    %v779 = vmax.f32 %v527, 0.0
    %v780 = vmax.f32 %v530, 0.0
    %v781 = vmax.f32 %v535, 0.0
    %v782 = vmax.f32 %v538, 0.0
    %v783 = vmax.f32 %v543, 0.0
    %v784 = vmax.f32 %v546, 0.0
    %v785 = vmax.f32 %v551, 0.0
    %v786 = vmax.f32 %v554, 0.0
    %v787 = vmax.f32 %v559, 0.0
    %v788 = vmax.f32 %v562, 0.0
    %v789 = vmax.f32 %v567, 0.0
    %v790 = vmax.f32 %v570, 0.0
    %v791 = vmax.f32 %v575, 0.0
    %v792 = vmax.f32 %v578, 0.0
    %v793 = vmax.f32 %v583, 0.0
    %v794 = vmax.f32 %v586, 0.0
    %v795 = vmax.f32 %v591, 0.0
    %v796 = vmax.f32 %v594, 0.0
    %v797 = vmax.f32 %v599, 0.0
    %v798 = vmax.f32 %v602, 0.0
    %v799 = vmax.f32 %v607, 0.0
    %v800 = vmax.f32 %v610, 0.0
    %v801 = vmax.f32 %v615, 0.0
    %v802 = vmax.f32 %v618, 0.0
    %v803 = vmax.f32 %v623, 0.0
    %v804 = vmax.f32 %v626, 0.0
    %v805 = vmax.f32 %v631, 0.0
    %v806 = vmax.f32 %v634, 0.0
    %v807 = vmax.f32 %v639, 0.0
    %v808 = vmax.f32 %v642, 0.0
    %v809 = vmax.f32 %v647, 0.0
    %v810 = vmax.f32 %v650, 0.0
    %v811 = vmax.f32 %v655, 0.0
    %v812 = vmax.f32 %v658, 0.0
    %v813 = vmax.f32 %v663, 0.0
    %v814 = vmax.f32 %v666, 0.0
    %v815 = vmax.f32 %v671, 0.0
    %v816 = vmax.f32 %v674, 0.0
    %v817 = vmax.f32 %v679, 0.0
    %v818 = vmax.f32 %v682, 0.0
    %v819 = vmax.f32 %v687, 0.0
    %v820 = vmax.f32 %v690, 0.0
    %v821 = vmax.f32 %v695, 0.0
    %v822 = vmax.f32 %v698, 0.0
    %v823 = vmax.f32 %v703, 0.0
    %v824 = vmax.f32 %v706, 0.0
    %v825 = vmax.f32 %v711, 0.0
    %v826 = vmax.f32 %v714, 0.0
    %v827 = vmax.f32 %v719, 0.0
    %v828 = vmax.f32 %v722, 0.0
    %v829 = vmax.f32 %v727, 0.0
    %v830 = vmax.f32 %v730, 0.0
    %v831 = vmax.f32 %v735, 0.0
    %v832 = vmax.f32 %v738, 0.0
    %v833 = vmax.f32 %v743, 0.0
    %v834 = vmax.f32 %v746, 0.0
    %v835 = vmax.f32 %v751, 0.0
    %v836 = vmax.f32 %v754, 0.0
    %v837 = vmax.f32 %v759, 0.0
    %v838 = vmax.f32 %v762, 0.0
    %v839 = vpack.c.bf16 %v766, %v765
    %v840 = vpack.c.bf16 %v768, %v767
    %v841 = vpack.c.bf16 %v770, %v769
    %v842 = vpack.c.bf16 %v772, %v771
    %v843 = vpack.c.bf16 %v774, %v773
    %v844 = vpack.c.bf16 %v776, %v775
    %v845 = vpack.c.bf16 %v778, %v777
    %v846 = vpack.c.bf16 %v780, %v779
    %v847 = vpack.c.bf16 %v782, %v781
    %v848 = vpack.c.bf16 %v784, %v783
    %v849 = vpack.c.bf16 %v786, %v785
    %v850 = vpack.c.bf16 %v788, %v787
    %v851 = vpack.c.bf16 %v790, %v789
    %v852 = vpack.c.bf16 %v792, %v791
    %v853 = vpack.c.bf16 %v794, %v793
    %v854 = vpack.c.bf16 %v796, %v795
    %v855 = vpack.c.bf16 %v798, %v797
    %v856 = vpack.c.bf16 %v800, %v799
    %v857 = vpack.c.bf16 %v802, %v801
    %v858 = vpack.c.bf16 %v804, %v803
    %v859 = vpack.c.bf16 %v806, %v805
    %v860 = vpack.c.bf16 %v808, %v807
    %v861 = vpack.c.bf16 %v810, %v809
    %v862 = vpack.c.bf16 %v812, %v811
    %v863 = vpack.c.bf16 %v814, %v813
    %v864 = vpack.c.bf16 %v816, %v815
    %v865 = vpack.c.bf16 %v818, %v817
    %v866 = vpack.c.bf16 %v820, %v819
    %v867 = vpack.c.bf16 %v822, %v821
    %v868 = vpack.c.bf16 %v824, %v823
    %v869 = vpack.c.bf16 %v826, %v825
    %v870 = vpack.c.bf16 %v828, %v827
    %v871 = vpack.c.bf16 %v830, %v829
    %v872 = vpack.c.bf16 %v832, %v831
    %v873 = vpack.c.bf16 %v834, %v833
    %v874 = vpack.c.bf16 %v836, %v835
    %v875 = vpack.c.bf16 %v838, %v837
    %v913 = vunpack.c.l.b16 %v839
    %v914 = vunpack.c.h.b16 %v839
    %v915 = vunpack.c.l.b16 %v840
    %v916 = vunpack.c.h.b16 %v840
    %v917 = vunpack.c.l.b16 %v841
    %v918 = vunpack.c.h.b16 %v841
    %v919 = vunpack.c.l.b16 %v842
    %v920 = vunpack.c.h.b16 %v842
    %v921 = vunpack.c.l.b16 %v843
    %v922 = vunpack.c.h.b16 %v843
    %v923 = vunpack.c.l.b16 %v844
    %v924 = vunpack.c.h.b16 %v844
    %v925 = vunpack.c.l.b16 %v845
    %v926 = vunpack.c.h.b16 %v845
    %v927 = vunpack.c.l.b16 %v846
    %v928 = vunpack.c.h.b16 %v846
    %v929 = vunpack.c.l.b16 %v847
    %v930 = vunpack.c.h.b16 %v847
    %v931 = vunpack.c.l.b16 %v848
    %v932 = vunpack.c.h.b16 %v848
    %v933 = vunpack.c.l.b16 %v849
    %v934 = vunpack.c.h.b16 %v849
    %v935 = vunpack.c.l.b16 %v850
    %v936 = vunpack.c.h.b16 %v850
    %v937 = vunpack.c.l.b16 %v851
    %v938 = vunpack.c.h.b16 %v851
    %v939 = vunpack.c.l.b16 %v852
    %v940 = vunpack.c.h.b16 %v852
    %v941 = vunpack.c.l.b16 %v853
    %v942 = vunpack.c.h.b16 %v853
    %v943 = vunpack.c.l.b16 %v854
    %v944 = vunpack.c.h.b16 %v854
    %v945 = vunpack.c.l.b16 %v855
    %v946 = vunpack.c.h.b16 %v855
    %v947 = vunpack.c.l.b16 %v856
    %v948 = vunpack.c.h.b16 %v856
    %v949 = vunpack.c.l.b16 %v857
    %v950 = vunpack.c.h.b16 %v857
    %v951 = vunpack.c.l.b16 %v858
    %v952 = vunpack.c.h.b16 %v858
    %v953 = vunpack.c.l.b16 %v859
    %v954 = vunpack.c.h.b16 %v859
    %v955 = vunpack.c.l.b16 %v860
    %v956 = vunpack.c.h.b16 %v860
    %v957 = vunpack.c.l.b16 %v861
    %v958 = vunpack.c.h.b16 %v861
    %v959 = vunpack.c.l.b16 %v862
    %v960 = vunpack.c.h.b16 %v862
    %v961 = vunpack.c.l.b16 %v863
    %v962 = vunpack.c.h.b16 %v863
    %v963 = vunpack.c.l.b16 %v864
    %v964 = vunpack.c.h.b16 %v864
    %v965 = vunpack.c.l.b16 %v865
    %v966 = vunpack.c.h.b16 %v865
    %v967 = vunpack.c.l.b16 %v866
    %v968 = vunpack.c.h.b16 %v866
    %v969 = vunpack.c.l.b16 %v867
    %v970 = vunpack.c.h.b16 %v867
    %v971 = vunpack.c.l.b16 %v868
    %v972 = vunpack.c.h.b16 %v868
    %v973 = vunpack.c.l.b16 %v869
    %v974 = vunpack.c.h.b16 %v869
    %v975 = vunpack.c.l.b16 %v870
    %v976 = vunpack.c.h.b16 %v870
    %v977 = vunpack.c.l.b16 %v871
    %v978 = vunpack.c.h.b16 %v871
    %v979 = vunpack.c.l.b16 %v872
    %v980 = vunpack.c.h.b16 %v872
    %v981 = vunpack.c.l.b16 %v873
    %v982 = vunpack.c.h.b16 %v873
    %v983 = vunpack.c.l.b16 %v874
    %v984 = vunpack.c.h.b16 %v874
    %v985 = vunpack.c.l.b16 %v875
    %v986 = vunpack.c.h.b16 %v875
    %v987 = vpack.c.b16 %v913, %v913
    %v988 = vpack.c.b16 %v914, %v914
    %v989 = vpack.c.b16 %v915, %v915
    %v990 = vpack.c.b16 %v916, %v916
    %v991 = vpack.c.b16 %v917, %v917
    %v992 = vpack.c.b16 %v918, %v918
    %v993 = vpack.c.b16 %v919, %v919
    %v994 = vpack.c.b16 %v920, %v920
    %v995 = vpack.c.b16 %v921, %v921
    %v996 = vpack.c.b16 %v922, %v922
    %v997 = vpack.c.b16 %v923, %v923
    %v998 = vpack.c.b16 %v924, %v924
    %v999 = vpack.c.b16 %v925, %v925
    %v1000 = vpack.c.b16 %v926, %v926
    %v1001 = vpack.c.b16 %v927, %v927
    %v1002 = vpack.c.b16 %v928, %v928
    %v1003 = vpack.c.b16 %v929, %v929
    %v1004 = vpack.c.b16 %v930, %v930
    %v1005 = vpack.c.b16 %v931, %v931
    %v1006 = vpack.c.b16 %v932, %v932
    %v1007 = vpack.c.b16 %v933, %v933
    %v1008 = vpack.c.b16 %v934, %v934
    %v1009 = vpack.c.b16 %v935, %v935
    %v1010 = vpack.c.b16 %v936, %v936
    %v1011 = vpack.c.b16 %v937, %v937
    %v1012 = vpack.c.b16 %v938, %v938
    %v1013 = vpack.c.b16 %v939, %v939
    %v1014 = vpack.c.b16 %v940, %v940
    %v1015 = vpack.c.b16 %v941, %v941
    %v1016 = vpack.c.b16 %v942, %v942
    %v1017 = vpack.c.b16 %v943, %v943
    %v1018 = vpack.c.b16 %v944, %v944
    %v1019 = vpack.c.b16 %v945, %v945
    %v1020 = vpack.c.b16 %v946, %v946
    %v1021 = vpack.c.b16 %v947, %v947
    %v1022 = vpack.c.b16 %v948, %v948
    %v1023 = vpack.c.b16 %v949, %v949
    %v1024 = vpack.c.b16 %v950, %v950
    %v1025 = vpack.c.b16 %v951, %v951
    %v1026 = vpack.c.b16 %v952, %v952
    %v1027 = vpack.c.b16 %v953, %v953
    %v1028 = vpack.c.b16 %v954, %v954
    %v1029 = vpack.c.b16 %v955, %v955
    %v1030 = vpack.c.b16 %v956, %v956
    %v1031 = vpack.c.b16 %v957, %v957
    %v1032 = vpack.c.b16 %v958, %v958
    %v1033 = vpack.c.b16 %v959, %v959
    %v1034 = vpack.c.b16 %v960, %v960
    %v1035 = vpack.c.b16 %v961, %v961
    %v1036 = vpack.c.b16 %v962, %v962
    %v1037 = vpack.c.b16 %v963, %v963
    %v1038 = vpack.c.b16 %v964, %v964
    %v1039 = vpack.c.b16 %v965, %v965
    %v1040 = vpack.c.b16 %v966, %v966
    %v1041 = vpack.c.b16 %v967, %v967
    %v1042 = vpack.c.b16 %v968, %v968
    %v1043 = vpack.c.b16 %v969, %v969
    %v1044 = vpack.c.b16 %v970, %v970
    %v1045 = vpack.c.b16 %v971, %v971
    %v1046 = vpack.c.b16 %v972, %v972
    %v1047 = vpack.c.b16 %v973, %v973
    %v1048 = vpack.c.b16 %v974, %v974
    %v1049 = vpack.c.b16 %v975, %v975
    %v1050 = vpack.c.b16 %v976, %v976
    %v1051 = vpack.c.b16 %v977, %v977
    %v1052 = vpack.c.b16 %v978, %v978
    %v1053 = vpack.c.b16 %v979, %v979
    %v1054 = vpack.c.b16 %v980, %v980
    %v1055 = vpack.c.b16 %v981, %v981
    %v1056 = vpack.c.b16 %v982, %v982
    %v1057 = vpack.c.b16 %v983, %v983
    %v1058 = vpack.c.b16 %v984, %v984
    %v1059 = vpack.c.b16 %v985, %v985
    %v1060 = vpack.c.b16 %v986, %v986
    %1135 = vst [vmem:[#allocation8] sm:$0xf] %v987
    %1136 = vst [vmem:[#allocation8 + $0x4] sm:$0xf] %v988
    %1137 = vst [vmem:[#allocation8 + $0x8] sm:$0xf] %v989
    %1138 = vst [vmem:[#allocation8 + $0xc] sm:$0xf] %v990
    %1139 = vst [vmem:[#allocation8 + $0x10] sm:$0xf] %v991
    %1140 = vst [vmem:[#allocation8 + $0x14] sm:$0xf] %v992
    %1141 = vst [vmem:[#allocation8 + $0x18] sm:$0xf] %v993
    %1142 = vst [vmem:[#allocation8 + $0x1c] sm:$0xf] %v994
    %1143 = vst [vmem:[#allocation8 + $0x20] sm:$0xf] %v995
    %1144 = vst [vmem:[#allocation8 + $0x24] sm:$0xf] %v996
    %1145 = vst [vmem:[#allocation8 + $0x28] sm:$0xf] %v997
    %1146 = vst [vmem:[#allocation8 + $0x2c] sm:$0xf] %v998
    %1147 = vst [vmem:[#allocation8 + $0x30] sm:$0xf] %v999
    %1148 = vst [vmem:[#allocation8 + $0x34] sm:$0xf] %v1000
    %1149 = vst [vmem:[#allocation8 + $0x38] sm:$0xf] %v1001
    %1150 = vst [vmem:[#allocation8 + $0x3c] sm:$0xf] %v1002
    %1151 = vst [vmem:[#allocation8 + $0x40] sm:$0xf] %v1003
    %1152 = vst [vmem:[#allocation8 + $0x44] sm:$0xf] %v1004
    %1153 = vst [vmem:[#allocation8 + $0x48] sm:$0xf] %v1005
    %1154 = vst [vmem:[#allocation8 + $0x4c] sm:$0xf] %v1006
    %1155 = vst [vmem:[#allocation8 + $0x50] sm:$0xf] %v1007
    %1156 = vst [vmem:[#allocation8 + $0x54] sm:$0xf] %v1008
    %1157 = vst [vmem:[#allocation8 + $0x58] sm:$0xf] %v1009
    %1158 = vst [vmem:[#allocation8 + $0x5c] sm:$0xf] %v1010
    %1159 = vst [vmem:[#allocation8 + $0x60] sm:$0xf] %v1011
    %1160 = vst [vmem:[#allocation8 + $0x64] sm:$0xf] %v1012
    %1161 = vst [vmem:[#allocation8 + $0x68] sm:$0xf] %v1013
    %1162 = vst [vmem:[#allocation8 + $0x6c] sm:$0xf] %v1014
    %1163 = vst [vmem:[#allocation8 + $0x70] sm:$0xf] %v1015
    %1164 = vst [vmem:[#allocation8 + $0x74] sm:$0xf] %v1016
    %1165 = vst [vmem:[#allocation8 + $0x78] sm:$0xf] %v1017
    %1166 = vst [vmem:[#allocation8 + $0x7c] sm:$0xf] %v1018
    %1167 = vst [vmem:[#allocation8 + $0x80] sm:$0xf] %v1019
    %1168 = vst [vmem:[#allocation8 + $0x84] sm:$0xf] %v1020
    %1169 = vst [vmem:[#allocation8 + $0x88] sm:$0xf] %v1021
    %1170 = vst [vmem:[#allocation8 + $0x8c] sm:$0xf] %v1022
    %1171 = vst [vmem:[#allocation8 + $0x90] sm:$0xf] %v1023
    %1172 = vst [vmem:[#allocation8 + $0x94] sm:$0xf] %v1024
    %1173 = vst [vmem:[#allocation8 + $0x98] sm:$0xf] %v1025
    %1174 = vst [vmem:[#allocation8 + $0x9c] sm:$0xf] %v1026
    %1175 = vst [vmem:[#allocation8 + $0xa0] sm:$0xf] %v1027
    %1176 = vst [vmem:[#allocation8 + $0xa4] sm:$0xf] %v1028
    %1177 = vst [vmem:[#allocation8 + $0xa8] sm:$0xf] %v1029
    %1178 = vst [vmem:[#allocation8 + $0xac] sm:$0xf] %v1030
    %1179 = vst [vmem:[#allocation8 + $0xb0] sm:$0xf] %v1031
    %1180 = vst [vmem:[#allocation8 + $0xb4] sm:$0xf] %v1032
    %1181 = vst [vmem:[#allocation8 + $0xb8] sm:$0xf] %v1033
    %1182 = vst [vmem:[#allocation8 + $0xbc] sm:$0xf] %v1034
    %1183 = vst [vmem:[#allocation8 + $0xc0] sm:$0xf] %v1035
    %1184 = vst [vmem:[#allocation8 + $0xc4] sm:$0xf] %v1036
    %1185 = vst [vmem:[#allocation8 + $0xc8] sm:$0xf] %v1037
    %1186 = vst [vmem:[#allocation8 + $0xcc] sm:$0xf] %v1038
    %1187 = vst [vmem:[#allocation8 + $0xd0] sm:$0xf] %v1039
    %1188 = vst [vmem:[#allocation8 + $0xd4] sm:$0xf] %v1040
    %1189 = vst [vmem:[#allocation8 + $0xd8] sm:$0xf] %v1041
    %1190 = vst [vmem:[#allocation8 + $0xdc] sm:$0xf] %v1042
    %1191 = vst [vmem:[#allocation8 + $0xe0] sm:$0xf] %v1043
    %1192 = vst [vmem:[#allocation8 + $0xe4] sm:$0xf] %v1044
    %1193 = vst [vmem:[#allocation8 + $0xe8] sm:$0xf] %v1045
    %1194 = vst [vmem:[#allocation8 + $0xec] sm:$0xf] %v1046
    %1195 = vst [vmem:[#allocation8 + $0xf0] sm:$0xf] %v1047
    %1196 = vst [vmem:[#allocation8 + $0xf4] sm:$0xf] %v1048
    %1197 = vst [vmem:[#allocation8 + $0xf8] sm:$0xf] %v1049
    %1198 = vst [vmem:[#allocation8 + $0xfc] sm:$0xf] %v1050
    %1199 = vst [vmem:[#allocation8 + $0x100] sm:$0xf] %v1051
    %1200 = vst [vmem:[#allocation8 + $0x104] sm:$0xf] %v1052
    %1201 = vst [vmem:[#allocation8 + $0x108] sm:$0xf] %v1053
    %1202 = vst [vmem:[#allocation8 + $0x10c] sm:$0xf] %v1054
    %1203 = vst [vmem:[#allocation8 + $0x110] sm:$0xf] %v1055
    %1204 = vst [vmem:[#allocation8 + $0x114] sm:$0xf] %v1056
    %1205 = vst [vmem:[#allocation8 + $0x118] sm:$0xf] %v1057
    %1206 = vst [vmem:[#allocation8 + $0x11c] sm:$0xf] %v1058
    %1207 = vst [vmem:[#allocation8 + $0x120] sm:$0xf] %v1059
    %1208 = vst [vmem:[#allocation8 + $0x124] sm:$0xf] %v1060
    // Predicated region
    $region26: #{inception_b_forward.5} parent=1 // pred_check
      _
    $region27: #{inception_b_forward.5} parent=1 // pred_check_branch
      %1210 = sbr.rel (0) target = $region29
    $region28: #{inception_b_forward.5} parent=1 // pred_region
      %s1212 = ssub.s32 4736, 4736
      %1213 = vsyncadd [#allocation4], %s1212
      %s1214 = sshll.u32 [#allocation8], 4
      %s1215 = int_to_ptr.vmem [resolvable:$true] %s1214
      %1220 = dma.vmem_to_hbm [thread:$0]  %s1215, 4736, %s3, [#allocation4], 64, 64, 4
    $region29: #{inception_b_forward.5} parent=1 // pred_fallthru
      _
    // Predicated region
    $region30: #{inception_b_forward.5} parent=1 // pred_check
      _
    $region31: #{inception_b_forward.5} parent=1 // pred_check_branch
      %1222 = sbr.rel (0) target = $region33
    $region32: #{inception_b_forward.5} parent=1 // pred_region
      %1223 = dma.done [#allocation4], 4736
    $region33: #{inception_b_forward.5} parent=1 // pred_fallthru
      _
    %1224 = vsyncpa [#allocation3], 1
    %1225 = vsyncpa [#allocation6], 1
    %1226 = vsyncpa [#allocation4], 1

// kernel: inception_b_forward.6
$region0: #{inception_b_forward.6}
  #allocation0 [shape = 'u32[]', space=smem, size = 0x4, offset = 0x4, fixed_abs, tag = 'smem constant byte address 0x4 - core index']
  #allocation1 [shape = 'u32[144,128]{1,0:T(1,128)}', space=vmem, size = 0x12000, scoped, tag = 'internal scratch']
  %s0 = inlined_call_operand.hbm [shape: bf16[592,576], index: 0, kind: input, shape index: {}]
  %s1 = inlined_call_operand.hbm [shape: bf16[576,128], index: 1, kind: input, shape index: {}]
  %s2 = inlined_call_operand.hbm [shape: f32[1,128], index: 2, kind: input, shape index: {}]
  %s3 = inlined_call_operand.hbm [shape: bf16[592,128], index: 3, kind: output, shape index: {}]
  %s4 = sld [smem:[#allocation0]]
  $region34: #{inception_b_forward.6} parent=0
    _
  %s6 = ssub.s32 1, %s4
  %s7 = scalar_select 0, %s6, %s4
  $region1: #{inception_b_forward.6} parent=0
    #allocation2 [shape = 'u8[757760]{0}', space=vmem, size = 0xb9000, scoped, tag = 'input window, operand 0, single buffered']
    #allocation3 [shape = 's32[1]{0}', space=sflag, size = 0x4, scoped, tag = 'scoped memory for inception_b_forward.6']
    #allocation4 [shape = 's32[1]{0}', space=sflag, size = 0x4, scoped, tag = 'scoped memory for inception_b_forward.6']
    #allocation5 [shape = 'u8[147456]{0}', space=vmem, size = 0x24000, scoped, tag = 'input window, operand 1, single buffered']
    #allocation6 [shape = 's32[1]{0}', space=sflag, size = 0x4, scoped, tag = 'scoped memory for inception_b_forward.6']
    #allocation7 [shape = 'u8[512]{0}', space=vmem, size = 0x400, scoped, tag = 'input window, operand 2, single buffered']
    #allocation8 [shape = 'u8[151552]{0}', space=vmem, size = 0x25000, scoped, tag = 'output window, operand 0, single buffered']
    %8 = vsyncpa [#allocation3], 0
    %9 = vsyncpa [#allocation6], 0
    %10 = vsyncpa [#allocation4], 0
    // Predicated region
    $region2: #{inception_b_forward.6} parent=1 // pred_check
      _
    $region3: #{inception_b_forward.6} parent=1 // pred_check_branch
      %12 = sbr.rel (0) target = $region5
    $region4: #{inception_b_forward.6} parent=1 // pred_region
      %s14 = ssub.s32 23680, 23680
      %15 = vsyncadd [#allocation3], %s14
      %s16 = sshll.u32 [#allocation2], 4
      %s17 = int_to_ptr.vmem [resolvable:$true] %s16
      %22 = dma.hbm_to_vmem [thread:$0]  %s0, 23680, %s17, [#allocation3], 320, 320, 20
    $region5: #{inception_b_forward.6} parent=1 // pred_fallthru
      _
    // Predicated region
    $region6: #{inception_b_forward.6} parent=1 // pred_check
      _
    $region7: #{inception_b_forward.6} parent=1 // pred_check_branch
      %24 = sbr.rel (0) target = $region9
    $region8: #{inception_b_forward.6} parent=1 // pred_region
      %s26 = ssub.s32 4608, 4608
      %27 = vsyncadd [#allocation6], %s26
      %s28 = sshll.u32 [#allocation5], 4
      %s29 = int_to_ptr.vmem [resolvable:$true] %s28
      %34 = dma.hbm_to_vmem [thread:$0]  %s1, 4608, %s29, [#allocation6], 64, 64, 4
    $region9: #{inception_b_forward.6} parent=1 // pred_fallthru
      _
    // Predicated region
    $region10: #{inception_b_forward.6} parent=1 // pred_check
      _
    $region11: #{inception_b_forward.6} parent=1 // pred_check_branch
      %36 = sbr.rel (0) target = $region13
    $region12: #{inception_b_forward.6} parent=1 // pred_region
      %s38 = ssub.s32 16, 16
      %39 = vsyncadd [#allocation6], %s38
      %s41 = sshll.u32 [#allocation7], 4
      %s42 = int_to_ptr.vmem [resolvable:$true] %s41
      %44 = dma.hbm_to_vmem [thread:$0]  %s2, 16, %s42, [#allocation6]
    $region13: #{inception_b_forward.6} parent=1 // pred_fallthru
      _
    // Predicated region
    $region14: #{inception_b_forward.6} parent=1 // pred_check
      _
    $region15: #{inception_b_forward.6} parent=1 // pred_check_branch
      %46 = sbr.rel (0) target = $region17
    $region16: #{inception_b_forward.6} parent=1 // pred_region
      %47 = dma.done [#allocation3], 23680
    $region17: #{inception_b_forward.6} parent=1 // pred_fallthru
      _
    // Predicated region
    $region18: #{inception_b_forward.6} parent=1 // pred_check
      _
    $region19: #{inception_b_forward.6} parent=1 // pred_check_branch
      %49 = sbr.rel (0) target = $region21
    $region20: #{inception_b_forward.6} parent=1 // pred_region
      %50 = dma.done [#allocation6], 4608
    $region21: #{inception_b_forward.6} parent=1 // pred_fallthru
      _
    // Predicated region
    $region22: #{inception_b_forward.6} parent=1 // pred_check
      _
    $region23: #{inception_b_forward.6} parent=1 // pred_check_branch
      %52 = sbr.rel (0) target = $region25
    $region24: #{inception_b_forward.6} parent=1 // pred_region
      %53 = dma.done [#allocation6], 16
    $region25: #{inception_b_forward.6} parent=1 // pred_fallthru
      _
    %v55 = vld [vmem:[#allocation2] sm:$0xff]
    %v56 = vld [vmem:[#allocation2 + $0x8] sm:$0xff]
    %v57 = vld [vmem:[#allocation2 + $0x10] sm:$0xf]
    %v58 = vld [vmem:[#allocation2 + $0x14] sm:$0xff]
    %v59 = vld [vmem:[#allocation2 + $0x1c] sm:$0xff]
    %v60 = vld [vmem:[#allocation2 + $0x24] sm:$0xf]
    %v61 = vld [vmem:[#allocation2 + $0x28] sm:$0xff]
    %v62 = vld [vmem:[#allocation2 + $0x30] sm:$0xff]
    %v63 = vld [vmem:[#allocation2 + $0x38] sm:$0xf]
    %v64 = vld [vmem:[#allocation2 + $0x3c] sm:$0xff]
    %v65 = vld [vmem:[#allocation2 + $0x44] sm:$0xff]
    %v66 = vld [vmem:[#allocation2 + $0x4c] sm:$0xf]
    %v67 = vld [vmem:[#allocation2 + $0x50] sm:$0xff]
    %v68 = vld [vmem:[#allocation2 + $0x58] sm:$0xff]
    %v69 = vld [vmem:[#allocation2 + $0x60] sm:$0xf]
    %v70 = vld [vmem:[#allocation2 + $0x64] sm:$0xff]
    %v71 = vld [vmem:[#allocation2 + $0x6c] sm:$0xff]
    %v72 = vld [vmem:[#allocation2 + $0x74] sm:$0xf]
    %v73 = vld [vmem:[#allocation2 + $0x78] sm:$0xff]
    %v74 = vld [vmem:[#allocation2 + $0x80] sm:$0xff]
    %v75 = vld [vmem:[#allocation2 + $0x88] sm:$0xf]
    %v76 = vld [vmem:[#allocation2 + $0x8c] sm:$0xff]
    %v77 = vld [vmem:[#allocation2 + $0x94] sm:$0xff]
    %v78 = vld [vmem:[#allocation2 + $0x9c] sm:$0xf]
    %v79 = vld [vmem:[#allocation2 + $0xa0] sm:$0xff]
    %v80 = vld [vmem:[#allocation2 + $0xa8] sm:$0xff]
    %v81 = vld [vmem:[#allocation2 + $0xb0] sm:$0xf]
    %v82 = vld [vmem:[#allocation2 + $0xb4] sm:$0xff]
    %v83 = vld [vmem:[#allocation2 + $0xbc] sm:$0xff]
    %v84 = vld [vmem:[#allocation2 + $0xc4] sm:$0xf]
    %v85 = vld [vmem:[#allocation2 + $0xc8] sm:$0xff]
    %v86 = vld [vmem:[#allocation2 + $0xd0] sm:$0xff]
    %v87 = vld [vmem:[#allocation2 + $0xd8] sm:$0xf]
    %v88 = vld [vmem:[#allocation2 + $0xdc] sm:$0xff]
    %v89 = vld [vmem:[#allocation2 + $0xe4] sm:$0xff]
    %v90 = vld [vmem:[#allocation2 + $0xec] sm:$0xf]
    %v91 = vld [vmem:[#allocation2 + $0xf0] sm:$0xff]
    %v92 = vld [vmem:[#allocation2 + $0xf8] sm:$0xff]
    %v93 = vld [vmem:[#allocation2 + $0x100] sm:$0xf]
    %v94 = vld [vmem:[#allocation2 + $0x104] sm:$0xff]
    %v95 = vld [vmem:[#allocation2 + $0x10c] sm:$0xff]
    %v96 = vld [vmem:[#allocation2 + $0x114] sm:$0xf]
    %v97 = vld [vmem:[#allocation2 + $0x118] sm:$0xff]
    %v98 = vld [vmem:[#allocation2 + $0x120] sm:$0xff]
    %v99 = vld [vmem:[#allocation2 + $0x128] sm:$0xf]
    %v100 = vld [vmem:[#allocation2 + $0x12c] sm:$0xff]
    %v101 = vld [vmem:[#allocation2 + $0x134] sm:$0xff]
    %v102 = vld [vmem:[#allocation2 + $0x13c] sm:$0xf]
    %v103 = vld [vmem:[#allocation2 + $0x140] sm:$0xff]
    %v104 = vld [vmem:[#allocation2 + $0x148] sm:$0xff]
    %v105 = vld [vmem:[#allocation2 + $0x150] sm:$0xf]
    %v106 = vld [vmem:[#allocation2 + $0x154] sm:$0xff]
    %v107 = vld [vmem:[#allocation2 + $0x15c] sm:$0xff]
    %v108 = vld [vmem:[#allocation2 + $0x164] sm:$0xf]
    %v109 = vld [vmem:[#allocation2 + $0x168] sm:$0xff]
    %v110 = vld [vmem:[#allocation2 + $0x170] sm:$0xff]
    %v111 = vld [vmem:[#allocation2 + $0x178] sm:$0xf]
    %v112 = vld [vmem:[#allocation2 + $0x17c] sm:$0xff]
    %v113 = vld [vmem:[#allocation2 + $0x184] sm:$0xff]
    %v114 = vld [vmem:[#allocation2 + $0x18c] sm:$0xf]
    %v115 = vld [vmem:[#allocation2 + $0x190] sm:$0xff]
    %v116 = vld [vmem:[#allocation2 + $0x198] sm:$0xff]
    %v117 = vld [vmem:[#allocation2 + $0x1a0] sm:$0xf]
    %v118 = vld [vmem:[#allocation2 + $0x1a4] sm:$0xff]
    %v119 = vld [vmem:[#allocation2 + $0x1ac] sm:$0xff]
    %v120 = vld [vmem:[#allocation2 + $0x1b4] sm:$0xf]
    %v121 = vld [vmem:[#allocation2 + $0x1b8] sm:$0xff]
    %v122 = vld [vmem:[#allocation2 + $0x1c0] sm:$0xff]
    %v123 = vld [vmem:[#allocation2 + $0x1c8] sm:$0xf]
    %v124 = vld [vmem:[#allocation2 + $0x1cc] sm:$0xff]
    %v125 = vld [vmem:[#allocation2 + $0x1d4] sm:$0xff]
    %v126 = vld [vmem:[#allocation2 + $0x1dc] sm:$0xf]
    %v127 = vld [vmem:[#allocation2 + $0x1e0] sm:$0xff]
    %v128 = vld [vmem:[#allocation2 + $0x1e8] sm:$0xff]
    %v129 = vld [vmem:[#allocation2 + $0x1f0] sm:$0xf]
    %v130 = vld [vmem:[#allocation2 + $0x1f4] sm:$0xff]
    %v131 = vld [vmem:[#allocation2 + $0x1fc] sm:$0xff]
    %v132 = vld [vmem:[#allocation2 + $0x204] sm:$0xf]
    %v133 = vld [vmem:[#allocation2 + $0x208] sm:$0xff]
    %v134 = vld [vmem:[#allocation2 + $0x210] sm:$0xff]
    %v135 = vld [vmem:[#allocation2 + $0x218] sm:$0xf]
    %v136 = vld [vmem:[#allocation2 + $0x21c] sm:$0xff]
    %v137 = vld [vmem:[#allocation2 + $0x224] sm:$0xff]
    %v138 = vld [vmem:[#allocation2 + $0x22c] sm:$0xf]
    %v139 = vld [vmem:[#allocation2 + $0x230] sm:$0xff]
    %v140 = vld [vmem:[#allocation2 + $0x238] sm:$0xff]
    %v141 = vld [vmem:[#allocation2 + $0x240] sm:$0xf]
    %v142 = vld [vmem:[#allocation2 + $0x244] sm:$0xff]
    %v143 = vld [vmem:[#allocation2 + $0x24c] sm:$0xff]
    %v144 = vld [vmem:[#allocation2 + $0x254] sm:$0xf]
    %v145 = vld [vmem:[#allocation2 + $0x258] sm:$0xff]
    %v146 = vld [vmem:[#allocation2 + $0x260] sm:$0xff]
    %v147 = vld [vmem:[#allocation2 + $0x268] sm:$0xf]
    %v148 = vld [vmem:[#allocation2 + $0x26c] sm:$0xff]
    %v149 = vld [vmem:[#allocation2 + $0x274] sm:$0xff]
    %v150 = vld [vmem:[#allocation2 + $0x27c] sm:$0xf]
    %v151 = vld [vmem:[#allocation2 + $0x280] sm:$0xff]
    %v152 = vld [vmem:[#allocation2 + $0x288] sm:$0xff]
    %v153 = vld [vmem:[#allocation2 + $0x290] sm:$0xf]
    %v154 = vld [vmem:[#allocation2 + $0x294] sm:$0xff]
    %v155 = vld [vmem:[#allocation2 + $0x29c] sm:$0xff]
    %v156 = vld [vmem:[#allocation2 + $0x2a4] sm:$0xf]
    %v157 = vld [vmem:[#allocation2 + $0x2a8] sm:$0xff]
    %v158 = vld [vmem:[#allocation2 + $0x2b0] sm:$0xff]
    %v159 = vld [vmem:[#allocation2 + $0x2b8] sm:$0xf]
    %v160 = vld [vmem:[#allocation2 + $0x2bc] sm:$0xff]
    %v161 = vld [vmem:[#allocation2 + $0x2c4] sm:$0xff]
    %v162 = vld [vmem:[#allocation2 + $0x2cc] sm:$0xf]
    %v163 = vld [vmem:[#allocation2 + $0x2d0] sm:$0xff]
    %v164 = vld [vmem:[#allocation2 + $0x2d8] sm:$0xff]
    %v165 = vld [vmem:[#allocation2 + $0x2e0] sm:$0xf]
    %v166 = vld [vmem:[#allocation2 + $0x2e4] sm:$0xff]
    %v167 = vld [vmem:[#allocation2 + $0x2ec] sm:$0xff]
    %v168 = vld [vmem:[#allocation2 + $0x2f4] sm:$0xf]
    %v169 = vld [vmem:[#allocation2 + $0x2f8] sm:$0xff]
    %v170 = vld [vmem:[#allocation2 + $0x300] sm:$0xff]
    %v171 = vld [vmem:[#allocation2 + $0x308] sm:$0xf]
    %v172 = vld [vmem:[#allocation2 + $0x30c] sm:$0xff]
    %v173 = vld [vmem:[#allocation2 + $0x314] sm:$0xff]
    %v174 = vld [vmem:[#allocation2 + $0x31c] sm:$0xf]
    %v175 = vld [vmem:[#allocation2 + $0x320] sm:$0xff]
    %v176 = vld [vmem:[#allocation2 + $0x328] sm:$0xff]
    %v177 = vld [vmem:[#allocation2 + $0x330] sm:$0xf]
    %v178 = vld [vmem:[#allocation2 + $0x334] sm:$0xff]
    %v179 = vld [vmem:[#allocation2 + $0x33c] sm:$0xff]
    %v180 = vld [vmem:[#allocation2 + $0x344] sm:$0xf]
    %v181 = vld [vmem:[#allocation2 + $0x348] sm:$0xff]
    %v182 = vld [vmem:[#allocation2 + $0x350] sm:$0xff]
    %v183 = vld [vmem:[#allocation2 + $0x358] sm:$0xf]
    %v184 = vld [vmem:[#allocation2 + $0x35c] sm:$0xff]
    %v185 = vld [vmem:[#allocation2 + $0x364] sm:$0xff]
    %v186 = vld [vmem:[#allocation2 + $0x36c] sm:$0xf]
    %v187 = vld [vmem:[#allocation2 + $0x370] sm:$0xff]
    %v188 = vld [vmem:[#allocation2 + $0x378] sm:$0xff]
    %v189 = vld [vmem:[#allocation2 + $0x380] sm:$0xf]
    %v190 = vld [vmem:[#allocation2 + $0x384] sm:$0xff]
    %v191 = vld [vmem:[#allocation2 + $0x38c] sm:$0xff]
    %v192 = vld [vmem:[#allocation2 + $0x394] sm:$0xf]
    %v193 = vld [vmem:[#allocation2 + $0x398] sm:$0xff]
    %v194 = vld [vmem:[#allocation2 + $0x3a0] sm:$0xff]
    %v195 = vld [vmem:[#allocation2 + $0x3a8] sm:$0xf]
    %v196 = vld [vmem:[#allocation2 + $0x3ac] sm:$0xff]
    %v197 = vld [vmem:[#allocation2 + $0x3b4] sm:$0xff]
    %v198 = vld [vmem:[#allocation2 + $0x3bc] sm:$0xf]
    %v199 = vld [vmem:[#allocation2 + $0x3c0] sm:$0xff]
    %v200 = vld [vmem:[#allocation2 + $0x3c8] sm:$0xff]
    %v201 = vld [vmem:[#allocation2 + $0x3d0] sm:$0xf]
    %v202 = vld [vmem:[#allocation2 + $0x3d4] sm:$0xff]
    %v203 = vld [vmem:[#allocation2 + $0x3dc] sm:$0xff]
    %v204 = vld [vmem:[#allocation2 + $0x3e4] sm:$0xf]
    %v205 = vld [vmem:[#allocation2 + $0x3e8] sm:$0xff]
    %v206 = vld [vmem:[#allocation2 + $0x3f0] sm:$0xff]
    %v207 = vld [vmem:[#allocation2 + $0x3f8] sm:$0xf]
    %v208 = vld [vmem:[#allocation2 + $0x3fc] sm:$0xff]
    %v209 = vld [vmem:[#allocation2 + $0x404] sm:$0xff]
    %v210 = vld [vmem:[#allocation2 + $0x40c] sm:$0xf]
    %v211 = vld [vmem:[#allocation2 + $0x410] sm:$0xff]
    %v212 = vld [vmem:[#allocation2 + $0x418] sm:$0xff]
    %v213 = vld [vmem:[#allocation2 + $0x420] sm:$0xf]
    %v214 = vld [vmem:[#allocation2 + $0x424] sm:$0xff]
    %v215 = vld [vmem:[#allocation2 + $0x42c] sm:$0xff]
    %v216 = vld [vmem:[#allocation2 + $0x434] sm:$0xf]
    %v217 = vld [vmem:[#allocation2 + $0x438] sm:$0xff]
    %v218 = vld [vmem:[#allocation2 + $0x440] sm:$0xff]
    %v219 = vld [vmem:[#allocation2 + $0x448] sm:$0xf]
    %v220 = vld [vmem:[#allocation2 + $0x44c] sm:$0xff]
    %v221 = vld [vmem:[#allocation2 + $0x454] sm:$0xff]
    %v222 = vld [vmem:[#allocation2 + $0x45c] sm:$0xf]
    %v223 = vld [vmem:[#allocation2 + $0x460] sm:$0xff]
    %v224 = vld [vmem:[#allocation2 + $0x468] sm:$0xff]
    %v225 = vld [vmem:[#allocation2 + $0x470] sm:$0xf]
    %v226 = vld [vmem:[#allocation2 + $0x474] sm:$0xff]
    %v227 = vld [vmem:[#allocation2 + $0x47c] sm:$0xff]
    %v228 = vld [vmem:[#allocation2 + $0x484] sm:$0xf]
    %v229 = vld [vmem:[#allocation2 + $0x488] sm:$0xff]
    %v230 = vld [vmem:[#allocation2 + $0x490] sm:$0xff]
    %v231 = vld [vmem:[#allocation2 + $0x498] sm:$0xf]
    %v232 = vld [vmem:[#allocation2 + $0x49c] sm:$0xff]
    %v233 = vld [vmem:[#allocation2 + $0x4a4] sm:$0xff]
    %v234 = vld [vmem:[#allocation2 + $0x4ac] sm:$0xf]
    %v235 = vld [vmem:[#allocation2 + $0x4b0] sm:$0xff]
    %v236 = vld [vmem:[#allocation2 + $0x4b8] sm:$0xff]
    %v237 = vld [vmem:[#allocation2 + $0x4c0] sm:$0xf]
    %v238 = vld [vmem:[#allocation2 + $0x4c4] sm:$0xff]
    %v239 = vld [vmem:[#allocation2 + $0x4cc] sm:$0xff]
    %v240 = vld [vmem:[#allocation2 + $0x4d4] sm:$0xf]
    %v241 = vld [vmem:[#allocation2 + $0x4d8] sm:$0xff]
    %v242 = vld [vmem:[#allocation2 + $0x4e0] sm:$0xff]
    %v243 = vld [vmem:[#allocation2 + $0x4e8] sm:$0xf]
    %v244 = vld [vmem:[#allocation2 + $0x4ec] sm:$0xff]
    %v245 = vld [vmem:[#allocation2 + $0x4f4] sm:$0xff]
    %v246 = vld [vmem:[#allocation2 + $0x4fc] sm:$0xf]
    %v247 = vld [vmem:[#allocation2 + $0x500] sm:$0xff]
    %v248 = vld [vmem:[#allocation2 + $0x508] sm:$0xff]
    %v249 = vld [vmem:[#allocation2 + $0x510] sm:$0xf]
    %v250 = vld [vmem:[#allocation2 + $0x514] sm:$0xff]
    %v251 = vld [vmem:[#allocation2 + $0x51c] sm:$0xff]
    %v252 = vld [vmem:[#allocation2 + $0x524] sm:$0xf]
    %v253 = vld [vmem:[#allocation2 + $0x528] sm:$0xff]
    %v254 = vld [vmem:[#allocation2 + $0x530] sm:$0xff]
    %v255 = vld [vmem:[#allocation2 + $0x538] sm:$0xf]
    %v256 = vld [vmem:[#allocation2 + $0x53c] sm:$0xff]
    %v257 = vld [vmem:[#allocation2 + $0x544] sm:$0xff]
    %v258 = vld [vmem:[#allocation2 + $0x54c] sm:$0xf]
    %v259 = vld [vmem:[#allocation2 + $0x550] sm:$0xff]
    %v260 = vld [vmem:[#allocation2 + $0x558] sm:$0xff]
    %v261 = vld [vmem:[#allocation2 + $0x560] sm:$0xf]
    %v262 = vld [vmem:[#allocation2 + $0x564] sm:$0xff]
    %v263 = vld [vmem:[#allocation2 + $0x56c] sm:$0xff]
    %v264 = vld [vmem:[#allocation2 + $0x574] sm:$0xf]
    %v265 = vld [vmem:[#allocation2 + $0x578] sm:$0xff]
    %v266 = vld [vmem:[#allocation2 + $0x580] sm:$0xff]
    %v267 = vld [vmem:[#allocation2 + $0x588] sm:$0xf]
    %v268 = vld [vmem:[#allocation2 + $0x58c] sm:$0xff]
    %v269 = vld [vmem:[#allocation2 + $0x594] sm:$0xff]
    %v270 = vld [vmem:[#allocation2 + $0x59c] sm:$0xf]
    %v271 = vld [vmem:[#allocation2 + $0x5a0] sm:$0xff]
    %v272 = vld [vmem:[#allocation2 + $0x5a8] sm:$0xff]
    %v273 = vld [vmem:[#allocation2 + $0x5b0] sm:$0xf]
    %v274 = vld [vmem:[#allocation2 + $0x5b4] sm:$0xff]
    %v275 = vld [vmem:[#allocation2 + $0x5bc] sm:$0xff]
    %v276 = vld [vmem:[#allocation2 + $0x5c4] sm:$0xf]
    %v277 = vld [vmem:[#allocation5] sm:$0xf]
    %v278 = vld [vmem:[#allocation5 + $0x4] sm:$0xf]
    %v279 = vld [vmem:[#allocation5 + $0x8] sm:$0xf]
    %v280 = vld [vmem:[#allocation5 + $0xc] sm:$0xf]
    %v281 = vld [vmem:[#allocation5 + $0x10] sm:$0xf]
    %v282 = vld [vmem:[#allocation5 + $0x14] sm:$0xf]
    %v283 = vld [vmem:[#allocation5 + $0x18] sm:$0xf]
    %v284 = vld [vmem:[#allocation5 + $0x1c] sm:$0xf]
    %v285 = vld [vmem:[#allocation5 + $0x20] sm:$0xf]
    %v286 = vld [vmem:[#allocation5 + $0x24] sm:$0xf]
    %v287 = vld [vmem:[#allocation5 + $0x28] sm:$0xf]
    %v288 = vld [vmem:[#allocation5 + $0x2c] sm:$0xf]
    %v289 = vld [vmem:[#allocation5 + $0x30] sm:$0xf]
    %v290 = vld [vmem:[#allocation5 + $0x34] sm:$0xf]
    %v291 = vld [vmem:[#allocation5 + $0x38] sm:$0xf]
    %v292 = vld [vmem:[#allocation5 + $0x3c] sm:$0xf]
    %v293 = vld [vmem:[#allocation5 + $0x40] sm:$0xf]
    %v294 = vld [vmem:[#allocation5 + $0x44] sm:$0xf]
    %v295 = vld [vmem:[#allocation5 + $0x48] sm:$0xf]
    %v296 = vld [vmem:[#allocation5 + $0x4c] sm:$0xf]
    %v297 = vld [vmem:[#allocation5 + $0x50] sm:$0xf]
    %v298 = vld [vmem:[#allocation5 + $0x54] sm:$0xf]
    %v299 = vld [vmem:[#allocation5 + $0x58] sm:$0xf]
    %v300 = vld [vmem:[#allocation5 + $0x5c] sm:$0xf]
    %v301 = vld [vmem:[#allocation5 + $0x60] sm:$0xf]
    %v302 = vld [vmem:[#allocation5 + $0x64] sm:$0xf]
    %v303 = vld [vmem:[#allocation5 + $0x68] sm:$0xf]
    %v304 = vld [vmem:[#allocation5 + $0x6c] sm:$0xf]
    %v305 = vld [vmem:[#allocation5 + $0x70] sm:$0xf]
    %v306 = vld [vmem:[#allocation5 + $0x74] sm:$0xf]
    %v307 = vld [vmem:[#allocation5 + $0x78] sm:$0xf]
    %v308 = vld [vmem:[#allocation5 + $0x7c] sm:$0xf]
    %v309 = vld [vmem:[#allocation5 + $0x80] sm:$0xf]
    %v310 = vld [vmem:[#allocation5 + $0x84] sm:$0xf]
    %v311 = vld [vmem:[#allocation5 + $0x88] sm:$0xf]
    %v312 = vld [vmem:[#allocation5 + $0x8c] sm:$0xf]
    %v313 = vld [vmem:[#allocation5 + $0x90] sm:$0xf]
    %v314 = vld [vmem:[#allocation5 + $0x94] sm:$0xf]
    %v315 = vld [vmem:[#allocation5 + $0x98] sm:$0xf]
    %v316 = vld [vmem:[#allocation5 + $0x9c] sm:$0xf]
    %v317 = vld [vmem:[#allocation5 + $0xa0] sm:$0xf]
    %v318 = vld [vmem:[#allocation5 + $0xa4] sm:$0xf]
    %v319 = vld [vmem:[#allocation5 + $0xa8] sm:$0xf]
    %v320 = vld [vmem:[#allocation5 + $0xac] sm:$0xf]
    %v321 = vld [vmem:[#allocation5 + $0xb0] sm:$0xf]
    %v322 = vld [vmem:[#allocation5 + $0xb4] sm:$0xf]
    %v323 = vld [vmem:[#allocation5 + $0xb8] sm:$0xf]
    %v324 = vld [vmem:[#allocation5 + $0xbc] sm:$0xf]
    %v325 = vld [vmem:[#allocation5 + $0xc0] sm:$0xf]
    %v326 = vld [vmem:[#allocation5 + $0xc4] sm:$0xf]
    %v327 = vld [vmem:[#allocation5 + $0xc8] sm:$0xf]
    %v328 = vld [vmem:[#allocation5 + $0xcc] sm:$0xf]
    %v329 = vld [vmem:[#allocation5 + $0xd0] sm:$0xf]
    %v330 = vld [vmem:[#allocation5 + $0xd4] sm:$0xf]
    %v331 = vld [vmem:[#allocation5 + $0xd8] sm:$0xf]
    %v332 = vld [vmem:[#allocation5 + $0xdc] sm:$0xf]
    %v333 = vld [vmem:[#allocation5 + $0xe0] sm:$0xf]
    %v334 = vld [vmem:[#allocation5 + $0xe4] sm:$0xf]
    %v335 = vld [vmem:[#allocation5 + $0xe8] sm:$0xf]
    %v336 = vld [vmem:[#allocation5 + $0xec] sm:$0xf]
    %v337 = vld [vmem:[#allocation5 + $0xf0] sm:$0xf]
    %v338 = vld [vmem:[#allocation5 + $0xf4] sm:$0xf]
    %v339 = vld [vmem:[#allocation5 + $0xf8] sm:$0xf]
    %v340 = vld [vmem:[#allocation5 + $0xfc] sm:$0xf]
    %v341 = vld [vmem:[#allocation5 + $0x100] sm:$0xf]
    %v342 = vld [vmem:[#allocation5 + $0x104] sm:$0xf]
    %v343 = vld [vmem:[#allocation5 + $0x108] sm:$0xf]
    %v344 = vld [vmem:[#allocation5 + $0x10c] sm:$0xf]
    %v345 = vld [vmem:[#allocation5 + $0x110] sm:$0xf]
    %v346 = vld [vmem:[#allocation5 + $0x114] sm:$0xf]
    %v347 = vld [vmem:[#allocation5 + $0x118] sm:$0xf]
    %v348 = vld [vmem:[#allocation5 + $0x11c] sm:$0xf]
    %v349 = vld [vmem:[#allocation7] sm:$0x1]
    %v351 = vlaneseq
    %v352 = vshrl.u32 %v351, 7
    %v353 = vsub.s32 0, %v352
    %v354 = vrot.slane %v349, %v353
    %v578 = vunpack.c.l.b16 %v55
    %v579 = vunpack.c.h.b16 %v55
    %v580 = vunpack.c.l.b16 %v56
    %v581 = vunpack.c.h.b16 %v56
    %v582 = vunpack.c.l.b16 %v57
    %v583 = vunpack.c.l.b16 %v58
    %v584 = vunpack.c.h.b16 %v58
    %v585 = vunpack.c.l.b16 %v59
    %v586 = vunpack.c.h.b16 %v59
    %v587 = vunpack.c.l.b16 %v60
    %v588 = vunpack.c.l.b16 %v61
    %v589 = vunpack.c.h.b16 %v61
    %v590 = vunpack.c.l.b16 %v62
    %v591 = vunpack.c.h.b16 %v62
    %v592 = vunpack.c.l.b16 %v63
    %v593 = vunpack.c.l.b16 %v64
    %v594 = vunpack.c.h.b16 %v64
    %v595 = vunpack.c.l.b16 %v65
    %v596 = vunpack.c.h.b16 %v65
    %v597 = vunpack.c.l.b16 %v66
    %v598 = vunpack.c.l.b16 %v67
    %v599 = vunpack.c.h.b16 %v67
    %v600 = vunpack.c.l.b16 %v68
    %v601 = vunpack.c.h.b16 %v68
    %v602 = vunpack.c.l.b16 %v69
    %v603 = vunpack.c.l.b16 %v70
    %v604 = vunpack.c.h.b16 %v70
    %v605 = vunpack.c.l.b16 %v71
    %v606 = vunpack.c.h.b16 %v71
    %v607 = vunpack.c.l.b16 %v72
    %v608 = vunpack.c.l.b16 %v73
    %v609 = vunpack.c.h.b16 %v73
    %v610 = vunpack.c.l.b16 %v74
    %v611 = vunpack.c.h.b16 %v74
    %v612 = vunpack.c.l.b16 %v75
    %v613 = vunpack.c.l.b16 %v76
    %v614 = vunpack.c.h.b16 %v76
    %v615 = vunpack.c.l.b16 %v77
    %v616 = vunpack.c.h.b16 %v77
    %v617 = vunpack.c.l.b16 %v78
    %v618 = vunpack.c.l.b16 %v79
    %v619 = vunpack.c.h.b16 %v79
    %v620 = vunpack.c.l.b16 %v80
    %v621 = vunpack.c.h.b16 %v80
    %v622 = vunpack.c.l.b16 %v81
    %v623 = vunpack.c.l.b16 %v82
    %v624 = vunpack.c.h.b16 %v82
    %v625 = vunpack.c.l.b16 %v83
    %v626 = vunpack.c.h.b16 %v83
    %v627 = vunpack.c.l.b16 %v84
    %v628 = vunpack.c.l.b16 %v85
    %v629 = vunpack.c.h.b16 %v85
    %v630 = vunpack.c.l.b16 %v86
    %v631 = vunpack.c.h.b16 %v86
    %v632 = vunpack.c.l.b16 %v87
    %v633 = vunpack.c.l.b16 %v88
    %v634 = vunpack.c.h.b16 %v88
    %v635 = vunpack.c.l.b16 %v89
    %v636 = vunpack.c.h.b16 %v89
    %v637 = vunpack.c.l.b16 %v90
    %v638 = vunpack.c.l.b16 %v91
    %v639 = vunpack.c.h.b16 %v91
    %v640 = vunpack.c.l.b16 %v92
    %v641 = vunpack.c.h.b16 %v92
    %v642 = vunpack.c.l.b16 %v93
    %v643 = vunpack.c.l.b16 %v94
    %v644 = vunpack.c.h.b16 %v94
    %v645 = vunpack.c.l.b16 %v95
    %v646 = vunpack.c.h.b16 %v95
    %v647 = vunpack.c.l.b16 %v96
    %v648 = vunpack.c.l.b16 %v97
    %v649 = vunpack.c.h.b16 %v97
    %v650 = vunpack.c.l.b16 %v98
    %v651 = vunpack.c.h.b16 %v98
    %v652 = vunpack.c.l.b16 %v99
    %v653 = vunpack.c.l.b16 %v100
    %v654 = vunpack.c.h.b16 %v100
    %v655 = vunpack.c.l.b16 %v101
    %v656 = vunpack.c.h.b16 %v101
    %v657 = vunpack.c.l.b16 %v102
    %v658 = vunpack.c.l.b16 %v103
    %v659 = vunpack.c.h.b16 %v103
    %v660 = vunpack.c.l.b16 %v104
    %v661 = vunpack.c.h.b16 %v104
    %v662 = vunpack.c.l.b16 %v105
    %v663 = vunpack.c.l.b16 %v106
    %v664 = vunpack.c.h.b16 %v106
    %v665 = vunpack.c.l.b16 %v107
    %v666 = vunpack.c.h.b16 %v107
    %v667 = vunpack.c.l.b16 %v108
    %v668 = vunpack.c.l.b16 %v109
    %v669 = vunpack.c.h.b16 %v109
    %v670 = vunpack.c.l.b16 %v110
    %v671 = vunpack.c.h.b16 %v110
    %v672 = vunpack.c.l.b16 %v111
    %v673 = vunpack.c.l.b16 %v112
    %v674 = vunpack.c.h.b16 %v112
    %v675 = vunpack.c.l.b16 %v113
    %v676 = vunpack.c.h.b16 %v113
    %v677 = vunpack.c.l.b16 %v114
    %v678 = vunpack.c.l.b16 %v115
    %v679 = vunpack.c.h.b16 %v115
    %v680 = vunpack.c.l.b16 %v116
    %v681 = vunpack.c.h.b16 %v116
    %v682 = vunpack.c.l.b16 %v117
    %v683 = vunpack.c.l.b16 %v118
    %v684 = vunpack.c.h.b16 %v118
    %v685 = vunpack.c.l.b16 %v119
    %v686 = vunpack.c.h.b16 %v119
    %v687 = vunpack.c.l.b16 %v120
    %v688 = vunpack.c.l.b16 %v121
    %v689 = vunpack.c.h.b16 %v121
    %v690 = vunpack.c.l.b16 %v122
    %v691 = vunpack.c.h.b16 %v122
    %v692 = vunpack.c.l.b16 %v123
    %v693 = vunpack.c.l.b16 %v124
    %v694 = vunpack.c.h.b16 %v124
    %v695 = vunpack.c.l.b16 %v125
    %v696 = vunpack.c.h.b16 %v125
    %v697 = vunpack.c.l.b16 %v126
    %v698 = vunpack.c.l.b16 %v127
    %v699 = vunpack.c.h.b16 %v127
    %v700 = vunpack.c.l.b16 %v128
    %v701 = vunpack.c.h.b16 %v128
    %v702 = vunpack.c.l.b16 %v129
    %v703 = vunpack.c.l.b16 %v130
    %v704 = vunpack.c.h.b16 %v130
    %v705 = vunpack.c.l.b16 %v131
    %v706 = vunpack.c.h.b16 %v131
    %v707 = vunpack.c.l.b16 %v132
    %v708 = vunpack.c.l.b16 %v133
    %v709 = vunpack.c.h.b16 %v133
    %v710 = vunpack.c.l.b16 %v134
    %v711 = vunpack.c.h.b16 %v134
    %v712 = vunpack.c.l.b16 %v135
    %v713 = vunpack.c.l.b16 %v136
    %v714 = vunpack.c.h.b16 %v136
    %v715 = vunpack.c.l.b16 %v137
    %v716 = vunpack.c.h.b16 %v137
    %v717 = vunpack.c.l.b16 %v138
    %v718 = vunpack.c.l.b16 %v139
    %v719 = vunpack.c.h.b16 %v139
    %v720 = vunpack.c.l.b16 %v140
    %v721 = vunpack.c.h.b16 %v140
    %v722 = vunpack.c.l.b16 %v141
    %v723 = vunpack.c.l.b16 %v142
    %v724 = vunpack.c.h.b16 %v142
    %v725 = vunpack.c.l.b16 %v143
    %v726 = vunpack.c.h.b16 %v143
    %v727 = vunpack.c.l.b16 %v144
    %v728 = vunpack.c.l.b16 %v145
    %v729 = vunpack.c.h.b16 %v145
    %v730 = vunpack.c.l.b16 %v146
    %v731 = vunpack.c.h.b16 %v146
    %v732 = vunpack.c.l.b16 %v147
    %v733 = vunpack.c.l.b16 %v148
    %v734 = vunpack.c.h.b16 %v148
    %v735 = vunpack.c.l.b16 %v149
    %v736 = vunpack.c.h.b16 %v149
    %v737 = vunpack.c.l.b16 %v150
    %v738 = vunpack.c.l.b16 %v151
    %v739 = vunpack.c.h.b16 %v151
    %v740 = vunpack.c.l.b16 %v152
    %v741 = vunpack.c.h.b16 %v152
    %v742 = vunpack.c.l.b16 %v153
    %v743 = vunpack.c.l.b16 %v154
    %v744 = vunpack.c.h.b16 %v154
    %v745 = vunpack.c.l.b16 %v155
    %v746 = vunpack.c.h.b16 %v155
    %v747 = vunpack.c.l.b16 %v156
    %v748 = vunpack.c.l.b16 %v157
    %v749 = vunpack.c.h.b16 %v157
    %v750 = vunpack.c.l.b16 %v158
    %v751 = vunpack.c.h.b16 %v158
    %v752 = vunpack.c.l.b16 %v159
    %v753 = vunpack.c.l.b16 %v160
    %v754 = vunpack.c.h.b16 %v160
    %v755 = vunpack.c.l.b16 %v161
    %v756 = vunpack.c.h.b16 %v161
    %v757 = vunpack.c.l.b16 %v162
    %v758 = vunpack.c.l.b16 %v163
    %v759 = vunpack.c.h.b16 %v163
    %v760 = vunpack.c.l.b16 %v164
    %v761 = vunpack.c.h.b16 %v164
    %v762 = vunpack.c.l.b16 %v165
    %v763 = vunpack.c.l.b16 %v166
    %v764 = vunpack.c.h.b16 %v166
    %v765 = vunpack.c.l.b16 %v167
    %v766 = vunpack.c.h.b16 %v167
    %v767 = vunpack.c.l.b16 %v168
    %v768 = vunpack.c.l.b16 %v169
    %v769 = vunpack.c.h.b16 %v169
    %v770 = vunpack.c.l.b16 %v170
    %v771 = vunpack.c.h.b16 %v170
    %v772 = vunpack.c.l.b16 %v171
    %v773 = vunpack.c.l.b16 %v172
    %v774 = vunpack.c.h.b16 %v172
    %v775 = vunpack.c.l.b16 %v173
    %v776 = vunpack.c.h.b16 %v173
    %v777 = vunpack.c.l.b16 %v174
    %v778 = vunpack.c.l.b16 %v175
    %v779 = vunpack.c.h.b16 %v175
    %v780 = vunpack.c.l.b16 %v176
    %v781 = vunpack.c.h.b16 %v176
    %v782 = vunpack.c.l.b16 %v177
    %v783 = vunpack.c.l.b16 %v178
    %v784 = vunpack.c.h.b16 %v178
    %v785 = vunpack.c.l.b16 %v179
    %v786 = vunpack.c.h.b16 %v179
    %v787 = vunpack.c.l.b16 %v180
    %v788 = vunpack.c.l.b16 %v181
    %v789 = vunpack.c.h.b16 %v181
    %v790 = vunpack.c.l.b16 %v182
    %v791 = vunpack.c.h.b16 %v182
    %v792 = vunpack.c.l.b16 %v183
    %v793 = vunpack.c.l.b16 %v184
    %v794 = vunpack.c.h.b16 %v184
    %v795 = vunpack.c.l.b16 %v185
    %v796 = vunpack.c.h.b16 %v185
    %v797 = vunpack.c.l.b16 %v186
    %v798 = vunpack.c.l.b16 %v187
    %v799 = vunpack.c.h.b16 %v187
    %v800 = vunpack.c.l.b16 %v188
    %v801 = vunpack.c.h.b16 %v188
    %v802 = vunpack.c.l.b16 %v189
    %v803 = vunpack.c.l.b16 %v190
    %v804 = vunpack.c.h.b16 %v190
    %v805 = vunpack.c.l.b16 %v191
    %v806 = vunpack.c.h.b16 %v191
    %v807 = vunpack.c.l.b16 %v192
    %v808 = vunpack.c.l.b16 %v193
    %v809 = vunpack.c.h.b16 %v193
    %v810 = vunpack.c.l.b16 %v194
    %v811 = vunpack.c.h.b16 %v194
    %v812 = vunpack.c.l.b16 %v195
    %v813 = vunpack.c.l.b16 %v196
    %v814 = vunpack.c.h.b16 %v196
    %v815 = vunpack.c.l.b16 %v197
    %v816 = vunpack.c.h.b16 %v197
    %v817 = vunpack.c.l.b16 %v198
    %v818 = vunpack.c.l.b16 %v199
    %v819 = vunpack.c.h.b16 %v199
    %v820 = vunpack.c.l.b16 %v200
    %v821 = vunpack.c.h.b16 %v200
    %v822 = vunpack.c.l.b16 %v201
    %v823 = vunpack.c.l.b16 %v202
    %v824 = vunpack.c.h.b16 %v202
    %v825 = vunpack.c.l.b16 %v203
    %v826 = vunpack.c.h.b16 %v203
    %v827 = vunpack.c.l.b16 %v204
    %v828 = vunpack.c.l.b16 %v205
    %v829 = vunpack.c.h.b16 %v205
    %v830 = vunpack.c.l.b16 %v206
    %v831 = vunpack.c.h.b16 %v206
    %v832 = vunpack.c.l.b16 %v207
    %v833 = vunpack.c.l.b16 %v208
    %v834 = vunpack.c.h.b16 %v208
    %v835 = vunpack.c.l.b16 %v209
    %v836 = vunpack.c.h.b16 %v209
    %v837 = vunpack.c.l.b16 %v210
    %v838 = vunpack.c.l.b16 %v211
    %v839 = vunpack.c.h.b16 %v211
    %v840 = vunpack.c.l.b16 %v212
    %v841 = vunpack.c.h.b16 %v212
    %v842 = vunpack.c.l.b16 %v213
    %v843 = vunpack.c.l.b16 %v214
    %v844 = vunpack.c.h.b16 %v214
    %v845 = vunpack.c.l.b16 %v215
    %v846 = vunpack.c.h.b16 %v215
    %v847 = vunpack.c.l.b16 %v216
    %v848 = vunpack.c.l.b16 %v217
    %v849 = vunpack.c.h.b16 %v217
    %v850 = vunpack.c.l.b16 %v218
    %v851 = vunpack.c.h.b16 %v218
    %v852 = vunpack.c.l.b16 %v219
    %v853 = vunpack.c.l.b16 %v220
    %v854 = vunpack.c.h.b16 %v220
    %v855 = vunpack.c.l.b16 %v221
    %v856 = vunpack.c.h.b16 %v221
    %v857 = vunpack.c.l.b16 %v222
    %v858 = vunpack.c.l.b16 %v223
    %v859 = vunpack.c.h.b16 %v223
    %v860 = vunpack.c.l.b16 %v224
    %v861 = vunpack.c.h.b16 %v224
    %v862 = vunpack.c.l.b16 %v225
    %v863 = vunpack.c.l.b16 %v226
    %v864 = vunpack.c.h.b16 %v226
    %v865 = vunpack.c.l.b16 %v227
    %v866 = vunpack.c.h.b16 %v227
    %v867 = vunpack.c.l.b16 %v228
    %v868 = vunpack.c.l.b16 %v229
    %v869 = vunpack.c.h.b16 %v229
    %v870 = vunpack.c.l.b16 %v230
    %v871 = vunpack.c.h.b16 %v230
    %v872 = vunpack.c.l.b16 %v231
    %v873 = vunpack.c.l.b16 %v232
    %v874 = vunpack.c.h.b16 %v232
    %v875 = vunpack.c.l.b16 %v233
    %v876 = vunpack.c.h.b16 %v233
    %v877 = vunpack.c.l.b16 %v234
    %v878 = vunpack.c.l.b16 %v235
    %v879 = vunpack.c.h.b16 %v235
    %v880 = vunpack.c.l.b16 %v236
    %v881 = vunpack.c.h.b16 %v236
    %v882 = vunpack.c.l.b16 %v237
    %v883 = vunpack.c.l.b16 %v238
    %v884 = vunpack.c.h.b16 %v238
    %v885 = vunpack.c.l.b16 %v239
    %v886 = vunpack.c.h.b16 %v239
    %v887 = vunpack.c.l.b16 %v240
    %v888 = vunpack.c.l.b16 %v241
    %v889 = vunpack.c.h.b16 %v241
    %v890 = vunpack.c.l.b16 %v242
    %v891 = vunpack.c.h.b16 %v242
    %v892 = vunpack.c.l.b16 %v243
    %v893 = vunpack.c.l.b16 %v244
    %v894 = vunpack.c.h.b16 %v244
    %v895 = vunpack.c.l.b16 %v245
    %v896 = vunpack.c.h.b16 %v245
    %v897 = vunpack.c.l.b16 %v246
    %v898 = vunpack.c.l.b16 %v247
    %v899 = vunpack.c.h.b16 %v247
    %v900 = vunpack.c.l.b16 %v248
    %v901 = vunpack.c.h.b16 %v248
    %v902 = vunpack.c.l.b16 %v249
    %v903 = vunpack.c.l.b16 %v250
    %v904 = vunpack.c.h.b16 %v250
    %v905 = vunpack.c.l.b16 %v251
    %v906 = vunpack.c.h.b16 %v251
    %v907 = vunpack.c.l.b16 %v252
    %v908 = vunpack.c.l.b16 %v253
    %v909 = vunpack.c.h.b16 %v253
    %v910 = vunpack.c.l.b16 %v254
    %v911 = vunpack.c.h.b16 %v254
    %v912 = vunpack.c.l.b16 %v255
    %v913 = vunpack.c.l.b16 %v256
    %v914 = vunpack.c.h.b16 %v256
    %v915 = vunpack.c.l.b16 %v257
    %v916 = vunpack.c.h.b16 %v257
    %v917 = vunpack.c.l.b16 %v258
    %v918 = vunpack.c.l.b16 %v259
    %v919 = vunpack.c.h.b16 %v259
    %v920 = vunpack.c.l.b16 %v260
    %v921 = vunpack.c.h.b16 %v260
    %v922 = vunpack.c.l.b16 %v261
    %v923 = vunpack.c.l.b16 %v262
    %v924 = vunpack.c.h.b16 %v262
    %v925 = vunpack.c.l.b16 %v263
    %v926 = vunpack.c.h.b16 %v263
    %v927 = vunpack.c.l.b16 %v264
    %v928 = vunpack.c.l.b16 %v265
    %v929 = vunpack.c.h.b16 %v265
    %v930 = vunpack.c.l.b16 %v266
    %v931 = vunpack.c.h.b16 %v266
    %v932 = vunpack.c.l.b16 %v267
    %v933 = vunpack.c.l.b16 %v268
    %v934 = vunpack.c.h.b16 %v268
    %v935 = vunpack.c.l.b16 %v269
    %v936 = vunpack.c.h.b16 %v269
    %v937 = vunpack.c.l.b16 %v270
    %v938 = vunpack.c.l.b16 %v271
    %v939 = vunpack.c.h.b16 %v271
    %v940 = vunpack.c.l.b16 %v272
    %v941 = vunpack.c.h.b16 %v272
    %v942 = vunpack.c.l.b16 %v273
    %v943 = vunpack.c.l.b16 %v274
    %v944 = vunpack.c.h.b16 %v274
    %v945 = vunpack.c.l.b16 %v275
    %v946 = vunpack.c.h.b16 %v275
    %v947 = vunpack.c.l.b16 %v276
    %v948 = vpack.c.b16 %v583, %v578
    %v949 = vpack.c.b16 %v584, %v579
    %v950 = vpack.c.b16 %v585, %v580
    %v951 = vpack.c.b16 %v586, %v581
    %v952 = vpack.c.b16 %v587, %v582
    %v953 = vpack.c.b16 %v593, %v588
    %v954 = vpack.c.b16 %v594, %v589
    %v955 = vpack.c.b16 %v595, %v590
    %v956 = vpack.c.b16 %v596, %v591
    %v957 = vpack.c.b16 %v597, %v592
    %v958 = vpack.c.b16 %v603, %v598
    %v959 = vpack.c.b16 %v604, %v599
    %v960 = vpack.c.b16 %v605, %v600
    %v961 = vpack.c.b16 %v606, %v601
    %v962 = vpack.c.b16 %v607, %v602
    %v963 = vpack.c.b16 %v613, %v608
    %v964 = vpack.c.b16 %v614, %v609
    %v965 = vpack.c.b16 %v615, %v610
    %v966 = vpack.c.b16 %v616, %v611
    %v967 = vpack.c.b16 %v617, %v612
    %v968 = vpack.c.b16 %v623, %v618
    %v969 = vpack.c.b16 %v624, %v619
    %v970 = vpack.c.b16 %v625, %v620
    %v971 = vpack.c.b16 %v626, %v621
    %v972 = vpack.c.b16 %v627, %v622
    %v973 = vpack.c.b16 %v633, %v628
    %v974 = vpack.c.b16 %v634, %v629
    %v975 = vpack.c.b16 %v635, %v630
    %v976 = vpack.c.b16 %v636, %v631
    %v977 = vpack.c.b16 %v637, %v632
    %v978 = vpack.c.b16 %v643, %v638
    %v979 = vpack.c.b16 %v644, %v639
    %v980 = vpack.c.b16 %v645, %v640
    %v981 = vpack.c.b16 %v646, %v641
    %v982 = vpack.c.b16 %v647, %v642
    %v983 = vpack.c.b16 %v653, %v648
    %v984 = vpack.c.b16 %v654, %v649
    %v985 = vpack.c.b16 %v655, %v650
    %v986 = vpack.c.b16 %v656, %v651
    %v987 = vpack.c.b16 %v657, %v652
    %v988 = vpack.c.b16 %v663, %v658
    %v989 = vpack.c.b16 %v664, %v659
    %v990 = vpack.c.b16 %v665, %v660
    %v991 = vpack.c.b16 %v666, %v661
    %v992 = vpack.c.b16 %v667, %v662
    %v993 = vpack.c.b16 %v673, %v668
    %v994 = vpack.c.b16 %v674, %v669
    %v995 = vpack.c.b16 %v675, %v670
    %v996 = vpack.c.b16 %v676, %v671
    %v997 = vpack.c.b16 %v677, %v672
    %v998 = vpack.c.b16 %v683, %v678
    %v999 = vpack.c.b16 %v684, %v679
    %v1000 = vpack.c.b16 %v685, %v680
    %v1001 = vpack.c.b16 %v686, %v681
    %v1002 = vpack.c.b16 %v687, %v682
    %v1003 = vpack.c.b16 %v693, %v688
    %v1004 = vpack.c.b16 %v694, %v689
    %v1005 = vpack.c.b16 %v695, %v690
    %v1006 = vpack.c.b16 %v696, %v691
    %v1007 = vpack.c.b16 %v697, %v692
    %v1008 = vpack.c.b16 %v703, %v698
    %v1009 = vpack.c.b16 %v704, %v699
    %v1010 = vpack.c.b16 %v705, %v700
    %v1011 = vpack.c.b16 %v706, %v701
    %v1012 = vpack.c.b16 %v707, %v702
    %v1013 = vpack.c.b16 %v713, %v708
    %v1014 = vpack.c.b16 %v714, %v709
    %v1015 = vpack.c.b16 %v715, %v710
    %v1016 = vpack.c.b16 %v716, %v711
    %v1017 = vpack.c.b16 %v717, %v712
    %v1018 = vpack.c.b16 %v723, %v718
    %v1019 = vpack.c.b16 %v724, %v719
    %v1020 = vpack.c.b16 %v725, %v720
    %v1021 = vpack.c.b16 %v726, %v721
    %v1022 = vpack.c.b16 %v727, %v722
    %v1023 = vpack.c.b16 %v733, %v728
    %v1024 = vpack.c.b16 %v734, %v729
    %v1025 = vpack.c.b16 %v735, %v730
    %v1026 = vpack.c.b16 %v736, %v731
    %v1027 = vpack.c.b16 %v737, %v732
    %v1028 = vpack.c.b16 %v743, %v738
    %v1029 = vpack.c.b16 %v744, %v739
    %v1030 = vpack.c.b16 %v745, %v740
    %v1031 = vpack.c.b16 %v746, %v741
    %v1032 = vpack.c.b16 %v747, %v742
    %v1033 = vpack.c.b16 %v753, %v748
    %v1034 = vpack.c.b16 %v754, %v749
    %v1035 = vpack.c.b16 %v755, %v750
    %v1036 = vpack.c.b16 %v756, %v751
    %v1037 = vpack.c.b16 %v757, %v752
    %v1038 = vpack.c.b16 %v763, %v758
    %v1039 = vpack.c.b16 %v764, %v759
    %v1040 = vpack.c.b16 %v765, %v760
    %v1041 = vpack.c.b16 %v766, %v761
    %v1042 = vpack.c.b16 %v767, %v762
    %v1043 = vpack.c.b16 %v773, %v768
    %v1044 = vpack.c.b16 %v774, %v769
    %v1045 = vpack.c.b16 %v775, %v770
    %v1046 = vpack.c.b16 %v776, %v771
    %v1047 = vpack.c.b16 %v777, %v772
    %v1048 = vpack.c.b16 %v783, %v778
    %v1049 = vpack.c.b16 %v784, %v779
    %v1050 = vpack.c.b16 %v785, %v780
    %v1051 = vpack.c.b16 %v786, %v781
    %v1052 = vpack.c.b16 %v787, %v782
    %v1053 = vpack.c.b16 %v793, %v788
    %v1054 = vpack.c.b16 %v794, %v789
    %v1055 = vpack.c.b16 %v795, %v790
    %v1056 = vpack.c.b16 %v796, %v791
    %v1057 = vpack.c.b16 %v797, %v792
    %v1058 = vpack.c.b16 %v803, %v798
    %v1059 = vpack.c.b16 %v804, %v799
    %v1060 = vpack.c.b16 %v805, %v800
    %v1061 = vpack.c.b16 %v806, %v801
    %v1062 = vpack.c.b16 %v807, %v802
    %v1063 = vpack.c.b16 %v813, %v808
    %v1064 = vpack.c.b16 %v814, %v809
    %v1065 = vpack.c.b16 %v815, %v810
    %v1066 = vpack.c.b16 %v816, %v811
    %v1067 = vpack.c.b16 %v817, %v812
    %v1068 = vpack.c.b16 %v823, %v818
    %v1069 = vpack.c.b16 %v824, %v819
    %v1070 = vpack.c.b16 %v825, %v820
    %v1071 = vpack.c.b16 %v826, %v821
    %v1072 = vpack.c.b16 %v827, %v822
    %v1073 = vpack.c.b16 %v833, %v828
    %v1074 = vpack.c.b16 %v834, %v829
    %v1075 = vpack.c.b16 %v835, %v830
    %v1076 = vpack.c.b16 %v836, %v831
    %v1077 = vpack.c.b16 %v837, %v832
    %v1078 = vpack.c.b16 %v843, %v838
    %v1079 = vpack.c.b16 %v844, %v839
    %v1080 = vpack.c.b16 %v845, %v840
    %v1081 = vpack.c.b16 %v846, %v841
    %v1082 = vpack.c.b16 %v847, %v842
    %v1083 = vpack.c.b16 %v853, %v848
    %v1084 = vpack.c.b16 %v854, %v849
    %v1085 = vpack.c.b16 %v855, %v850
    %v1086 = vpack.c.b16 %v856, %v851
    %v1087 = vpack.c.b16 %v857, %v852
    %v1088 = vpack.c.b16 %v863, %v858
    %v1089 = vpack.c.b16 %v864, %v859
    %v1090 = vpack.c.b16 %v865, %v860
    %v1091 = vpack.c.b16 %v866, %v861
    %v1092 = vpack.c.b16 %v867, %v862
    %v1093 = vpack.c.b16 %v873, %v868
    %v1094 = vpack.c.b16 %v874, %v869
    %v1095 = vpack.c.b16 %v875, %v870
    %v1096 = vpack.c.b16 %v876, %v871
    %v1097 = vpack.c.b16 %v877, %v872
    %v1098 = vpack.c.b16 %v883, %v878
    %v1099 = vpack.c.b16 %v884, %v879
    %v1100 = vpack.c.b16 %v885, %v880
    %v1101 = vpack.c.b16 %v886, %v881
    %v1102 = vpack.c.b16 %v887, %v882
    %v1103 = vpack.c.b16 %v893, %v888
    %v1104 = vpack.c.b16 %v894, %v889
    %v1105 = vpack.c.b16 %v895, %v890
    %v1106 = vpack.c.b16 %v896, %v891
    %v1107 = vpack.c.b16 %v897, %v892
    %v1108 = vpack.c.b16 %v903, %v898
    %v1109 = vpack.c.b16 %v904, %v899
    %v1110 = vpack.c.b16 %v905, %v900
    %v1111 = vpack.c.b16 %v906, %v901
    %v1112 = vpack.c.b16 %v907, %v902
    %v1113 = vpack.c.b16 %v913, %v908
    %v1114 = vpack.c.b16 %v914, %v909
    %v1115 = vpack.c.b16 %v915, %v910
    %v1116 = vpack.c.b16 %v916, %v911
    %v1117 = vpack.c.b16 %v917, %v912
    %v1118 = vpack.c.b16 %v923, %v918
    %v1119 = vpack.c.b16 %v924, %v919
    %v1120 = vpack.c.b16 %v925, %v920
    %v1121 = vpack.c.b16 %v926, %v921
    %v1122 = vpack.c.b16 %v927, %v922
    %v1123 = vpack.c.b16 %v933, %v928
    %v1124 = vpack.c.b16 %v934, %v929
    %v1125 = vpack.c.b16 %v935, %v930
    %v1126 = vpack.c.b16 %v936, %v931
    %v1127 = vpack.c.b16 %v937, %v932
    %v1128 = vpack.c.b16 %v943, %v938
    %v1129 = vpack.c.b16 %v944, %v939
    %v1130 = vpack.c.b16 %v945, %v940
    %v1131 = vpack.c.b16 %v946, %v941
    %v1132 = vpack.c.b16 %v947, %v942
    %v1353 = vunpack.c.l.b16 %v277
    %v1354 = vunpack.c.l.b16 %v278
    %v1355 = vunpack.c.l.b16 %v279
    %v1356 = vunpack.c.l.b16 %v280
    %v1357 = vunpack.c.l.b16 %v281
    %v1358 = vunpack.c.l.b16 %v282
    %v1359 = vunpack.c.l.b16 %v283
    %v1360 = vunpack.c.l.b16 %v284
    %v1361 = vunpack.c.l.b16 %v285
    %v1362 = vunpack.c.l.b16 %v286
    %v1363 = vunpack.c.l.b16 %v287
    %v1364 = vunpack.c.l.b16 %v288
    %v1365 = vunpack.c.l.b16 %v289
    %v1366 = vunpack.c.l.b16 %v290
    %v1367 = vunpack.c.l.b16 %v291
    %v1368 = vunpack.c.l.b16 %v292
    %v1369 = vunpack.c.l.b16 %v293
    %v1370 = vunpack.c.l.b16 %v294
    %v1371 = vunpack.c.l.b16 %v295
    %v1372 = vunpack.c.l.b16 %v296
    %v1373 = vunpack.c.l.b16 %v297
    %v1374 = vunpack.c.l.b16 %v298
    %v1375 = vunpack.c.l.b16 %v299
    %v1376 = vunpack.c.l.b16 %v300
    %v1377 = vunpack.c.l.b16 %v301
    %v1378 = vunpack.c.l.b16 %v302
    %v1379 = vunpack.c.l.b16 %v303
    %v1380 = vunpack.c.l.b16 %v304
    %v1381 = vunpack.c.l.b16 %v305
    %v1382 = vunpack.c.l.b16 %v306
    %v1383 = vunpack.c.l.b16 %v307
    %v1384 = vunpack.c.l.b16 %v308
    %v1385 = vunpack.c.l.b16 %v309
    %v1386 = vunpack.c.l.b16 %v310
    %v1387 = vunpack.c.l.b16 %v311
    %v1388 = vunpack.c.l.b16 %v312
    %v1389 = vunpack.c.l.b16 %v313
    %v1390 = vunpack.c.l.b16 %v314
    %v1391 = vunpack.c.l.b16 %v315
    %v1392 = vunpack.c.l.b16 %v316
    %v1393 = vunpack.c.l.b16 %v317
    %v1394 = vunpack.c.l.b16 %v318
    %v1395 = vunpack.c.l.b16 %v319
    %v1396 = vunpack.c.l.b16 %v320
    %v1397 = vunpack.c.l.b16 %v321
    %v1398 = vunpack.c.l.b16 %v322
    %v1399 = vunpack.c.l.b16 %v323
    %v1400 = vunpack.c.l.b16 %v324
    %v1401 = vunpack.c.l.b16 %v325
    %v1402 = vunpack.c.l.b16 %v326
    %v1403 = vunpack.c.l.b16 %v327
    %v1404 = vunpack.c.l.b16 %v328
    %v1405 = vunpack.c.l.b16 %v329
    %v1406 = vunpack.c.l.b16 %v330
    %v1407 = vunpack.c.l.b16 %v331
    %v1408 = vunpack.c.l.b16 %v332
    %v1409 = vunpack.c.l.b16 %v333
    %v1410 = vunpack.c.l.b16 %v334
    %v1411 = vunpack.c.l.b16 %v335
    %v1412 = vunpack.c.l.b16 %v336
    %v1413 = vunpack.c.l.b16 %v337
    %v1414 = vunpack.c.l.b16 %v338
    %v1415 = vunpack.c.l.b16 %v339
    %v1416 = vunpack.c.l.b16 %v340
    %v1417 = vunpack.c.l.b16 %v341
    %v1418 = vunpack.c.l.b16 %v342
    %v1419 = vunpack.c.l.b16 %v343
    %v1420 = vunpack.c.l.b16 %v344
    %v1421 = vunpack.c.l.b16 %v345
    %v1422 = vunpack.c.l.b16 %v346
    %v1423 = vunpack.c.l.b16 %v347
    %v1424 = vunpack.c.l.b16 %v348
    %v1425 = vpack.c.b16 %v1354, %v1353
    %v1426 = vpack.c.b16 %v1356, %v1355
    %v1427 = vpack.c.b16 %v1358, %v1357
    %v1428 = vpack.c.b16 %v1360, %v1359
    %v1429 = vpack.c.b16 %v1362, %v1361
    %v1430 = vpack.c.b16 %v1364, %v1363
    %v1431 = vpack.c.b16 %v1366, %v1365
    %v1432 = vpack.c.b16 %v1368, %v1367
    %v1433 = vpack.c.b16 %v1370, %v1369
    %v1434 = vpack.c.b16 %v1372, %v1371
    %v1435 = vpack.c.b16 %v1374, %v1373
    %v1436 = vpack.c.b16 %v1376, %v1375
    %v1437 = vpack.c.b16 %v1378, %v1377
    %v1438 = vpack.c.b16 %v1380, %v1379
    %v1439 = vpack.c.b16 %v1382, %v1381
    %v1440 = vpack.c.b16 %v1384, %v1383
    %v1441 = vpack.c.b16 %v1386, %v1385
    %v1442 = vpack.c.b16 %v1388, %v1387
    %v1443 = vpack.c.b16 %v1390, %v1389
    %v1444 = vpack.c.b16 %v1392, %v1391
    %v1445 = vpack.c.b16 %v1394, %v1393
    %v1446 = vpack.c.b16 %v1396, %v1395
    %v1447 = vpack.c.b16 %v1398, %v1397
    %v1448 = vpack.c.b16 %v1400, %v1399
    %v1449 = vpack.c.b16 %v1402, %v1401
    %v1450 = vpack.c.b16 %v1404, %v1403
    %v1451 = vpack.c.b16 %v1406, %v1405
    %v1452 = vpack.c.b16 %v1408, %v1407
    %v1453 = vpack.c.b16 %v1410, %v1409
    %v1454 = vpack.c.b16 %v1412, %v1411
    %v1455 = vpack.c.b16 %v1414, %v1413
    %v1456 = vpack.c.b16 %v1416, %v1415
    %v1457 = vpack.c.b16 %v1418, %v1417
    %v1458 = vpack.c.b16 %v1420, %v1419
    %v1459 = vpack.c.b16 %v1422, %v1421
    %v1460 = vpack.c.b16 %v1424, %v1423
    %vm1497 = vcmask 523264
    %v1499 = vsel %vm1497, %v952, 0
    %v1502 = vsel %vm1497, %v957, 0
    %v1505 = vsel %vm1497, %v962, 0
    %v1508 = vsel %vm1497, %v967, 0
    %v1511 = vsel %vm1497, %v972, 0
    %v1514 = vsel %vm1497, %v977, 0
    %v1517 = vsel %vm1497, %v982, 0
    %v1520 = vsel %vm1497, %v987, 0
    %v1523 = vsel %vm1497, %v992, 0
    %v1526 = vsel %vm1497, %v997, 0
    %v1529 = vsel %vm1497, %v1002, 0
    %v1532 = vsel %vm1497, %v1007, 0
    %v1535 = vsel %vm1497, %v1012, 0
    %v1538 = vsel %vm1497, %v1017, 0
    %v1541 = vsel %vm1497, %v1022, 0
    %v1544 = vsel %vm1497, %v1027, 0
    %v1547 = vsel %vm1497, %v1032, 0
    %v1550 = vsel %vm1497, %v1037, 0
    %v1553 = vsel %vm1497, %v1042, 0
    %v1556 = vsel %vm1497, %v1047, 0
    %v1559 = vsel %vm1497, %v1052, 0
    %v1562 = vsel %vm1497, %v1057, 0
    %v1565 = vsel %vm1497, %v1062, 0
    %v1568 = vsel %vm1497, %v1067, 0
    %v1571 = vsel %vm1497, %v1072, 0
    %v1574 = vsel %vm1497, %v1077, 0
    %v1577 = vsel %vm1497, %v1082, 0
    %v1580 = vsel %vm1497, %v1087, 0
    %v1583 = vsel %vm1497, %v1092, 0
    %v1586 = vsel %vm1497, %v1097, 0
    %v1589 = vsel %vm1497, %v1102, 0
    %v1592 = vsel %vm1497, %v1107, 0
    %v1595 = vsel %vm1497, %v1112, 0
    %v1598 = vsel %vm1497, %v1117, 0
    %v1601 = vsel %vm1497, %v1122, 0
    %v1604 = vsel %vm1497, %v1127, 0
    %v1607 = vsel %vm1497, %v1132, 0
    %1609 = vmatprep.subr.bf16.mxu0 0
    %1610 = vmatpush1.bf16.msra.mxu0 %v1425
    %1611 = vmatprep.subr.bf16.mxu0 0
    %1612 = vmatpush1.bf16.msra.mxu0 %v1426
    %1613 = vmatprep.subr.bf16.mxu0 0
    %1614 = vmatpush1.bf16.msra.mxu0 %v1427
    %1615 = vmatprep.subr.bf16.mxu0 0
    %1616 = vmatpush1.bf16.msra.mxu0 %v1428
    %1617 = vmatprep.subr.bf16.mxu0 0
    %1618 = vmatpush1.bf16.msra.mxu0 %v1429
    %1619 = vmatprep.subr.bf16.mxu0 0
    %1620 = vmatpush1.bf16.msra.mxu0 %v1430
    %1621 = vmatprep.subr.bf16.mxu0 0
    %1622 = vmatpush1.bf16.msra.mxu0 %v1431
    %1623 = vmatprep.subr.bf16.mxu0 0
    %1624 = vmatpush1.bf16.msra.mxu0 %v1432
    %1625 = vmatprep.subr.bf16.mxu0 0
    %1626 = vmatpush1.bf16.msra.mxu0 %v1433
    %1627 = vmatprep.subr.bf16.mxu0 0
    %1628 = vmatpush1.bf16.msra.mxu0 %v1434
    %1629 = vmatprep.subr.bf16.mxu0 0
    %1630 = vmatpush1.bf16.msra.mxu0 %v1435
    %1631 = vmatprep.subr.bf16.mxu0 0
    %1632 = vmatpush1.bf16.msra.mxu0 %v1436
    %1633 = vmatprep.subr.bf16.mxu0 0
    %1634 = vmatpush1.bf16.msra.mxu0 %v1437
    %1635 = vmatprep.subr.bf16.mxu0 0
    %1636 = vmatpush1.bf16.msra.mxu0 %v1438
    %1637 = vmatprep.subr.bf16.mxu0 0
    %1638 = vmatpush1.bf16.msra.mxu0 %v1439
    %1639 = vmatprep.subr.bf16.mxu0 0
    %1640 = vmatpush1.bf16.msra.mxu0 %v1440
    %1641 = vmatprep.mubr.bf16.mxu0 %v949
    %1642 = vmatmul.mubr.bf16.gmra.mrb[0].mxu0 %v948
    %v1643 = vpop.f32.mrb[0].mxu0
    %v1644 = vadd.f32 %v354, %v1643
    %v1645 = vpop.f32.mrb[0].mxu0
    %v1646 = vpop.f32.mrb[0].mxu0
    %v1647 = vadd.f32 %v354, %v1646
    %v1648 = vpop.f32.mrb[0].mxu0
    %1649 = vmatprep.mubr.bf16.mxu0 %v954
    %1650 = vmatmul.mubr.bf16.gmra.mrb[0].mxu0 %v953
    %v1651 = vpop.f32.mrb[0].mxu0
    %v1652 = vadd.f32 %v354, %v1651
    %v1653 = vpop.f32.mrb[0].mxu0
    %v1654 = vpop.f32.mrb[0].mxu0
    %v1655 = vadd.f32 %v354, %v1654
    %v1656 = vpop.f32.mrb[0].mxu0
    %1657 = vmatprep.mubr.bf16.mxu0 %v959
    %1658 = vmatmul.mubr.bf16.gmra.mrb[0].mxu0 %v958
    %v1659 = vpop.f32.mrb[0].mxu0
    %v1660 = vadd.f32 %v354, %v1659
    %v1661 = vpop.f32.mrb[0].mxu0
    %v1662 = vpop.f32.mrb[0].mxu0
    %v1663 = vadd.f32 %v354, %v1662
    %v1664 = vpop.f32.mrb[0].mxu0
    %1665 = vmatprep.mubr.bf16.mxu0 %v964
    %1666 = vmatmul.mubr.bf16.gmra.mrb[0].mxu0 %v963
    %v1667 = vpop.f32.mrb[0].mxu0
    %v1668 = vadd.f32 %v354, %v1667
    %v1669 = vpop.f32.mrb[0].mxu0
    %v1670 = vpop.f32.mrb[0].mxu0
    %v1671 = vadd.f32 %v354, %v1670
    %v1672 = vpop.f32.mrb[0].mxu0
    %1673 = vmatprep.mubr.bf16.mxu0 %v969
    %1674 = vmatmul.mubr.bf16.gmra.mrb[0].mxu0 %v968
    %v1675 = vpop.f32.mrb[0].mxu0
    %v1676 = vadd.f32 %v354, %v1675
    %v1677 = vpop.f32.mrb[0].mxu0
    %v1678 = vpop.f32.mrb[0].mxu0
    %v1679 = vadd.f32 %v354, %v1678
    %v1680 = vpop.f32.mrb[0].mxu0
    %1681 = vmatprep.mubr.bf16.mxu0 %v974
    %1682 = vmatmul.mubr.bf16.gmra.mrb[0].mxu0 %v973
    %v1683 = vpop.f32.mrb[0].mxu0
    %v1684 = vadd.f32 %v354, %v1683
    %v1685 = vpop.f32.mrb[0].mxu0
    %v1686 = vpop.f32.mrb[0].mxu0
    %v1687 = vadd.f32 %v354, %v1686
    %v1688 = vpop.f32.mrb[0].mxu0
    %1689 = vmatprep.mubr.bf16.mxu0 %v979
    %1690 = vmatmul.mubr.bf16.gmra.mrb[0].mxu0 %v978
    %v1691 = vpop.f32.mrb[0].mxu0
    %v1692 = vadd.f32 %v354, %v1691
    %v1693 = vpop.f32.mrb[0].mxu0
    %v1694 = vpop.f32.mrb[0].mxu0
    %v1695 = vadd.f32 %v354, %v1694
    %v1696 = vpop.f32.mrb[0].mxu0
    %1697 = vmatprep.mubr.bf16.mxu0 %v984
    %1698 = vmatmul.mubr.bf16.gmra.mrb[0].mxu0 %v983
    %v1699 = vpop.f32.mrb[0].mxu0
    %v1700 = vadd.f32 %v354, %v1699
    %v1701 = vpop.f32.mrb[0].mxu0
    %v1702 = vpop.f32.mrb[0].mxu0
    %v1703 = vadd.f32 %v354, %v1702
    %v1704 = vpop.f32.mrb[0].mxu0
    %1705 = vmatprep.mubr.bf16.mxu0 %v989
    %1706 = vmatmul.mubr.bf16.gmra.mrb[0].mxu0 %v988
    %v1707 = vpop.f32.mrb[0].mxu0
    %v1708 = vadd.f32 %v354, %v1707
    %v1709 = vpop.f32.mrb[0].mxu0
    %v1710 = vpop.f32.mrb[0].mxu0
    %v1711 = vadd.f32 %v354, %v1710
    %v1712 = vpop.f32.mrb[0].mxu0
    %1713 = vmatprep.mubr.bf16.mxu0 %v994
    %1714 = vmatmul.mubr.bf16.gmra.mrb[0].mxu0 %v993
    %v1715 = vpop.f32.mrb[0].mxu0
    %v1716 = vadd.f32 %v354, %v1715
    %v1717 = vpop.f32.mrb[0].mxu0
    %v1718 = vpop.f32.mrb[0].mxu0
    %v1719 = vadd.f32 %v354, %v1718
    %v1720 = vpop.f32.mrb[0].mxu0
    %1721 = vmatprep.mubr.bf16.mxu0 %v999
    %1722 = vmatmul.mubr.bf16.gmra.mrb[0].mxu0 %v998
    %v1723 = vpop.f32.mrb[0].mxu0
    %v1724 = vadd.f32 %v354, %v1723
    %v1725 = vpop.f32.mrb[0].mxu0
    %v1726 = vpop.f32.mrb[0].mxu0
    %v1727 = vadd.f32 %v354, %v1726
    %v1728 = vpop.f32.mrb[0].mxu0
    %1729 = vmatprep.mubr.bf16.mxu0 %v1004
    %1730 = vmatmul.mubr.bf16.gmra.mrb[0].mxu0 %v1003
    %v1731 = vpop.f32.mrb[0].mxu0
    %v1732 = vadd.f32 %v354, %v1731
    %v1733 = vpop.f32.mrb[0].mxu0
    %v1734 = vpop.f32.mrb[0].mxu0
    %v1735 = vadd.f32 %v354, %v1734
    %v1736 = vpop.f32.mrb[0].mxu0
    %1737 = vmatprep.mubr.bf16.mxu0 %v1009
    %1738 = vmatmul.mubr.bf16.gmra.mrb[0].mxu0 %v1008
    %v1739 = vpop.f32.mrb[0].mxu0
    %v1740 = vadd.f32 %v354, %v1739
    %v1741 = vpop.f32.mrb[0].mxu0
    %v1742 = vpop.f32.mrb[0].mxu0
    %v1743 = vadd.f32 %v354, %v1742
    %v1744 = vpop.f32.mrb[0].mxu0
    %1745 = vmatprep.mubr.bf16.mxu0 %v1014
    %1746 = vmatmul.mubr.bf16.gmra.mrb[0].mxu0 %v1013
    %v1747 = vpop.f32.mrb[0].mxu0
    %v1748 = vadd.f32 %v354, %v1747
    %v1749 = vpop.f32.mrb[0].mxu0
    %v1750 = vpop.f32.mrb[0].mxu0
    %v1751 = vadd.f32 %v354, %v1750
    %v1752 = vpop.f32.mrb[0].mxu0
    %1753 = vmatprep.mubr.bf16.mxu0 %v1019
    %1754 = vmatmul.mubr.bf16.gmra.mrb[0].mxu0 %v1018
    %v1755 = vpop.f32.mrb[0].mxu0
    %v1756 = vadd.f32 %v354, %v1755
    %v1757 = vpop.f32.mrb[0].mxu0
    %v1758 = vpop.f32.mrb[0].mxu0
    %v1759 = vadd.f32 %v354, %v1758
    %v1760 = vpop.f32.mrb[0].mxu0
    %1761 = vmatprep.mubr.bf16.mxu0 %v1024
    %1762 = vmatmul.mubr.bf16.gmra.mrb[0].mxu0 %v1023
    %v1763 = vpop.f32.mrb[0].mxu0
    %v1764 = vadd.f32 %v354, %v1763
    %v1765 = vpop.f32.mrb[0].mxu0
    %v1766 = vpop.f32.mrb[0].mxu0
    %v1767 = vadd.f32 %v354, %v1766
    %v1768 = vpop.f32.mrb[0].mxu0
    %1769 = vmatprep.mubr.bf16.mxu0 %v1029
    %1770 = vmatmul.mubr.bf16.gmra.mrb[0].mxu0 %v1028
    %v1771 = vpop.f32.mrb[0].mxu0
    %v1772 = vadd.f32 %v354, %v1771
    %v1773 = vpop.f32.mrb[0].mxu0
    %v1774 = vpop.f32.mrb[0].mxu0
    %v1775 = vadd.f32 %v354, %v1774
    %v1776 = vpop.f32.mrb[0].mxu0
    %1777 = vmatprep.mubr.bf16.mxu0 %v1034
    %1778 = vmatmul.mubr.bf16.gmra.mrb[0].mxu0 %v1033
    %v1779 = vpop.f32.mrb[0].mxu0
    %v1780 = vadd.f32 %v354, %v1779
    %v1781 = vpop.f32.mrb[0].mxu0
    %v1782 = vpop.f32.mrb[0].mxu0
    %v1783 = vadd.f32 %v354, %v1782
    %v1784 = vpop.f32.mrb[0].mxu0
    %1785 = vmatprep.mubr.bf16.mxu0 %v1039
    %1786 = vmatmul.mubr.bf16.gmra.mrb[0].mxu0 %v1038
    %v1787 = vpop.f32.mrb[0].mxu0
    %v1788 = vadd.f32 %v354, %v1787
    %v1789 = vpop.f32.mrb[0].mxu0
    %v1790 = vpop.f32.mrb[0].mxu0
    %v1791 = vadd.f32 %v354, %v1790
    %v1792 = vpop.f32.mrb[0].mxu0
    %1793 = vmatprep.mubr.bf16.mxu0 %v1044
    %1794 = vmatmul.mubr.bf16.gmra.mrb[0].mxu0 %v1043
    %v1795 = vpop.f32.mrb[0].mxu0
    %v1796 = vadd.f32 %v354, %v1795
    %v1797 = vpop.f32.mrb[0].mxu0
    %v1798 = vpop.f32.mrb[0].mxu0
    %v1799 = vadd.f32 %v354, %v1798
    %v1800 = vpop.f32.mrb[0].mxu0
    %1801 = vmatprep.mubr.bf16.mxu0 %v1049
    %1802 = vmatmul.mubr.bf16.gmra.mrb[0].mxu0 %v1048
    %v1803 = vpop.f32.mrb[0].mxu0
    %v1804 = vadd.f32 %v354, %v1803
    %v1805 = vpop.f32.mrb[0].mxu0
    %v1806 = vpop.f32.mrb[0].mxu0
    %v1807 = vadd.f32 %v354, %v1806
    %v1808 = vpop.f32.mrb[0].mxu0
    %1809 = vmatprep.mubr.bf16.mxu0 %v1054
    %1810 = vmatmul.mubr.bf16.gmra.mrb[0].mxu0 %v1053
    %v1811 = vpop.f32.mrb[0].mxu0
    %v1812 = vadd.f32 %v354, %v1811
    %v1813 = vpop.f32.mrb[0].mxu0
    %v1814 = vpop.f32.mrb[0].mxu0
    %v1815 = vadd.f32 %v354, %v1814
    %v1816 = vpop.f32.mrb[0].mxu0
    %1817 = vmatprep.mubr.bf16.mxu0 %v1059
    %1818 = vmatmul.mubr.bf16.gmra.mrb[0].mxu0 %v1058
    %v1819 = vpop.f32.mrb[0].mxu0
    %v1820 = vadd.f32 %v354, %v1819
    %v1821 = vpop.f32.mrb[0].mxu0
    %v1822 = vpop.f32.mrb[0].mxu0
    %v1823 = vadd.f32 %v354, %v1822
    %v1824 = vpop.f32.mrb[0].mxu0
    %1825 = vmatprep.mubr.bf16.mxu0 %v1064
    %1826 = vmatmul.mubr.bf16.gmra.mrb[0].mxu0 %v1063
    %v1827 = vpop.f32.mrb[0].mxu0
    %v1828 = vadd.f32 %v354, %v1827
    %v1829 = vpop.f32.mrb[0].mxu0
    %v1830 = vpop.f32.mrb[0].mxu0
    %v1831 = vadd.f32 %v354, %v1830
    %v1832 = vpop.f32.mrb[0].mxu0
    %1833 = vmatprep.mubr.bf16.mxu0 %v1069
    %1834 = vmatmul.mubr.bf16.gmra.mrb[0].mxu0 %v1068
    %v1835 = vpop.f32.mrb[0].mxu0
    %v1836 = vadd.f32 %v354, %v1835
    %v1837 = vpop.f32.mrb[0].mxu0
    %v1838 = vpop.f32.mrb[0].mxu0
    %v1839 = vadd.f32 %v354, %v1838
    %v1840 = vpop.f32.mrb[0].mxu0
    %1841 = vmatprep.mubr.bf16.mxu0 %v1074
    %1842 = vmatmul.mubr.bf16.gmra.mrb[0].mxu0 %v1073
    %v1843 = vpop.f32.mrb[0].mxu0
    %v1844 = vadd.f32 %v354, %v1843
    %v1845 = vpop.f32.mrb[0].mxu0
    %v1846 = vpop.f32.mrb[0].mxu0
    %v1847 = vadd.f32 %v354, %v1846
    %v1848 = vpop.f32.mrb[0].mxu0
    %1849 = vmatprep.mubr.bf16.mxu0 %v1079
    %1850 = vmatmul.mubr.bf16.gmra.mrb[0].mxu0 %v1078
    %v1851 = vpop.f32.mrb[0].mxu0
    %v1852 = vadd.f32 %v354, %v1851
    %v1853 = vpop.f32.mrb[0].mxu0
    %v1854 = vpop.f32.mrb[0].mxu0
    %v1855 = vadd.f32 %v354, %v1854
    %v1856 = vpop.f32.mrb[0].mxu0
    %1857 = vmatprep.mubr.bf16.mxu0 %v1084
    %1858 = vmatmul.mubr.bf16.gmra.mrb[0].mxu0 %v1083
    %v1859 = vpop.f32.mrb[0].mxu0
    %v1860 = vadd.f32 %v354, %v1859
    %v1861 = vpop.f32.mrb[0].mxu0
    %v1862 = vpop.f32.mrb[0].mxu0
    %v1863 = vadd.f32 %v354, %v1862
    %v1864 = vpop.f32.mrb[0].mxu0
    %1865 = vmatprep.mubr.bf16.mxu0 %v1089
    %1866 = vmatmul.mubr.bf16.gmra.mrb[0].mxu0 %v1088
    %v1867 = vpop.f32.mrb[0].mxu0
    %v1868 = vadd.f32 %v354, %v1867
    %v1869 = vpop.f32.mrb[0].mxu0
    %v1870 = vpop.f32.mrb[0].mxu0
    %v1871 = vadd.f32 %v354, %v1870
    %v1872 = vpop.f32.mrb[0].mxu0
    %1873 = vmatprep.mubr.bf16.mxu0 %v1094
    %1874 = vmatmul.mubr.bf16.gmra.mrb[0].mxu0 %v1093
    %v1875 = vpop.f32.mrb[0].mxu0
    %v1876 = vadd.f32 %v354, %v1875
    %v1877 = vpop.f32.mrb[0].mxu0
    %v1878 = vpop.f32.mrb[0].mxu0
    %v1879 = vadd.f32 %v354, %v1878
    %v1880 = vpop.f32.mrb[0].mxu0
    %1881 = vmatprep.mubr.bf16.mxu0 %v1099
    %1882 = vmatmul.mubr.bf16.gmra.mrb[0].mxu0 %v1098
    %v1883 = vpop.f32.mrb[0].mxu0
    %v1884 = vadd.f32 %v354, %v1883
    %v1885 = vpop.f32.mrb[0].mxu0
    %v1886 = vpop.f32.mrb[0].mxu0
    %v1887 = vadd.f32 %v354, %v1886
    %v1888 = vpop.f32.mrb[0].mxu0
    %1889 = vmatprep.mubr.bf16.mxu0 %v1104
    %1890 = vmatmul.mubr.bf16.gmra.mrb[0].mxu0 %v1103
    %v1891 = vpop.f32.mrb[0].mxu0
    %v1892 = vadd.f32 %v354, %v1891
    %v1893 = vpop.f32.mrb[0].mxu0
    %v1894 = vpop.f32.mrb[0].mxu0
    %v1895 = vadd.f32 %v354, %v1894
    %v1896 = vpop.f32.mrb[0].mxu0
    %1897 = vmatprep.mubr.bf16.mxu0 %v1109
    %1898 = vmatmul.mubr.bf16.gmra.mrb[0].mxu0 %v1108
    %v1899 = vpop.f32.mrb[0].mxu0
    %v1900 = vadd.f32 %v354, %v1899
    %v1901 = vpop.f32.mrb[0].mxu0
    %v1902 = vpop.f32.mrb[0].mxu0
    %v1903 = vadd.f32 %v354, %v1902
    %v1904 = vpop.f32.mrb[0].mxu0
    %1905 = vmatprep.mubr.bf16.mxu0 %v1114
    %1906 = vmatmul.mubr.bf16.gmra.mrb[0].mxu0 %v1113
    %v1907 = vpop.f32.mrb[0].mxu0
    %v1908 = vadd.f32 %v354, %v1907
    %v1909 = vpop.f32.mrb[0].mxu0
    %v1910 = vpop.f32.mrb[0].mxu0
    %v1911 = vadd.f32 %v354, %v1910
    %v1912 = vpop.f32.mrb[0].mxu0
    %1913 = vmatprep.mubr.bf16.mxu0 %v1119
    %1914 = vmatmul.mubr.bf16.gmra.mrb[0].mxu0 %v1118
    %v1915 = vpop.f32.mrb[0].mxu0
    %v1916 = vadd.f32 %v354, %v1915
    %v1917 = vpop.f32.mrb[0].mxu0
    %v1918 = vpop.f32.mrb[0].mxu0
    %v1919 = vadd.f32 %v354, %v1918
    %v1920 = vpop.f32.mrb[0].mxu0
    %1921 = vmatprep.mubr.bf16.mxu0 %v1124
    %1922 = vmatmul.mubr.bf16.gmra.mrb[0].mxu0 %v1123
    %v1923 = vpop.f32.mrb[0].mxu0
    %v1924 = vadd.f32 %v354, %v1923
    %v1925 = vpop.f32.mrb[0].mxu0
    %v1926 = vpop.f32.mrb[0].mxu0
    %v1927 = vadd.f32 %v354, %v1926
    %v1928 = vpop.f32.mrb[0].mxu0
    %1929 = vmatprep.mubr.bf16.mxu0 %v1129
    %1930 = vmatmul.mubr.bf16.gmra.mrb[0].mxu0 %v1128
    %v1931 = vpop.f32.mrb[0].mxu0
    %v1932 = vadd.f32 %v354, %v1931
    %v1933 = vpop.f32.mrb[0].mxu0
    %v1934 = vpop.f32.mrb[0].mxu0
    %v1935 = vadd.f32 %v354, %v1934
    %v1936 = vpop.f32.mrb[0].mxu0
    %1937 = vdwg.mxu0
    %1938 = vmatprep.subr.bf16.mxu0 0
    %1939 = vmatpush1.bf16.msra.mxu0 %v1441
    %1940 = vmatprep.subr.bf16.mxu0 0
    %1941 = vmatpush1.bf16.msra.mxu0 %v1442
    %1942 = vmatprep.subr.bf16.mxu0 0
    %1943 = vmatpush1.bf16.msra.mxu0 %v1443
    %1944 = vmatprep.subr.bf16.mxu0 0
    %1945 = vmatpush1.bf16.msra.mxu0 %v1444
    %1946 = vmatprep.subr.bf16.mxu0 0
    %1947 = vmatpush1.bf16.msra.mxu0 %v1445
    %1948 = vmatprep.subr.bf16.mxu0 0
    %1949 = vmatpush1.bf16.msra.mxu0 %v1446
    %1950 = vmatprep.subr.bf16.mxu0 0
    %1951 = vmatpush1.bf16.msra.mxu0 %v1447
    %1952 = vmatprep.subr.bf16.mxu0 0
    %1953 = vmatpush1.bf16.msra.mxu0 %v1448
    %1954 = vmatprep.subr.bf16.mxu0 0
    %1955 = vmatpush1.bf16.msra.mxu0 %v1449
    %1956 = vmatprep.subr.bf16.mxu0 0
    %1957 = vmatpush1.bf16.msra.mxu0 %v1450
    %1958 = vmatprep.subr.bf16.mxu0 0
    %1959 = vmatpush1.bf16.msra.mxu0 %v1451
    %1960 = vmatprep.subr.bf16.mxu0 0
    %1961 = vmatpush1.bf16.msra.mxu0 %v1452
    %1962 = vmatprep.subr.bf16.mxu0 0
    %1963 = vmatpush1.bf16.msra.mxu0 %v1453
    %1964 = vmatprep.subr.bf16.mxu0 0
    %1965 = vmatpush1.bf16.msra.mxu0 %v1454
    %1966 = vmatprep.subr.bf16.mxu0 0
    %1967 = vmatpush1.bf16.msra.mxu0 %v1455
    %1968 = vmatprep.subr.bf16.mxu0 0
    %1969 = vmatpush1.bf16.msra.mxu0 %v1456
    %1970 = vmatprep.mubr.bf16.mxu0 %v951
    %1971 = vmatmul.mubr.bf16.gmra.mrb[0].mxu0 %v950
    %v1972 = vpop.f32.mrb[0].mxu0
    %v1973 = vadd.f32 %v1644, %v1972
    %v1974 = vpop.f32.mrb[0].mxu0
    %v1975 = vpop.f32.mrb[0].mxu0
    %v1976 = vadd.f32 %v1647, %v1975
    %v1977 = vpop.f32.mrb[0].mxu0
    %1978 = vmatprep.mubr.bf16.mxu0 %v956
    %1979 = vmatmul.mubr.bf16.gmra.mrb[0].mxu0 %v955
    %v1980 = vpop.f32.mrb[0].mxu0
    %v1981 = vadd.f32 %v1652, %v1980
    %v1982 = vpop.f32.mrb[0].mxu0
    %v1983 = vpop.f32.mrb[0].mxu0
    %v1984 = vadd.f32 %v1655, %v1983
    %v1985 = vpop.f32.mrb[0].mxu0
    %1986 = vmatprep.mubr.bf16.mxu0 %v961
    %1987 = vmatmul.mubr.bf16.gmra.mrb[0].mxu0 %v960
    %v1988 = vpop.f32.mrb[0].mxu0
    %v1989 = vadd.f32 %v1660, %v1988
    %v1990 = vpop.f32.mrb[0].mxu0
    %v1991 = vpop.f32.mrb[0].mxu0
    %v1992 = vadd.f32 %v1663, %v1991
    %v1993 = vpop.f32.mrb[0].mxu0
    %1994 = vmatprep.mubr.bf16.mxu0 %v966
    %1995 = vmatmul.mubr.bf16.gmra.mrb[0].mxu0 %v965
    %v1996 = vpop.f32.mrb[0].mxu0
    %v1997 = vadd.f32 %v1668, %v1996
    %v1998 = vpop.f32.mrb[0].mxu0
    %v1999 = vpop.f32.mrb[0].mxu0
    %v2000 = vadd.f32 %v1671, %v1999
    %v2001 = vpop.f32.mrb[0].mxu0
    %2002 = vmatprep.mubr.bf16.mxu0 %v971
    %2003 = vmatmul.mubr.bf16.gmra.mrb[0].mxu0 %v970
    %v2004 = vpop.f32.mrb[0].mxu0
    %v2005 = vadd.f32 %v1676, %v2004
    %v2006 = vpop.f32.mrb[0].mxu0
    %v2007 = vpop.f32.mrb[0].mxu0
    %v2008 = vadd.f32 %v1679, %v2007
    %v2009 = vpop.f32.mrb[0].mxu0
    %2010 = vmatprep.mubr.bf16.mxu0 %v976
    %2011 = vmatmul.mubr.bf16.gmra.mrb[0].mxu0 %v975
    %v2012 = vpop.f32.mrb[0].mxu0
    %v2013 = vadd.f32 %v1684, %v2012
    %v2014 = vpop.f32.mrb[0].mxu0
    %v2015 = vpop.f32.mrb[0].mxu0
    %v2016 = vadd.f32 %v1687, %v2015
    %v2017 = vpop.f32.mrb[0].mxu0
    %2018 = vmatprep.mubr.bf16.mxu0 %v981
    %2019 = vmatmul.mubr.bf16.gmra.mrb[0].mxu0 %v980
    %v2020 = vpop.f32.mrb[0].mxu0
    %v2021 = vadd.f32 %v1692, %v2020
    %v2022 = vpop.f32.mrb[0].mxu0
    %v2023 = vpop.f32.mrb[0].mxu0
    %v2024 = vadd.f32 %v1695, %v2023
    %v2025 = vpop.f32.mrb[0].mxu0
    %2026 = vmatprep.mubr.bf16.mxu0 %v986
    %2027 = vmatmul.mubr.bf16.gmra.mrb[0].mxu0 %v985
    %v2028 = vpop.f32.mrb[0].mxu0
    %v2029 = vadd.f32 %v1700, %v2028
    %v2030 = vpop.f32.mrb[0].mxu0
    %v2031 = vpop.f32.mrb[0].mxu0
    %v2032 = vadd.f32 %v1703, %v2031
    %v2033 = vpop.f32.mrb[0].mxu0
    %2034 = vmatprep.mubr.bf16.mxu0 %v991
    %2035 = vmatmul.mubr.bf16.gmra.mrb[0].mxu0 %v990
    %v2036 = vpop.f32.mrb[0].mxu0
    %v2037 = vadd.f32 %v1708, %v2036
    %v2038 = vpop.f32.mrb[0].mxu0
    %v2039 = vpop.f32.mrb[0].mxu0
    %v2040 = vadd.f32 %v1711, %v2039
    %v2041 = vpop.f32.mrb[0].mxu0
    %2042 = vmatprep.mubr.bf16.mxu0 %v996
    %2043 = vmatmul.mubr.bf16.gmra.mrb[0].mxu0 %v995
    %v2044 = vpop.f32.mrb[0].mxu0
    %v2045 = vadd.f32 %v1716, %v2044
    %v2046 = vpop.f32.mrb[0].mxu0
    %v2047 = vpop.f32.mrb[0].mxu0
    %v2048 = vadd.f32 %v1719, %v2047
    %v2049 = vpop.f32.mrb[0].mxu0
    %2050 = vmatprep.mubr.bf16.mxu0 %v1001
    %2051 = vmatmul.mubr.bf16.gmra.mrb[0].mxu0 %v1000
    %v2052 = vpop.f32.mrb[0].mxu0
    %v2053 = vadd.f32 %v1724, %v2052
    %v2054 = vpop.f32.mrb[0].mxu0
    %v2055 = vpop.f32.mrb[0].mxu0
    %v2056 = vadd.f32 %v1727, %v2055
    %v2057 = vpop.f32.mrb[0].mxu0
    %2058 = vmatprep.mubr.bf16.mxu0 %v1006
    %2059 = vmatmul.mubr.bf16.gmra.mrb[0].mxu0 %v1005
    %v2060 = vpop.f32.mrb[0].mxu0
    %v2061 = vadd.f32 %v1732, %v2060
    %v2062 = vpop.f32.mrb[0].mxu0
    %v2063 = vpop.f32.mrb[0].mxu0
    %v2064 = vadd.f32 %v1735, %v2063
    %v2065 = vpop.f32.mrb[0].mxu0
    %2066 = vmatprep.mubr.bf16.mxu0 %v1011
    %2067 = vmatmul.mubr.bf16.gmra.mrb[0].mxu0 %v1010
    %v2068 = vpop.f32.mrb[0].mxu0
    %v2069 = vadd.f32 %v1740, %v2068
    %v2070 = vpop.f32.mrb[0].mxu0
    %v2071 = vpop.f32.mrb[0].mxu0
    %v2072 = vadd.f32 %v1743, %v2071
    %v2073 = vpop.f32.mrb[0].mxu0
    %2074 = vmatprep.mubr.bf16.mxu0 %v1016
    %2075 = vmatmul.mubr.bf16.gmra.mrb[0].mxu0 %v1015
    %v2076 = vpop.f32.mrb[0].mxu0
    %v2077 = vadd.f32 %v1748, %v2076
    %v2078 = vpop.f32.mrb[0].mxu0
    %v2079 = vpop.f32.mrb[0].mxu0
    %v2080 = vadd.f32 %v1751, %v2079
    %v2081 = vpop.f32.mrb[0].mxu0
    %2082 = vmatprep.mubr.bf16.mxu0 %v1021
    %2083 = vmatmul.mubr.bf16.gmra.mrb[0].mxu0 %v1020
    %v2084 = vpop.f32.mrb[0].mxu0
    %v2085 = vadd.f32 %v1756, %v2084
    %v2086 = vpop.f32.mrb[0].mxu0
    %v2087 = vpop.f32.mrb[0].mxu0
    %v2088 = vadd.f32 %v1759, %v2087
    %v2089 = vpop.f32.mrb[0].mxu0
    %2090 = vmatprep.mubr.bf16.mxu0 %v1026
    %2091 = vmatmul.mubr.bf16.gmra.mrb[0].mxu0 %v1025
    %v2092 = vpop.f32.mrb[0].mxu0
    %v2093 = vadd.f32 %v1764, %v2092
    %v2094 = vpop.f32.mrb[0].mxu0
    %v2095 = vpop.f32.mrb[0].mxu0
    %v2096 = vadd.f32 %v1767, %v2095
    %v2097 = vpop.f32.mrb[0].mxu0
    %2098 = vmatprep.mubr.bf16.mxu0 %v1031
    %2099 = vmatmul.mubr.bf16.gmra.mrb[0].mxu0 %v1030
    %v2100 = vpop.f32.mrb[0].mxu0
    %v2101 = vadd.f32 %v1772, %v2100
    %v2102 = vpop.f32.mrb[0].mxu0
    %v2103 = vpop.f32.mrb[0].mxu0
    %v2104 = vadd.f32 %v1775, %v2103
    %v2105 = vpop.f32.mrb[0].mxu0
    %2106 = vmatprep.mubr.bf16.mxu0 %v1036
    %2107 = vmatmul.mubr.bf16.gmra.mrb[0].mxu0 %v1035
    %v2108 = vpop.f32.mrb[0].mxu0
    %v2109 = vadd.f32 %v1780, %v2108
    %v2110 = vpop.f32.mrb[0].mxu0
    %v2111 = vpop.f32.mrb[0].mxu0
    %v2112 = vadd.f32 %v1783, %v2111
    %v2113 = vpop.f32.mrb[0].mxu0
    %2114 = vmatprep.mubr.bf16.mxu0 %v1041
    %2115 = vmatmul.mubr.bf16.gmra.mrb[0].mxu0 %v1040
    %v2116 = vpop.f32.mrb[0].mxu0
    %v2117 = vadd.f32 %v1788, %v2116
    %v2118 = vpop.f32.mrb[0].mxu0
    %v2119 = vpop.f32.mrb[0].mxu0
    %v2120 = vadd.f32 %v1791, %v2119
    %v2121 = vpop.f32.mrb[0].mxu0
    %2122 = vmatprep.mubr.bf16.mxu0 %v1046
    %2123 = vmatmul.mubr.bf16.gmra.mrb[0].mxu0 %v1045
    %v2124 = vpop.f32.mrb[0].mxu0
    %v2125 = vadd.f32 %v1796, %v2124
    %v2126 = vpop.f32.mrb[0].mxu0
    %v2127 = vpop.f32.mrb[0].mxu0
    %v2128 = vadd.f32 %v1799, %v2127
    %v2129 = vpop.f32.mrb[0].mxu0
    %2130 = vmatprep.mubr.bf16.mxu0 %v1051
    %2131 = vmatmul.mubr.bf16.gmra.mrb[0].mxu0 %v1050
    %v2132 = vpop.f32.mrb[0].mxu0
    %v2133 = vadd.f32 %v1804, %v2132
    %v2134 = vpop.f32.mrb[0].mxu0
    %v2135 = vpop.f32.mrb[0].mxu0
    %v2136 = vadd.f32 %v1807, %v2135
    %v2137 = vpop.f32.mrb[0].mxu0
    %2138 = vmatprep.mubr.bf16.mxu0 %v1056
    %2139 = vmatmul.mubr.bf16.gmra.mrb[0].mxu0 %v1055
    %v2140 = vpop.f32.mrb[0].mxu0
    %v2141 = vadd.f32 %v1812, %v2140
    %v2142 = vpop.f32.mrb[0].mxu0
    %v2143 = vpop.f32.mrb[0].mxu0
    %v2144 = vadd.f32 %v1815, %v2143
    %v2145 = vpop.f32.mrb[0].mxu0
    %2146 = vmatprep.mubr.bf16.mxu0 %v1061
    %2147 = vmatmul.mubr.bf16.gmra.mrb[0].mxu0 %v1060
    %v2148 = vpop.f32.mrb[0].mxu0
    %v2149 = vadd.f32 %v1820, %v2148
    %v2150 = vpop.f32.mrb[0].mxu0
    %v2151 = vpop.f32.mrb[0].mxu0
    %v2152 = vadd.f32 %v1823, %v2151
    %v2153 = vpop.f32.mrb[0].mxu0
    %2154 = vmatprep.mubr.bf16.mxu0 %v1066
    %2155 = vmatmul.mubr.bf16.gmra.mrb[0].mxu0 %v1065
    %v2156 = vpop.f32.mrb[0].mxu0
    %v2157 = vadd.f32 %v1828, %v2156
    %v2158 = vpop.f32.mrb[0].mxu0
    %v2159 = vpop.f32.mrb[0].mxu0
    %v2160 = vadd.f32 %v1831, %v2159
    %v2161 = vpop.f32.mrb[0].mxu0
    %2162 = vmatprep.mubr.bf16.mxu0 %v1071
    %2163 = vmatmul.mubr.bf16.gmra.mrb[0].mxu0 %v1070
    %v2164 = vpop.f32.mrb[0].mxu0
    %v2165 = vadd.f32 %v1836, %v2164
    %v2166 = vpop.f32.mrb[0].mxu0
    %v2167 = vpop.f32.mrb[0].mxu0
    %v2168 = vadd.f32 %v1839, %v2167
    %v2169 = vpop.f32.mrb[0].mxu0
    %2170 = vmatprep.mubr.bf16.mxu0 %v1076
    %2171 = vmatmul.mubr.bf16.gmra.mrb[0].mxu0 %v1075
    %v2172 = vpop.f32.mrb[0].mxu0
    %v2173 = vadd.f32 %v1844, %v2172
    %v2174 = vpop.f32.mrb[0].mxu0
    %v2175 = vpop.f32.mrb[0].mxu0
    %v2176 = vadd.f32 %v1847, %v2175
    %v2177 = vpop.f32.mrb[0].mxu0
    %2178 = vmatprep.mubr.bf16.mxu0 %v1081
    %2179 = vmatmul.mubr.bf16.gmra.mrb[0].mxu0 %v1080
    %v2180 = vpop.f32.mrb[0].mxu0
    %v2181 = vadd.f32 %v1852, %v2180
    %v2182 = vpop.f32.mrb[0].mxu0
    %v2183 = vpop.f32.mrb[0].mxu0
    %v2184 = vadd.f32 %v1855, %v2183
    %v2185 = vpop.f32.mrb[0].mxu0
    %2186 = vmatprep.mubr.bf16.mxu0 %v1086
    %2187 = vmatmul.mubr.bf16.gmra.mrb[0].mxu0 %v1085
    %v2188 = vpop.f32.mrb[0].mxu0
    %v2189 = vadd.f32 %v1860, %v2188
    %v2190 = vpop.f32.mrb[0].mxu0
    %v2191 = vpop.f32.mrb[0].mxu0
    %v2192 = vadd.f32 %v1863, %v2191
    %v2193 = vpop.f32.mrb[0].mxu0
    %2194 = vmatprep.mubr.bf16.mxu0 %v1091
    %2195 = vmatmul.mubr.bf16.gmra.mrb[0].mxu0 %v1090
    %v2196 = vpop.f32.mrb[0].mxu0
    %v2197 = vadd.f32 %v1868, %v2196
    %v2198 = vpop.f32.mrb[0].mxu0
    %v2199 = vpop.f32.mrb[0].mxu0
    %v2200 = vadd.f32 %v1871, %v2199
    %v2201 = vpop.f32.mrb[0].mxu0
    %2202 = vmatprep.mubr.bf16.mxu0 %v1096
    %2203 = vmatmul.mubr.bf16.gmra.mrb[0].mxu0 %v1095
    %v2204 = vpop.f32.mrb[0].mxu0
    %v2205 = vadd.f32 %v1876, %v2204
    %v2206 = vpop.f32.mrb[0].mxu0
    %v2207 = vpop.f32.mrb[0].mxu0
    %v2208 = vadd.f32 %v1879, %v2207
    %v2209 = vpop.f32.mrb[0].mxu0
    %2210 = vmatprep.mubr.bf16.mxu0 %v1101
    %2211 = vmatmul.mubr.bf16.gmra.mrb[0].mxu0 %v1100
    %v2212 = vpop.f32.mrb[0].mxu0
    %v2213 = vadd.f32 %v1884, %v2212
    %v2214 = vpop.f32.mrb[0].mxu0
    %v2215 = vpop.f32.mrb[0].mxu0
    %v2216 = vadd.f32 %v1887, %v2215
    %v2217 = vpop.f32.mrb[0].mxu0
    %2218 = vmatprep.mubr.bf16.mxu0 %v1106
    %2219 = vmatmul.mubr.bf16.gmra.mrb[0].mxu0 %v1105
    %v2220 = vpop.f32.mrb[0].mxu0
    %v2221 = vadd.f32 %v1892, %v2220
    %v2222 = vpop.f32.mrb[0].mxu0
    %v2223 = vpop.f32.mrb[0].mxu0
    %v2224 = vadd.f32 %v1895, %v2223
    %v2225 = vpop.f32.mrb[0].mxu0
    %2226 = vmatprep.mubr.bf16.mxu0 %v1111
    %2227 = vmatmul.mubr.bf16.gmra.mrb[0].mxu0 %v1110
    %v2228 = vpop.f32.mrb[0].mxu0
    %v2229 = vadd.f32 %v1900, %v2228
    %v2230 = vpop.f32.mrb[0].mxu0
    %v2231 = vpop.f32.mrb[0].mxu0
    %v2232 = vadd.f32 %v1903, %v2231
    %v2233 = vpop.f32.mrb[0].mxu0
    %2234 = vmatprep.mubr.bf16.mxu0 %v1116
    %2235 = vmatmul.mubr.bf16.gmra.mrb[0].mxu0 %v1115
    %v2236 = vpop.f32.mrb[0].mxu0
    %v2237 = vadd.f32 %v1908, %v2236
    %v2238 = vpop.f32.mrb[0].mxu0
    %v2239 = vpop.f32.mrb[0].mxu0
    %v2240 = vadd.f32 %v1911, %v2239
    %v2241 = vpop.f32.mrb[0].mxu0
    %2242 = vmatprep.mubr.bf16.mxu0 %v1121
    %2243 = vmatmul.mubr.bf16.gmra.mrb[0].mxu0 %v1120
    %v2244 = vpop.f32.mrb[0].mxu0
    %v2245 = vadd.f32 %v1916, %v2244
    %v2246 = vpop.f32.mrb[0].mxu0
    %v2247 = vpop.f32.mrb[0].mxu0
    %v2248 = vadd.f32 %v1919, %v2247
    %v2249 = vpop.f32.mrb[0].mxu0
    %2250 = vmatprep.mubr.bf16.mxu0 %v1126
    %2251 = vmatmul.mubr.bf16.gmra.mrb[0].mxu0 %v1125
    %v2252 = vpop.f32.mrb[0].mxu0
    %v2253 = vadd.f32 %v1924, %v2252
    %v2254 = vpop.f32.mrb[0].mxu0
    %v2255 = vpop.f32.mrb[0].mxu0
    %v2256 = vadd.f32 %v1927, %v2255
    %v2257 = vpop.f32.mrb[0].mxu0
    %2258 = vmatprep.mubr.bf16.mxu0 %v1131
    %2259 = vmatmul.mubr.bf16.gmra.mrb[0].mxu0 %v1130
    %v2260 = vpop.f32.mrb[0].mxu0
    %v2261 = vadd.f32 %v1932, %v2260
    %v2262 = vpop.f32.mrb[0].mxu0
    %v2263 = vpop.f32.mrb[0].mxu0
    %v2264 = vadd.f32 %v1935, %v2263
    %v2265 = vpop.f32.mrb[0].mxu0
    %2266 = vdwg.mxu0
    %2267 = vmatprep.subr.bf16.mxu0 0
    %2268 = vmatpush1.bf16.msra.mxu0 %v1457
    %2269 = vmatprep.subr.bf16.mxu0 0
    %2270 = vmatpush1.bf16.msra.mxu0 %v1458
    %2271 = vmatprep.subr.bf16.mxu0 0
    %2272 = vmatpush1.bf16.msra.mxu0 %v1459
    %2273 = vmatprep.subr.bf16.mxu0 0
    %2274 = vmatpush1.bf16.msra.mxu0 %v1460
    %2275 = vmatprep.subr.bf16.mxu0 0
    %2276 = vmatpush1.bf16.msra.mxu0 0
    %2277 = vmatprep.subr.bf16.mxu0 0
    %2278 = vmatpush1.bf16.msra.mxu0 0
    %2279 = vmatprep.subr.bf16.mxu0 0
    %2280 = vmatpush1.bf16.msra.mxu0 0
    %2281 = vmatprep.subr.bf16.mxu0 0
    %2282 = vmatpush1.bf16.msra.mxu0 0
    %2283 = vmatprep.subr.bf16.mxu0 0
    %2284 = vmatpush1.bf16.msra.mxu0 0
    %2285 = vmatprep.subr.bf16.mxu0 0
    %2286 = vmatpush1.bf16.msra.mxu0 0
    %2287 = vmatprep.subr.bf16.mxu0 0
    %2288 = vmatpush1.bf16.msra.mxu0 0
    %2289 = vmatprep.subr.bf16.mxu0 0
    %2290 = vmatpush1.bf16.msra.mxu0 0
    %2291 = vmatprep.subr.bf16.mxu0 0
    %2292 = vmatpush1.bf16.msra.mxu0 0
    %2293 = vmatprep.subr.bf16.mxu0 0
    %2294 = vmatpush1.bf16.msra.mxu0 0
    %2295 = vmatprep.subr.bf16.mxu0 0
    %2296 = vmatpush1.bf16.msra.mxu0 0
    %2297 = vmatprep.subr.bf16.mxu0 0
    %2298 = vmatpush1.bf16.msra.mxu0 0
    %2299 = vmatprep.mubr.bf16.mxu0 0
    %2300 = vmatmul.mubr.bf16.gmra.mrb[0].mxu0 %v1499
    %v2301 = vpop.f32.mrb[0].mxu0
    %v2302 = vadd.f32 %v1973, %v2301
    %v2303 = vpop.f32.mrb[0].mxu0
    %v2304 = vpop.f32.mrb[0].mxu0
    %v2305 = vadd.f32 %v1976, %v2304
    %v2306 = vpop.f32.mrb[0].mxu0
    %2307 = vmatprep.mubr.bf16.mxu0 0
    %2308 = vmatmul.mubr.bf16.gmra.mrb[0].mxu0 %v1502
    %v2309 = vpop.f32.mrb[0].mxu0
    %v2310 = vadd.f32 %v1981, %v2309
    %v2311 = vpop.f32.mrb[0].mxu0
    %v2312 = vpop.f32.mrb[0].mxu0
    %v2313 = vadd.f32 %v1984, %v2312
    %v2314 = vpop.f32.mrb[0].mxu0
    %2315 = vmatprep.mubr.bf16.mxu0 0
    %2316 = vmatmul.mubr.bf16.gmra.mrb[0].mxu0 %v1505
    %v2317 = vpop.f32.mrb[0].mxu0
    %v2318 = vadd.f32 %v1989, %v2317
    %v2319 = vpop.f32.mrb[0].mxu0
    %v2320 = vpop.f32.mrb[0].mxu0
    %v2321 = vadd.f32 %v1992, %v2320
    %v2322 = vpop.f32.mrb[0].mxu0
    %2323 = vmatprep.mubr.bf16.mxu0 0
    %2324 = vmatmul.mubr.bf16.gmra.mrb[0].mxu0 %v1508
    %v2325 = vpop.f32.mrb[0].mxu0
    %v2326 = vadd.f32 %v1997, %v2325
    %v2327 = vpop.f32.mrb[0].mxu0
    %v2328 = vpop.f32.mrb[0].mxu0
    %v2329 = vadd.f32 %v2000, %v2328
    %v2330 = vpop.f32.mrb[0].mxu0
    %2331 = vmatprep.mubr.bf16.mxu0 0
    %2332 = vmatmul.mubr.bf16.gmra.mrb[0].mxu0 %v1511
    %v2333 = vpop.f32.mrb[0].mxu0
    %v2334 = vadd.f32 %v2005, %v2333
    %v2335 = vpop.f32.mrb[0].mxu0
    %v2336 = vpop.f32.mrb[0].mxu0
    %v2337 = vadd.f32 %v2008, %v2336
    %v2338 = vpop.f32.mrb[0].mxu0
    %2339 = vmatprep.mubr.bf16.mxu0 0
    %2340 = vmatmul.mubr.bf16.gmra.mrb[0].mxu0 %v1514
    %v2341 = vpop.f32.mrb[0].mxu0
    %v2342 = vadd.f32 %v2013, %v2341
    %v2343 = vpop.f32.mrb[0].mxu0
    %v2344 = vpop.f32.mrb[0].mxu0
    %v2345 = vadd.f32 %v2016, %v2344
    %v2346 = vpop.f32.mrb[0].mxu0
    %2347 = vmatprep.mubr.bf16.mxu0 0
    %2348 = vmatmul.mubr.bf16.gmra.mrb[0].mxu0 %v1517
    %v2349 = vpop.f32.mrb[0].mxu0
    %v2350 = vadd.f32 %v2021, %v2349
    %v2351 = vpop.f32.mrb[0].mxu0
    %v2352 = vpop.f32.mrb[0].mxu0
    %v2353 = vadd.f32 %v2024, %v2352
    %v2354 = vpop.f32.mrb[0].mxu0
    %2355 = vmatprep.mubr.bf16.mxu0 0
    %2356 = vmatmul.mubr.bf16.gmra.mrb[0].mxu0 %v1520
    %v2357 = vpop.f32.mrb[0].mxu0
    %v2358 = vadd.f32 %v2029, %v2357
    %v2359 = vpop.f32.mrb[0].mxu0
    %v2360 = vpop.f32.mrb[0].mxu0
    %v2361 = vadd.f32 %v2032, %v2360
    %v2362 = vpop.f32.mrb[0].mxu0
    %2363 = vmatprep.mubr.bf16.mxu0 0
    %2364 = vmatmul.mubr.bf16.gmra.mrb[0].mxu0 %v1523
    %v2365 = vpop.f32.mrb[0].mxu0
    %v2366 = vadd.f32 %v2037, %v2365
    %v2367 = vpop.f32.mrb[0].mxu0
    %v2368 = vpop.f32.mrb[0].mxu0
    %v2369 = vadd.f32 %v2040, %v2368
    %v2370 = vpop.f32.mrb[0].mxu0
    %2371 = vmatprep.mubr.bf16.mxu0 0
    %2372 = vmatmul.mubr.bf16.gmra.mrb[0].mxu0 %v1526
    %v2373 = vpop.f32.mrb[0].mxu0
    %v2374 = vadd.f32 %v2045, %v2373
    %v2375 = vpop.f32.mrb[0].mxu0
    %v2376 = vpop.f32.mrb[0].mxu0
    %v2377 = vadd.f32 %v2048, %v2376
    %v2378 = vpop.f32.mrb[0].mxu0
    %2379 = vmatprep.mubr.bf16.mxu0 0
    %2380 = vmatmul.mubr.bf16.gmra.mrb[0].mxu0 %v1529
    %v2381 = vpop.f32.mrb[0].mxu0
    %v2382 = vadd.f32 %v2053, %v2381
    %v2383 = vpop.f32.mrb[0].mxu0
    %v2384 = vpop.f32.mrb[0].mxu0
    %v2385 = vadd.f32 %v2056, %v2384
    %v2386 = vpop.f32.mrb[0].mxu0
    %2387 = vmatprep.mubr.bf16.mxu0 0
    %2388 = vmatmul.mubr.bf16.gmra.mrb[0].mxu0 %v1532
    %v2389 = vpop.f32.mrb[0].mxu0
    %v2390 = vadd.f32 %v2061, %v2389
    %v2391 = vpop.f32.mrb[0].mxu0
    %v2392 = vpop.f32.mrb[0].mxu0
    %v2393 = vadd.f32 %v2064, %v2392
    %v2394 = vpop.f32.mrb[0].mxu0
    %2395 = vmatprep.mubr.bf16.mxu0 0
    %2396 = vmatmul.mubr.bf16.gmra.mrb[0].mxu0 %v1535
    %v2397 = vpop.f32.mrb[0].mxu0
    %v2398 = vadd.f32 %v2069, %v2397
    %v2399 = vpop.f32.mrb[0].mxu0
    %v2400 = vpop.f32.mrb[0].mxu0
    %v2401 = vadd.f32 %v2072, %v2400
    %v2402 = vpop.f32.mrb[0].mxu0
    %2403 = vmatprep.mubr.bf16.mxu0 0
    %2404 = vmatmul.mubr.bf16.gmra.mrb[0].mxu0 %v1538
    %v2405 = vpop.f32.mrb[0].mxu0
    %v2406 = vadd.f32 %v2077, %v2405
    %v2407 = vpop.f32.mrb[0].mxu0
    %v2408 = vpop.f32.mrb[0].mxu0
    %v2409 = vadd.f32 %v2080, %v2408
    %v2410 = vpop.f32.mrb[0].mxu0
    %2411 = vmatprep.mubr.bf16.mxu0 0
    %2412 = vmatmul.mubr.bf16.gmra.mrb[0].mxu0 %v1541
    %v2413 = vpop.f32.mrb[0].mxu0
    %v2414 = vadd.f32 %v2085, %v2413
    %v2415 = vpop.f32.mrb[0].mxu0
    %v2416 = vpop.f32.mrb[0].mxu0
    %v2417 = vadd.f32 %v2088, %v2416
    %v2418 = vpop.f32.mrb[0].mxu0
    %2419 = vmatprep.mubr.bf16.mxu0 0
    %2420 = vmatmul.mubr.bf16.gmra.mrb[0].mxu0 %v1544
    %v2421 = vpop.f32.mrb[0].mxu0
    %v2422 = vadd.f32 %v2093, %v2421
    %v2423 = vpop.f32.mrb[0].mxu0
    %v2424 = vpop.f32.mrb[0].mxu0
    %v2425 = vadd.f32 %v2096, %v2424
    %v2426 = vpop.f32.mrb[0].mxu0
    %2427 = vmatprep.mubr.bf16.mxu0 0
    %2428 = vmatmul.mubr.bf16.gmra.mrb[0].mxu0 %v1547
    %v2429 = vpop.f32.mrb[0].mxu0
    %v2430 = vadd.f32 %v2101, %v2429
    %v2431 = vpop.f32.mrb[0].mxu0
    %v2432 = vpop.f32.mrb[0].mxu0
    %v2433 = vadd.f32 %v2104, %v2432
    %v2434 = vpop.f32.mrb[0].mxu0
    %2435 = vmatprep.mubr.bf16.mxu0 0
    %2436 = vmatmul.mubr.bf16.gmra.mrb[0].mxu0 %v1550
    %v2437 = vpop.f32.mrb[0].mxu0
    %v2438 = vadd.f32 %v2109, %v2437
    %v2439 = vpop.f32.mrb[0].mxu0
    %v2440 = vpop.f32.mrb[0].mxu0
    %v2441 = vadd.f32 %v2112, %v2440
    %v2442 = vpop.f32.mrb[0].mxu0
    %2443 = vmatprep.mubr.bf16.mxu0 0
    %2444 = vmatmul.mubr.bf16.gmra.mrb[0].mxu0 %v1553
    %v2445 = vpop.f32.mrb[0].mxu0
    %v2446 = vadd.f32 %v2117, %v2445
    %v2447 = vpop.f32.mrb[0].mxu0
    %v2448 = vpop.f32.mrb[0].mxu0
    %v2449 = vadd.f32 %v2120, %v2448
    %v2450 = vpop.f32.mrb[0].mxu0
    %2451 = vmatprep.mubr.bf16.mxu0 0
    %2452 = vmatmul.mubr.bf16.gmra.mrb[0].mxu0 %v1556
    %v2453 = vpop.f32.mrb[0].mxu0
    %v2454 = vadd.f32 %v2125, %v2453
    %v2455 = vpop.f32.mrb[0].mxu0
    %v2456 = vpop.f32.mrb[0].mxu0
    %v2457 = vadd.f32 %v2128, %v2456
    %v2458 = vpop.f32.mrb[0].mxu0
    %2459 = vmatprep.mubr.bf16.mxu0 0
    %2460 = vmatmul.mubr.bf16.gmra.mrb[0].mxu0 %v1559
    %v2461 = vpop.f32.mrb[0].mxu0
    %v2462 = vadd.f32 %v2133, %v2461
    %v2463 = vpop.f32.mrb[0].mxu0
    %v2464 = vpop.f32.mrb[0].mxu0
    %v2465 = vadd.f32 %v2136, %v2464
    %v2466 = vpop.f32.mrb[0].mxu0
    %2467 = vmatprep.mubr.bf16.mxu0 0
    %2468 = vmatmul.mubr.bf16.gmra.mrb[0].mxu0 %v1562
    %v2469 = vpop.f32.mrb[0].mxu0
    %v2470 = vadd.f32 %v2141, %v2469
    %v2471 = vpop.f32.mrb[0].mxu0
    %v2472 = vpop.f32.mrb[0].mxu0
    %v2473 = vadd.f32 %v2144, %v2472
    %v2474 = vpop.f32.mrb[0].mxu0
    %2475 = vmatprep.mubr.bf16.mxu0 0
    %2476 = vmatmul.mubr.bf16.gmra.mrb[0].mxu0 %v1565
    %v2477 = vpop.f32.mrb[0].mxu0
    %v2478 = vadd.f32 %v2149, %v2477
    %v2479 = vpop.f32.mrb[0].mxu0
    %v2480 = vpop.f32.mrb[0].mxu0
    %v2481 = vadd.f32 %v2152, %v2480
    %v2482 = vpop.f32.mrb[0].mxu0
    %2483 = vmatprep.mubr.bf16.mxu0 0
    %2484 = vmatmul.mubr.bf16.gmra.mrb[0].mxu0 %v1568
    %v2485 = vpop.f32.mrb[0].mxu0
    %v2486 = vadd.f32 %v2157, %v2485
    %v2487 = vpop.f32.mrb[0].mxu0
    %v2488 = vpop.f32.mrb[0].mxu0
    %v2489 = vadd.f32 %v2160, %v2488
    %v2490 = vpop.f32.mrb[0].mxu0
    %2491 = vmatprep.mubr.bf16.mxu0 0
    %2492 = vmatmul.mubr.bf16.gmra.mrb[0].mxu0 %v1571
    %v2493 = vpop.f32.mrb[0].mxu0
    %v2494 = vadd.f32 %v2165, %v2493
    %v2495 = vpop.f32.mrb[0].mxu0
    %v2496 = vpop.f32.mrb[0].mxu0
    %v2497 = vadd.f32 %v2168, %v2496
    %v2498 = vpop.f32.mrb[0].mxu0
    %2499 = vmatprep.mubr.bf16.mxu0 0
    %2500 = vmatmul.mubr.bf16.gmra.mrb[0].mxu0 %v1574
    %v2501 = vpop.f32.mrb[0].mxu0
    %v2502 = vadd.f32 %v2173, %v2501
    %v2503 = vpop.f32.mrb[0].mxu0
    %v2504 = vpop.f32.mrb[0].mxu0
    %v2505 = vadd.f32 %v2176, %v2504
    %v2506 = vpop.f32.mrb[0].mxu0
    %2507 = vmatprep.mubr.bf16.mxu0 0
    %2508 = vmatmul.mubr.bf16.gmra.mrb[0].mxu0 %v1577
    %v2509 = vpop.f32.mrb[0].mxu0
    %v2510 = vadd.f32 %v2181, %v2509
    %v2511 = vpop.f32.mrb[0].mxu0
    %v2512 = vpop.f32.mrb[0].mxu0
    %v2513 = vadd.f32 %v2184, %v2512
    %v2514 = vpop.f32.mrb[0].mxu0
    %2515 = vmatprep.mubr.bf16.mxu0 0
    %2516 = vmatmul.mubr.bf16.gmra.mrb[0].mxu0 %v1580
    %v2517 = vpop.f32.mrb[0].mxu0
    %v2518 = vadd.f32 %v2189, %v2517
    %v2519 = vpop.f32.mrb[0].mxu0
    %v2520 = vpop.f32.mrb[0].mxu0
    %v2521 = vadd.f32 %v2192, %v2520
    %v2522 = vpop.f32.mrb[0].mxu0
    %2523 = vmatprep.mubr.bf16.mxu0 0
    %2524 = vmatmul.mubr.bf16.gmra.mrb[0].mxu0 %v1583
    %v2525 = vpop.f32.mrb[0].mxu0
    %v2526 = vadd.f32 %v2197, %v2525
    %v2527 = vpop.f32.mrb[0].mxu0
    %v2528 = vpop.f32.mrb[0].mxu0
    %v2529 = vadd.f32 %v2200, %v2528
    %v2530 = vpop.f32.mrb[0].mxu0
    %2531 = vmatprep.mubr.bf16.mxu0 0
    %2532 = vmatmul.mubr.bf16.gmra.mrb[0].mxu0 %v1586
    %v2533 = vpop.f32.mrb[0].mxu0
    %v2534 = vadd.f32 %v2205, %v2533
    %v2535 = vpop.f32.mrb[0].mxu0
    %v2536 = vpop.f32.mrb[0].mxu0
    %v2537 = vadd.f32 %v2208, %v2536
    %v2538 = vpop.f32.mrb[0].mxu0
    %2539 = vmatprep.mubr.bf16.mxu0 0
    %2540 = vmatmul.mubr.bf16.gmra.mrb[0].mxu0 %v1589
    %v2541 = vpop.f32.mrb[0].mxu0
    %v2542 = vadd.f32 %v2213, %v2541
    %v2543 = vpop.f32.mrb[0].mxu0
    %v2544 = vpop.f32.mrb[0].mxu0
    %v2545 = vadd.f32 %v2216, %v2544
    %v2546 = vpop.f32.mrb[0].mxu0
    %2547 = vmatprep.mubr.bf16.mxu0 0
    %2548 = vmatmul.mubr.bf16.gmra.mrb[0].mxu0 %v1592
    %v2549 = vpop.f32.mrb[0].mxu0
    %v2550 = vadd.f32 %v2221, %v2549
    %v2551 = vpop.f32.mrb[0].mxu0
    %v2552 = vpop.f32.mrb[0].mxu0
    %v2553 = vadd.f32 %v2224, %v2552
    %v2554 = vpop.f32.mrb[0].mxu0
    %2555 = vmatprep.mubr.bf16.mxu0 0
    %2556 = vmatmul.mubr.bf16.gmra.mrb[0].mxu0 %v1595
    %v2557 = vpop.f32.mrb[0].mxu0
    %v2558 = vadd.f32 %v2229, %v2557
    %v2559 = vpop.f32.mrb[0].mxu0
    %v2560 = vpop.f32.mrb[0].mxu0
    %v2561 = vadd.f32 %v2232, %v2560
    %v2562 = vpop.f32.mrb[0].mxu0
    %2563 = vmatprep.mubr.bf16.mxu0 0
    %2564 = vmatmul.mubr.bf16.gmra.mrb[0].mxu0 %v1598
    %v2565 = vpop.f32.mrb[0].mxu0
    %v2566 = vadd.f32 %v2237, %v2565
    %v2567 = vpop.f32.mrb[0].mxu0
    %v2568 = vpop.f32.mrb[0].mxu0
    %v2569 = vadd.f32 %v2240, %v2568
    %v2570 = vpop.f32.mrb[0].mxu0
    %2571 = vmatprep.mubr.bf16.mxu0 0
    %2572 = vmatmul.mubr.bf16.gmra.mrb[0].mxu0 %v1601
    %v2573 = vpop.f32.mrb[0].mxu0
    %v2574 = vadd.f32 %v2245, %v2573
    %v2575 = vpop.f32.mrb[0].mxu0
    %v2576 = vpop.f32.mrb[0].mxu0
    %v2577 = vadd.f32 %v2248, %v2576
    %v2578 = vpop.f32.mrb[0].mxu0
    %2579 = vmatprep.mubr.bf16.mxu0 0
    %2580 = vmatmul.mubr.bf16.gmra.mrb[0].mxu0 %v1604
    %v2581 = vpop.f32.mrb[0].mxu0
    %v2582 = vadd.f32 %v2253, %v2581
    %v2583 = vpop.f32.mrb[0].mxu0
    %v2584 = vpop.f32.mrb[0].mxu0
    %v2585 = vadd.f32 %v2256, %v2584
    %v2586 = vpop.f32.mrb[0].mxu0
    %2587 = vmatprep.mubr.bf16.mxu0 0
    %2588 = vmatmul.mubr.bf16.gmra.mrb[0].mxu0 %v1607
    %v2589 = vpop.f32.mrb[0].mxu0
    %v2590 = vadd.f32 %v2261, %v2589
    %v2591 = vpop.f32.mrb[0].mxu0
    %v2592 = vpop.f32.mrb[0].mxu0
    %v2593 = vadd.f32 %v2264, %v2592
    %v2594 = vpop.f32.mrb[0].mxu0
    %2595 = vdwg.mxu0
    %v2596 = vmax.f32 %v2302, 0.0
    %v2597 = vmax.f32 %v2305, 0.0
    %v2598 = vmax.f32 %v2310, 0.0
    %v2599 = vmax.f32 %v2313, 0.0
    %v2600 = vmax.f32 %v2318, 0.0
    %v2601 = vmax.f32 %v2321, 0.0
    %v2602 = vmax.f32 %v2326, 0.0
    %v2603 = vmax.f32 %v2329, 0.0
    %v2604 = vmax.f32 %v2334, 0.0
    %v2605 = vmax.f32 %v2337, 0.0
    %v2606 = vmax.f32 %v2342, 0.0
    %v2607 = vmax.f32 %v2345, 0.0
    %v2608 = vmax.f32 %v2350, 0.0
    %v2609 = vmax.f32 %v2353, 0.0
    %v2610 = vmax.f32 %v2358, 0.0
    %v2611 = vmax.f32 %v2361, 0.0
    %v2612 = vmax.f32 %v2366, 0.0
    %v2613 = vmax.f32 %v2369, 0.0
    %v2614 = vmax.f32 %v2374, 0.0
    %v2615 = vmax.f32 %v2377, 0.0
    %v2616 = vmax.f32 %v2382, 0.0
    %v2617 = vmax.f32 %v2385, 0.0
    %v2618 = vmax.f32 %v2390, 0.0
    %v2619 = vmax.f32 %v2393, 0.0
    %v2620 = vmax.f32 %v2398, 0.0
    %v2621 = vmax.f32 %v2401, 0.0
    %v2622 = vmax.f32 %v2406, 0.0
    %v2623 = vmax.f32 %v2409, 0.0
    %v2624 = vmax.f32 %v2414, 0.0
    %v2625 = vmax.f32 %v2417, 0.0
    %v2626 = vmax.f32 %v2422, 0.0
    %v2627 = vmax.f32 %v2425, 0.0
    %v2628 = vmax.f32 %v2430, 0.0
    %v2629 = vmax.f32 %v2433, 0.0
    %v2630 = vmax.f32 %v2438, 0.0
    %v2631 = vmax.f32 %v2441, 0.0
    %v2632 = vmax.f32 %v2446, 0.0
    %v2633 = vmax.f32 %v2449, 0.0
    %v2634 = vmax.f32 %v2454, 0.0
    %v2635 = vmax.f32 %v2457, 0.0
    %v2636 = vmax.f32 %v2462, 0.0
    %v2637 = vmax.f32 %v2465, 0.0
    %v2638 = vmax.f32 %v2470, 0.0
    %v2639 = vmax.f32 %v2473, 0.0
    %v2640 = vmax.f32 %v2478, 0.0
    %v2641 = vmax.f32 %v2481, 0.0
    %v2642 = vmax.f32 %v2486, 0.0
    %v2643 = vmax.f32 %v2489, 0.0
    %v2644 = vmax.f32 %v2494, 0.0
    %v2645 = vmax.f32 %v2497, 0.0
    %v2646 = vmax.f32 %v2502, 0.0
    %v2647 = vmax.f32 %v2505, 0.0
    %v2648 = vmax.f32 %v2510, 0.0
    %v2649 = vmax.f32 %v2513, 0.0
    %v2650 = vmax.f32 %v2518, 0.0
    %v2651 = vmax.f32 %v2521, 0.0
    %v2652 = vmax.f32 %v2526, 0.0
    %v2653 = vmax.f32 %v2529, 0.0
    %v2654 = vmax.f32 %v2534, 0.0
    %v2655 = vmax.f32 %v2537, 0.0
    %v2656 = vmax.f32 %v2542, 0.0
    %v2657 = vmax.f32 %v2545, 0.0
    %v2658 = vmax.f32 %v2550, 0.0
    %v2659 = vmax.f32 %v2553, 0.0
    %v2660 = vmax.f32 %v2558, 0.0
    %v2661 = vmax.f32 %v2561, 0.0
    %v2662 = vmax.f32 %v2566, 0.0
    %v2663 = vmax.f32 %v2569, 0.0
    %v2664 = vmax.f32 %v2574, 0.0
    %v2665 = vmax.f32 %v2577, 0.0
    %v2666 = vmax.f32 %v2582, 0.0
    %v2667 = vmax.f32 %v2585, 0.0
    %v2668 = vmax.f32 %v2590, 0.0
    %v2669 = vmax.f32 %v2593, 0.0
    %v2670 = vpack.c.bf16 %v2597, %v2596
    %v2671 = vpack.c.bf16 %v2599, %v2598
    %v2672 = vpack.c.bf16 %v2601, %v2600
    %v2673 = vpack.c.bf16 %v2603, %v2602
    %v2674 = vpack.c.bf16 %v2605, %v2604
    %v2675 = vpack.c.bf16 %v2607, %v2606
    %v2676 = vpack.c.bf16 %v2609, %v2608
    %v2677 = vpack.c.bf16 %v2611, %v2610
    %v2678 = vpack.c.bf16 %v2613, %v2612
    %v2679 = vpack.c.bf16 %v2615, %v2614
    %v2680 = vpack.c.bf16 %v2617, %v2616
    %v2681 = vpack.c.bf16 %v2619, %v2618
    %v2682 = vpack.c.bf16 %v2621, %v2620
    %v2683 = vpack.c.bf16 %v2623, %v2622
    %v2684 = vpack.c.bf16 %v2625, %v2624
    %v2685 = vpack.c.bf16 %v2627, %v2626
    %v2686 = vpack.c.bf16 %v2629, %v2628
    %v2687 = vpack.c.bf16 %v2631, %v2630
    %v2688 = vpack.c.bf16 %v2633, %v2632
    %v2689 = vpack.c.bf16 %v2635, %v2634
    %v2690 = vpack.c.bf16 %v2637, %v2636
    %v2691 = vpack.c.bf16 %v2639, %v2638
    %v2692 = vpack.c.bf16 %v2641, %v2640
    %v2693 = vpack.c.bf16 %v2643, %v2642
    %v2694 = vpack.c.bf16 %v2645, %v2644
    %v2695 = vpack.c.bf16 %v2647, %v2646
    %v2696 = vpack.c.bf16 %v2649, %v2648
    %v2697 = vpack.c.bf16 %v2651, %v2650
    %v2698 = vpack.c.bf16 %v2653, %v2652
    %v2699 = vpack.c.bf16 %v2655, %v2654
    %v2700 = vpack.c.bf16 %v2657, %v2656
    %v2701 = vpack.c.bf16 %v2659, %v2658
    %v2702 = vpack.c.bf16 %v2661, %v2660
    %v2703 = vpack.c.bf16 %v2663, %v2662
    %v2704 = vpack.c.bf16 %v2665, %v2664
    %v2705 = vpack.c.bf16 %v2667, %v2666
    %v2706 = vpack.c.bf16 %v2669, %v2668
    %v2744 = vunpack.c.l.b16 %v2670
    %v2745 = vunpack.c.h.b16 %v2670
    %v2746 = vunpack.c.l.b16 %v2671
    %v2747 = vunpack.c.h.b16 %v2671
    %v2748 = vunpack.c.l.b16 %v2672
    %v2749 = vunpack.c.h.b16 %v2672
    %v2750 = vunpack.c.l.b16 %v2673
    %v2751 = vunpack.c.h.b16 %v2673
    %v2752 = vunpack.c.l.b16 %v2674
    %v2753 = vunpack.c.h.b16 %v2674
    %v2754 = vunpack.c.l.b16 %v2675
    %v2755 = vunpack.c.h.b16 %v2675
    %v2756 = vunpack.c.l.b16 %v2676
    %v2757 = vunpack.c.h.b16 %v2676
    %v2758 = vunpack.c.l.b16 %v2677
    %v2759 = vunpack.c.h.b16 %v2677
    %v2760 = vunpack.c.l.b16 %v2678
    %v2761 = vunpack.c.h.b16 %v2678
    %v2762 = vunpack.c.l.b16 %v2679
    %v2763 = vunpack.c.h.b16 %v2679
    %v2764 = vunpack.c.l.b16 %v2680
    %v2765 = vunpack.c.h.b16 %v2680
    %v2766 = vunpack.c.l.b16 %v2681
    %v2767 = vunpack.c.h.b16 %v2681
    %v2768 = vunpack.c.l.b16 %v2682
    %v2769 = vunpack.c.h.b16 %v2682
    %v2770 = vunpack.c.l.b16 %v2683
    %v2771 = vunpack.c.h.b16 %v2683
    %v2772 = vunpack.c.l.b16 %v2684
    %v2773 = vunpack.c.h.b16 %v2684
    %v2774 = vunpack.c.l.b16 %v2685
    %v2775 = vunpack.c.h.b16 %v2685
    %v2776 = vunpack.c.l.b16 %v2686
    %v2777 = vunpack.c.h.b16 %v2686
    %v2778 = vunpack.c.l.b16 %v2687
    %v2779 = vunpack.c.h.b16 %v2687
    %v2780 = vunpack.c.l.b16 %v2688
    %v2781 = vunpack.c.h.b16 %v2688
    %v2782 = vunpack.c.l.b16 %v2689
    %v2783 = vunpack.c.h.b16 %v2689
    %v2784 = vunpack.c.l.b16 %v2690
    %v2785 = vunpack.c.h.b16 %v2690
    %v2786 = vunpack.c.l.b16 %v2691
    %v2787 = vunpack.c.h.b16 %v2691
    %v2788 = vunpack.c.l.b16 %v2692
    %v2789 = vunpack.c.h.b16 %v2692
    %v2790 = vunpack.c.l.b16 %v2693
    %v2791 = vunpack.c.h.b16 %v2693
    %v2792 = vunpack.c.l.b16 %v2694
    %v2793 = vunpack.c.h.b16 %v2694
    %v2794 = vunpack.c.l.b16 %v2695
    %v2795 = vunpack.c.h.b16 %v2695
    %v2796 = vunpack.c.l.b16 %v2696
    %v2797 = vunpack.c.h.b16 %v2696
    %v2798 = vunpack.c.l.b16 %v2697
    %v2799 = vunpack.c.h.b16 %v2697
    %v2800 = vunpack.c.l.b16 %v2698
    %v2801 = vunpack.c.h.b16 %v2698
    %v2802 = vunpack.c.l.b16 %v2699
    %v2803 = vunpack.c.h.b16 %v2699
    %v2804 = vunpack.c.l.b16 %v2700
    %v2805 = vunpack.c.h.b16 %v2700
    %v2806 = vunpack.c.l.b16 %v2701
    %v2807 = vunpack.c.h.b16 %v2701
    %v2808 = vunpack.c.l.b16 %v2702
    %v2809 = vunpack.c.h.b16 %v2702
    %v2810 = vunpack.c.l.b16 %v2703
    %v2811 = vunpack.c.h.b16 %v2703
    %v2812 = vunpack.c.l.b16 %v2704
    %v2813 = vunpack.c.h.b16 %v2704
    %v2814 = vunpack.c.l.b16 %v2705
    %v2815 = vunpack.c.h.b16 %v2705
    %v2816 = vunpack.c.l.b16 %v2706
    %v2817 = vunpack.c.h.b16 %v2706
    %v2818 = vpack.c.b16 %v2744, %v2744
    %v2819 = vpack.c.b16 %v2745, %v2745
    %v2820 = vpack.c.b16 %v2746, %v2746
    %v2821 = vpack.c.b16 %v2747, %v2747
    %v2822 = vpack.c.b16 %v2748, %v2748
    %v2823 = vpack.c.b16 %v2749, %v2749
    %v2824 = vpack.c.b16 %v2750, %v2750
    %v2825 = vpack.c.b16 %v2751, %v2751
    %v2826 = vpack.c.b16 %v2752, %v2752
    %v2827 = vpack.c.b16 %v2753, %v2753
    %v2828 = vpack.c.b16 %v2754, %v2754
    %v2829 = vpack.c.b16 %v2755, %v2755
    %v2830 = vpack.c.b16 %v2756, %v2756
    %v2831 = vpack.c.b16 %v2757, %v2757
    %v2832 = vpack.c.b16 %v2758, %v2758
    %v2833 = vpack.c.b16 %v2759, %v2759
    %v2834 = vpack.c.b16 %v2760, %v2760
    %v2835 = vpack.c.b16 %v2761, %v2761
    %v2836 = vpack.c.b16 %v2762, %v2762
    %v2837 = vpack.c.b16 %v2763, %v2763
    %v2838 = vpack.c.b16 %v2764, %v2764
    %v2839 = vpack.c.b16 %v2765, %v2765
    %v2840 = vpack.c.b16 %v2766, %v2766
    %v2841 = vpack.c.b16 %v2767, %v2767
    %v2842 = vpack.c.b16 %v2768, %v2768
    %v2843 = vpack.c.b16 %v2769, %v2769
    %v2844 = vpack.c.b16 %v2770, %v2770
    %v2845 = vpack.c.b16 %v2771, %v2771
    %v2846 = vpack.c.b16 %v2772, %v2772
    %v2847 = vpack.c.b16 %v2773, %v2773
    %v2848 = vpack.c.b16 %v2774, %v2774
    %v2849 = vpack.c.b16 %v2775, %v2775
    %v2850 = vpack.c.b16 %v2776, %v2776
    %v2851 = vpack.c.b16 %v2777, %v2777
    %v2852 = vpack.c.b16 %v2778, %v2778
    %v2853 = vpack.c.b16 %v2779, %v2779
    %v2854 = vpack.c.b16 %v2780, %v2780
    %v2855 = vpack.c.b16 %v2781, %v2781
    %v2856 = vpack.c.b16 %v2782, %v2782
    %v2857 = vpack.c.b16 %v2783, %v2783
    %v2858 = vpack.c.b16 %v2784, %v2784
    %v2859 = vpack.c.b16 %v2785, %v2785
    %v2860 = vpack.c.b16 %v2786, %v2786
    %v2861 = vpack.c.b16 %v2787, %v2787
    %v2862 = vpack.c.b16 %v2788, %v2788
    %v2863 = vpack.c.b16 %v2789, %v2789
    %v2864 = vpack.c.b16 %v2790, %v2790
    %v2865 = vpack.c.b16 %v2791, %v2791
    %v2866 = vpack.c.b16 %v2792, %v2792
    %v2867 = vpack.c.b16 %v2793, %v2793
    %v2868 = vpack.c.b16 %v2794, %v2794
    %v2869 = vpack.c.b16 %v2795, %v2795
    %v2870 = vpack.c.b16 %v2796, %v2796
    %v2871 = vpack.c.b16 %v2797, %v2797
    %v2872 = vpack.c.b16 %v2798, %v2798
    %v2873 = vpack.c.b16 %v2799, %v2799
    %v2874 = vpack.c.b16 %v2800, %v2800
    %v2875 = vpack.c.b16 %v2801, %v2801
    %v2876 = vpack.c.b16 %v2802, %v2802
    %v2877 = vpack.c.b16 %v2803, %v2803
    %v2878 = vpack.c.b16 %v2804, %v2804
    %v2879 = vpack.c.b16 %v2805, %v2805
    %v2880 = vpack.c.b16 %v2806, %v2806
    %v2881 = vpack.c.b16 %v2807, %v2807
    %v2882 = vpack.c.b16 %v2808, %v2808
    %v2883 = vpack.c.b16 %v2809, %v2809
    %v2884 = vpack.c.b16 %v2810, %v2810
    %v2885 = vpack.c.b16 %v2811, %v2811
    %v2886 = vpack.c.b16 %v2812, %v2812
    %v2887 = vpack.c.b16 %v2813, %v2813
    %v2888 = vpack.c.b16 %v2814, %v2814
    %v2889 = vpack.c.b16 %v2815, %v2815
    %v2890 = vpack.c.b16 %v2816, %v2816
    %v2891 = vpack.c.b16 %v2817, %v2817
    %2966 = vst [vmem:[#allocation8] sm:$0xf] %v2818
    %2967 = vst [vmem:[#allocation8 + $0x4] sm:$0xf] %v2819
    %2968 = vst [vmem:[#allocation8 + $0x8] sm:$0xf] %v2820
    %2969 = vst [vmem:[#allocation8 + $0xc] sm:$0xf] %v2821
    %2970 = vst [vmem:[#allocation8 + $0x10] sm:$0xf] %v2822
    %2971 = vst [vmem:[#allocation8 + $0x14] sm:$0xf] %v2823
    %2972 = vst [vmem:[#allocation8 + $0x18] sm:$0xf] %v2824
    %2973 = vst [vmem:[#allocation8 + $0x1c] sm:$0xf] %v2825
    %2974 = vst [vmem:[#allocation8 + $0x20] sm:$0xf] %v2826
    %2975 = vst [vmem:[#allocation8 + $0x24] sm:$0xf] %v2827
    %2976 = vst [vmem:[#allocation8 + $0x28] sm:$0xf] %v2828
    %2977 = vst [vmem:[#allocation8 + $0x2c] sm:$0xf] %v2829
    %2978 = vst [vmem:[#allocation8 + $0x30] sm:$0xf] %v2830
    %2979 = vst [vmem:[#allocation8 + $0x34] sm:$0xf] %v2831
    %2980 = vst [vmem:[#allocation8 + $0x38] sm:$0xf] %v2832
    %2981 = vst [vmem:[#allocation8 + $0x3c] sm:$0xf] %v2833
    %2982 = vst [vmem:[#allocation8 + $0x40] sm:$0xf] %v2834
    %2983 = vst [vmem:[#allocation8 + $0x44] sm:$0xf] %v2835
    %2984 = vst [vmem:[#allocation8 + $0x48] sm:$0xf] %v2836
    %2985 = vst [vmem:[#allocation8 + $0x4c] sm:$0xf] %v2837
    %2986 = vst [vmem:[#allocation8 + $0x50] sm:$0xf] %v2838
    %2987 = vst [vmem:[#allocation8 + $0x54] sm:$0xf] %v2839
    %2988 = vst [vmem:[#allocation8 + $0x58] sm:$0xf] %v2840
    %2989 = vst [vmem:[#allocation8 + $0x5c] sm:$0xf] %v2841
    %2990 = vst [vmem:[#allocation8 + $0x60] sm:$0xf] %v2842
    %2991 = vst [vmem:[#allocation8 + $0x64] sm:$0xf] %v2843
    %2992 = vst [vmem:[#allocation8 + $0x68] sm:$0xf] %v2844
    %2993 = vst [vmem:[#allocation8 + $0x6c] sm:$0xf] %v2845
    %2994 = vst [vmem:[#allocation8 + $0x70] sm:$0xf] %v2846
    %2995 = vst [vmem:[#allocation8 + $0x74] sm:$0xf] %v2847
    %2996 = vst [vmem:[#allocation8 + $0x78] sm:$0xf] %v2848
    %2997 = vst [vmem:[#allocation8 + $0x7c] sm:$0xf] %v2849
    %2998 = vst [vmem:[#allocation8 + $0x80] sm:$0xf] %v2850
    %2999 = vst [vmem:[#allocation8 + $0x84] sm:$0xf] %v2851
    %3000 = vst [vmem:[#allocation8 + $0x88] sm:$0xf] %v2852
    %3001 = vst [vmem:[#allocation8 + $0x8c] sm:$0xf] %v2853
    %3002 = vst [vmem:[#allocation8 + $0x90] sm:$0xf] %v2854
    %3003 = vst [vmem:[#allocation8 + $0x94] sm:$0xf] %v2855
    %3004 = vst [vmem:[#allocation8 + $0x98] sm:$0xf] %v2856
    %3005 = vst [vmem:[#allocation8 + $0x9c] sm:$0xf] %v2857
    %3006 = vst [vmem:[#allocation8 + $0xa0] sm:$0xf] %v2858
    %3007 = vst [vmem:[#allocation8 + $0xa4] sm:$0xf] %v2859
    %3008 = vst [vmem:[#allocation8 + $0xa8] sm:$0xf] %v2860
    %3009 = vst [vmem:[#allocation8 + $0xac] sm:$0xf] %v2861
    %3010 = vst [vmem:[#allocation8 + $0xb0] sm:$0xf] %v2862
    %3011 = vst [vmem:[#allocation8 + $0xb4] sm:$0xf] %v2863
    %3012 = vst [vmem:[#allocation8 + $0xb8] sm:$0xf] %v2864
    %3013 = vst [vmem:[#allocation8 + $0xbc] sm:$0xf] %v2865
    %3014 = vst [vmem:[#allocation8 + $0xc0] sm:$0xf] %v2866
    %3015 = vst [vmem:[#allocation8 + $0xc4] sm:$0xf] %v2867
    %3016 = vst [vmem:[#allocation8 + $0xc8] sm:$0xf] %v2868
    %3017 = vst [vmem:[#allocation8 + $0xcc] sm:$0xf] %v2869
    %3018 = vst [vmem:[#allocation8 + $0xd0] sm:$0xf] %v2870
    %3019 = vst [vmem:[#allocation8 + $0xd4] sm:$0xf] %v2871
    %3020 = vst [vmem:[#allocation8 + $0xd8] sm:$0xf] %v2872
    %3021 = vst [vmem:[#allocation8 + $0xdc] sm:$0xf] %v2873
    %3022 = vst [vmem:[#allocation8 + $0xe0] sm:$0xf] %v2874
    %3023 = vst [vmem:[#allocation8 + $0xe4] sm:$0xf] %v2875
    %3024 = vst [vmem:[#allocation8 + $0xe8] sm:$0xf] %v2876
    %3025 = vst [vmem:[#allocation8 + $0xec] sm:$0xf] %v2877
    %3026 = vst [vmem:[#allocation8 + $0xf0] sm:$0xf] %v2878
    %3027 = vst [vmem:[#allocation8 + $0xf4] sm:$0xf] %v2879
    %3028 = vst [vmem:[#allocation8 + $0xf8] sm:$0xf] %v2880
    %3029 = vst [vmem:[#allocation8 + $0xfc] sm:$0xf] %v2881
    %3030 = vst [vmem:[#allocation8 + $0x100] sm:$0xf] %v2882
    %3031 = vst [vmem:[#allocation8 + $0x104] sm:$0xf] %v2883
    %3032 = vst [vmem:[#allocation8 + $0x108] sm:$0xf] %v2884
    %3033 = vst [vmem:[#allocation8 + $0x10c] sm:$0xf] %v2885
    %3034 = vst [vmem:[#allocation8 + $0x110] sm:$0xf] %v2886
    %3035 = vst [vmem:[#allocation8 + $0x114] sm:$0xf] %v2887
    %3036 = vst [vmem:[#allocation8 + $0x118] sm:$0xf] %v2888
    %3037 = vst [vmem:[#allocation8 + $0x11c] sm:$0xf] %v2889
    %3038 = vst [vmem:[#allocation8 + $0x120] sm:$0xf] %v2890
    %3039 = vst [vmem:[#allocation8 + $0x124] sm:$0xf] %v2891
    // Predicated region
    $region26: #{inception_b_forward.6} parent=1 // pred_check
      _
    $region27: #{inception_b_forward.6} parent=1 // pred_check_branch
      %3041 = sbr.rel (0) target = $region29
    $region28: #{inception_b_forward.6} parent=1 // pred_region
      %s3043 = ssub.s32 4736, 4736
      %3044 = vsyncadd [#allocation4], %s3043
      %s3045 = sshll.u32 [#allocation8], 4
      %s3046 = int_to_ptr.vmem [resolvable:$true] %s3045
      %3051 = dma.vmem_to_hbm [thread:$0]  %s3046, 4736, %s3, [#allocation4], 64, 64, 4
    $region29: #{inception_b_forward.6} parent=1 // pred_fallthru
      _
    // Predicated region
    $region30: #{inception_b_forward.6} parent=1 // pred_check
      _
    $region31: #{inception_b_forward.6} parent=1 // pred_check_branch
      %3053 = sbr.rel (0) target = $region33
    $region32: #{inception_b_forward.6} parent=1 // pred_region
      %3054 = dma.done [#allocation4], 4736
    $region33: #{inception_b_forward.6} parent=1 // pred_fallthru
      _
    %3055 = vsyncpa [#allocation3], 1
    %3056 = vsyncpa [#allocation6], 1
    %3057 = vsyncpa [#allocation4], 1

// kernel: inception_b_forward.7
$region0: #{inception_b_forward.7}
  #allocation0 [shape = 'u32[]', space=smem, size = 0x4, offset = 0x4, fixed_abs, tag = 'smem constant byte address 0x4 - core index']
  #allocation1 [shape = 'u32[144,128]{1,0:T(1,128)}', space=vmem, size = 0x12000, scoped, tag = 'internal scratch']
  %s0 = inlined_call_operand.hbm [shape: bf16[128,864], index: 0, kind: input, shape index: {}]
  %s1 = inlined_call_operand.hbm [shape: bf16[864,128], index: 1, kind: input, shape index: {}]
  %s2 = inlined_call_operand.hbm [shape: f32[1,128], index: 2, kind: input, shape index: {}]
  %s3 = inlined_call_operand.hbm [shape: f32[128,128], index: 3, kind: output, shape index: {}]
  %s4 = sld [smem:[#allocation0]]
  $region34: #{inception_b_forward.7} parent=0
    _
  %s6 = ssub.s32 1, %s4
  %s7 = scalar_select 0, %s6, %s4
  $region1: #{inception_b_forward.7} parent=0
    #allocation2 [shape = 'u8[229376]{0}', space=vmem, size = 0x38000, scoped, tag = 'input window, operand 0, single buffered']
    #allocation3 [shape = 's32[1]{0}', space=sflag, size = 0x4, scoped, tag = 'scoped memory for inception_b_forward.7']
    #allocation4 [shape = 's32[1]{0}', space=sflag, size = 0x4, scoped, tag = 'scoped memory for inception_b_forward.7']
    #allocation5 [shape = 'u8[221184]{0}', space=vmem, size = 0x36000, scoped, tag = 'input window, operand 1, single buffered']
    #allocation6 [shape = 's32[1]{0}', space=sflag, size = 0x4, scoped, tag = 'scoped memory for inception_b_forward.7']
    #allocation7 [shape = 'u8[512]{0}', space=vmem, size = 0x400, scoped, tag = 'input window, operand 2, single buffered']
    #allocation8 [shape = 'u8[65536]{0}', space=vmem, size = 0x10000, scoped, tag = 'output window, operand 0, single buffered']
    %8 = vsyncpa [#allocation3], 0
    %9 = vsyncpa [#allocation6], 0
    %10 = vsyncpa [#allocation4], 0
    // Predicated region
    $region2: #{inception_b_forward.7} parent=1 // pred_check
      _
    $region3: #{inception_b_forward.7} parent=1 // pred_check_branch
      %12 = sbr.rel (0) target = $region5
    $region4: #{inception_b_forward.7} parent=1 // pred_region
      %s14 = ssub.s32 7168, 7168
      %15 = vsyncadd [#allocation3], %s14
      %s16 = sshll.u32 [#allocation2], 4
      %s17 = int_to_ptr.vmem [resolvable:$true] %s16
      %22 = dma.hbm_to_vmem [thread:$0]  %s0, 7168, %s17, [#allocation3], 448, 448, 28
    $region5: #{inception_b_forward.7} parent=1 // pred_fallthru
      _
    // Predicated region
    $region6: #{inception_b_forward.7} parent=1 // pred_check
      _
    $region7: #{inception_b_forward.7} parent=1 // pred_check_branch
      %24 = sbr.rel (0) target = $region9
    $region8: #{inception_b_forward.7} parent=1 // pred_region
      %s26 = ssub.s32 6912, 6912
      %27 = vsyncadd [#allocation6], %s26
      %s28 = sshll.u32 [#allocation5], 4
      %s29 = int_to_ptr.vmem [resolvable:$true] %s28
      %34 = dma.hbm_to_vmem [thread:$0]  %s1, 6912, %s29, [#allocation6], 64, 64, 4
    $region9: #{inception_b_forward.7} parent=1 // pred_fallthru
      _
    // Predicated region
    $region10: #{inception_b_forward.7} parent=1 // pred_check
      _
    $region11: #{inception_b_forward.7} parent=1 // pred_check_branch
      %36 = sbr.rel (0) target = $region13
    $region12: #{inception_b_forward.7} parent=1 // pred_region
      %s38 = ssub.s32 16, 16
      %39 = vsyncadd [#allocation6], %s38
      %s41 = sshll.u32 [#allocation7], 4
      %s42 = int_to_ptr.vmem [resolvable:$true] %s41
      %44 = dma.hbm_to_vmem [thread:$0]  %s2, 16, %s42, [#allocation6]
    $region13: #{inception_b_forward.7} parent=1 // pred_fallthru
      _
    // Predicated region
    $region14: #{inception_b_forward.7} parent=1 // pred_check
      _
    $region15: #{inception_b_forward.7} parent=1 // pred_check_branch
      %46 = sbr.rel (0) target = $region17
    $region16: #{inception_b_forward.7} parent=1 // pred_region
      %47 = dma.done [#allocation3], 7168
    $region17: #{inception_b_forward.7} parent=1 // pred_fallthru
      _
    // Predicated region
    $region18: #{inception_b_forward.7} parent=1 // pred_check
      _
    $region19: #{inception_b_forward.7} parent=1 // pred_check_branch
      %49 = sbr.rel (0) target = $region21
    $region20: #{inception_b_forward.7} parent=1 // pred_region
      %50 = dma.done [#allocation6], 6912
    $region21: #{inception_b_forward.7} parent=1 // pred_fallthru
      _
    // Predicated region
    $region22: #{inception_b_forward.7} parent=1 // pred_check
      _
    $region23: #{inception_b_forward.7} parent=1 // pred_check_branch
      %52 = sbr.rel (0) target = $region25
    $region24: #{inception_b_forward.7} parent=1 // pred_region
      %53 = dma.done [#allocation6], 16
    $region25: #{inception_b_forward.7} parent=1 // pred_fallthru
      _
    %v55 = vld [vmem:[#allocation2] sm:$0xff]
    %v56 = vld [vmem:[#allocation2 + $0x8] sm:$0xff]
    %v57 = vld [vmem:[#allocation2 + $0x10] sm:$0xff]
    %v58 = vld [vmem:[#allocation2 + $0x18] sm:$0xf]
    %v59 = vld [vmem:[#allocation2 + $0x1c] sm:$0xff]
    %v60 = vld [vmem:[#allocation2 + $0x24] sm:$0xff]
    %v61 = vld [vmem:[#allocation2 + $0x2c] sm:$0xff]
    %v62 = vld [vmem:[#allocation2 + $0x34] sm:$0xf]
    %v63 = vld [vmem:[#allocation2 + $0x38] sm:$0xff]
    %v64 = vld [vmem:[#allocation2 + $0x40] sm:$0xff]
    %v65 = vld [vmem:[#allocation2 + $0x48] sm:$0xff]
    %v66 = vld [vmem:[#allocation2 + $0x50] sm:$0xf]
    %v67 = vld [vmem:[#allocation2 + $0x54] sm:$0xff]
    %v68 = vld [vmem:[#allocation2 + $0x5c] sm:$0xff]
    %v69 = vld [vmem:[#allocation2 + $0x64] sm:$0xff]
    %v70 = vld [vmem:[#allocation2 + $0x6c] sm:$0xf]
    %v71 = vld [vmem:[#allocation2 + $0x70] sm:$0xff]
    %v72 = vld [vmem:[#allocation2 + $0x78] sm:$0xff]
    %v73 = vld [vmem:[#allocation2 + $0x80] sm:$0xff]
    %v74 = vld [vmem:[#allocation2 + $0x88] sm:$0xf]
    %v75 = vld [vmem:[#allocation2 + $0x8c] sm:$0xff]
    %v76 = vld [vmem:[#allocation2 + $0x94] sm:$0xff]
    %v77 = vld [vmem:[#allocation2 + $0x9c] sm:$0xff]
    %v78 = vld [vmem:[#allocation2 + $0xa4] sm:$0xf]
    %v79 = vld [vmem:[#allocation2 + $0xa8] sm:$0xff]
    %v80 = vld [vmem:[#allocation2 + $0xb0] sm:$0xff]
    %v81 = vld [vmem:[#allocation2 + $0xb8] sm:$0xff]
    %v82 = vld [vmem:[#allocation2 + $0xc0] sm:$0xf]
    %v83 = vld [vmem:[#allocation2 + $0xc4] sm:$0xff]
    %v84 = vld [vmem:[#allocation2 + $0xcc] sm:$0xff]
    %v85 = vld [vmem:[#allocation2 + $0xd4] sm:$0xff]
    %v86 = vld [vmem:[#allocation2 + $0xdc] sm:$0xf]
    %v87 = vld [vmem:[#allocation2 + $0xe0] sm:$0xff]
    %v88 = vld [vmem:[#allocation2 + $0xe8] sm:$0xff]
    %v89 = vld [vmem:[#allocation2 + $0xf0] sm:$0xff]
    %v90 = vld [vmem:[#allocation2 + $0xf8] sm:$0xf]
    %v91 = vld [vmem:[#allocation2 + $0xfc] sm:$0xff]
    %v92 = vld [vmem:[#allocation2 + $0x104] sm:$0xff]
    %v93 = vld [vmem:[#allocation2 + $0x10c] sm:$0xff]
    %v94 = vld [vmem:[#allocation2 + $0x114] sm:$0xf]
    %v95 = vld [vmem:[#allocation2 + $0x118] sm:$0xff]
    %v96 = vld [vmem:[#allocation2 + $0x120] sm:$0xff]
    %v97 = vld [vmem:[#allocation2 + $0x128] sm:$0xff]
    %v98 = vld [vmem:[#allocation2 + $0x130] sm:$0xf]
    %v99 = vld [vmem:[#allocation2 + $0x134] sm:$0xff]
    %v100 = vld [vmem:[#allocation2 + $0x13c] sm:$0xff]
    %v101 = vld [vmem:[#allocation2 + $0x144] sm:$0xff]
    %v102 = vld [vmem:[#allocation2 + $0x14c] sm:$0xf]
    %v103 = vld [vmem:[#allocation2 + $0x150] sm:$0xff]
    %v104 = vld [vmem:[#allocation2 + $0x158] sm:$0xff]
    %v105 = vld [vmem:[#allocation2 + $0x160] sm:$0xff]
    %v106 = vld [vmem:[#allocation2 + $0x168] sm:$0xf]
    %v107 = vld [vmem:[#allocation2 + $0x16c] sm:$0xff]
    %v108 = vld [vmem:[#allocation2 + $0x174] sm:$0xff]
    %v109 = vld [vmem:[#allocation2 + $0x17c] sm:$0xff]
    %v110 = vld [vmem:[#allocation2 + $0x184] sm:$0xf]
    %v111 = vld [vmem:[#allocation2 + $0x188] sm:$0xff]
    %v112 = vld [vmem:[#allocation2 + $0x190] sm:$0xff]
    %v113 = vld [vmem:[#allocation2 + $0x198] sm:$0xff]
    %v114 = vld [vmem:[#allocation2 + $0x1a0] sm:$0xf]
    %v115 = vld [vmem:[#allocation2 + $0x1a4] sm:$0xff]
    %v116 = vld [vmem:[#allocation2 + $0x1ac] sm:$0xff]
    %v117 = vld [vmem:[#allocation2 + $0x1b4] sm:$0xff]
    %v118 = vld [vmem:[#allocation2 + $0x1bc] sm:$0xf]
    %v119 = vld [vmem:[#allocation5] sm:$0xf]
    %v120 = vld [vmem:[#allocation5 + $0x4] sm:$0xf]
    %v121 = vld [vmem:[#allocation5 + $0x8] sm:$0xf]
    %v122 = vld [vmem:[#allocation5 + $0xc] sm:$0xf]
    %v123 = vld [vmem:[#allocation5 + $0x10] sm:$0xf]
    %v124 = vld [vmem:[#allocation5 + $0x14] sm:$0xf]
    %v125 = vld [vmem:[#allocation5 + $0x18] sm:$0xf]
    %v126 = vld [vmem:[#allocation5 + $0x1c] sm:$0xf]
    %v127 = vld [vmem:[#allocation5 + $0x20] sm:$0xf]
    %v128 = vld [vmem:[#allocation5 + $0x24] sm:$0xf]
    %v129 = vld [vmem:[#allocation5 + $0x28] sm:$0xf]
    %v130 = vld [vmem:[#allocation5 + $0x2c] sm:$0xf]
    %v131 = vld [vmem:[#allocation5 + $0x30] sm:$0xf]
    %v132 = vld [vmem:[#allocation5 + $0x34] sm:$0xf]
    %v133 = vld [vmem:[#allocation5 + $0x38] sm:$0xf]
    %v134 = vld [vmem:[#allocation5 + $0x3c] sm:$0xf]
    %v135 = vld [vmem:[#allocation5 + $0x40] sm:$0xf]
    %v136 = vld [vmem:[#allocation5 + $0x44] sm:$0xf]
    %v137 = vld [vmem:[#allocation5 + $0x48] sm:$0xf]
    %v138 = vld [vmem:[#allocation5 + $0x4c] sm:$0xf]
    %v139 = vld [vmem:[#allocation5 + $0x50] sm:$0xf]
    %v140 = vld [vmem:[#allocation5 + $0x54] sm:$0xf]
    %v141 = vld [vmem:[#allocation5 + $0x58] sm:$0xf]
    %v142 = vld [vmem:[#allocation5 + $0x5c] sm:$0xf]
    %v143 = vld [vmem:[#allocation5 + $0x60] sm:$0xf]
    %v144 = vld [vmem:[#allocation5 + $0x64] sm:$0xf]
    %v145 = vld [vmem:[#allocation5 + $0x68] sm:$0xf]
    %v146 = vld [vmem:[#allocation5 + $0x6c] sm:$0xf]
    %v147 = vld [vmem:[#allocation5 + $0x70] sm:$0xf]
    %v148 = vld [vmem:[#allocation5 + $0x74] sm:$0xf]
    %v149 = vld [vmem:[#allocation5 + $0x78] sm:$0xf]
    %v150 = vld [vmem:[#allocation5 + $0x7c] sm:$0xf]
    %v151 = vld [vmem:[#allocation5 + $0x80] sm:$0xf]
    %v152 = vld [vmem:[#allocation5 + $0x84] sm:$0xf]
    %v153 = vld [vmem:[#allocation5 + $0x88] sm:$0xf]
    %v154 = vld [vmem:[#allocation5 + $0x8c] sm:$0xf]
    %v155 = vld [vmem:[#allocation5 + $0x90] sm:$0xf]
    %v156 = vld [vmem:[#allocation5 + $0x94] sm:$0xf]
    %v157 = vld [vmem:[#allocation5 + $0x98] sm:$0xf]
    %v158 = vld [vmem:[#allocation5 + $0x9c] sm:$0xf]
    %v159 = vld [vmem:[#allocation5 + $0xa0] sm:$0xf]
    %v160 = vld [vmem:[#allocation5 + $0xa4] sm:$0xf]
    %v161 = vld [vmem:[#allocation5 + $0xa8] sm:$0xf]
    %v162 = vld [vmem:[#allocation5 + $0xac] sm:$0xf]
    %v163 = vld [vmem:[#allocation5 + $0xb0] sm:$0xf]
    %v164 = vld [vmem:[#allocation5 + $0xb4] sm:$0xf]
    %v165 = vld [vmem:[#allocation5 + $0xb8] sm:$0xf]
    %v166 = vld [vmem:[#allocation5 + $0xbc] sm:$0xf]
    %v167 = vld [vmem:[#allocation5 + $0xc0] sm:$0xf]
    %v168 = vld [vmem:[#allocation5 + $0xc4] sm:$0xf]
    %v169 = vld [vmem:[#allocation5 + $0xc8] sm:$0xf]
    %v170 = vld [vmem:[#allocation5 + $0xcc] sm:$0xf]
    %v171 = vld [vmem:[#allocation5 + $0xd0] sm:$0xf]
    %v172 = vld [vmem:[#allocation5 + $0xd4] sm:$0xf]
    %v173 = vld [vmem:[#allocation5 + $0xd8] sm:$0xf]
    %v174 = vld [vmem:[#allocation5 + $0xdc] sm:$0xf]
    %v175 = vld [vmem:[#allocation5 + $0xe0] sm:$0xf]
    %v176 = vld [vmem:[#allocation5 + $0xe4] sm:$0xf]
    %v177 = vld [vmem:[#allocation5 + $0xe8] sm:$0xf]
    %v178 = vld [vmem:[#allocation5 + $0xec] sm:$0xf]
    %v179 = vld [vmem:[#allocation5 + $0xf0] sm:$0xf]
    %v180 = vld [vmem:[#allocation5 + $0xf4] sm:$0xf]
    %v181 = vld [vmem:[#allocation5 + $0xf8] sm:$0xf]
    %v182 = vld [vmem:[#allocation5 + $0xfc] sm:$0xf]
    %v183 = vld [vmem:[#allocation5 + $0x100] sm:$0xf]
    %v184 = vld [vmem:[#allocation5 + $0x104] sm:$0xf]
    %v185 = vld [vmem:[#allocation5 + $0x108] sm:$0xf]
    %v186 = vld [vmem:[#allocation5 + $0x10c] sm:$0xf]
    %v187 = vld [vmem:[#allocation5 + $0x110] sm:$0xf]
    %v188 = vld [vmem:[#allocation5 + $0x114] sm:$0xf]
    %v189 = vld [vmem:[#allocation5 + $0x118] sm:$0xf]
    %v190 = vld [vmem:[#allocation5 + $0x11c] sm:$0xf]
    %v191 = vld [vmem:[#allocation5 + $0x120] sm:$0xf]
    %v192 = vld [vmem:[#allocation5 + $0x124] sm:$0xf]
    %v193 = vld [vmem:[#allocation5 + $0x128] sm:$0xf]
    %v194 = vld [vmem:[#allocation5 + $0x12c] sm:$0xf]
    %v195 = vld [vmem:[#allocation5 + $0x130] sm:$0xf]
    %v196 = vld [vmem:[#allocation5 + $0x134] sm:$0xf]
    %v197 = vld [vmem:[#allocation5 + $0x138] sm:$0xf]
    %v198 = vld [vmem:[#allocation5 + $0x13c] sm:$0xf]
    %v199 = vld [vmem:[#allocation5 + $0x140] sm:$0xf]
    %v200 = vld [vmem:[#allocation5 + $0x144] sm:$0xf]
    %v201 = vld [vmem:[#allocation5 + $0x148] sm:$0xf]
    %v202 = vld [vmem:[#allocation5 + $0x14c] sm:$0xf]
    %v203 = vld [vmem:[#allocation5 + $0x150] sm:$0xf]
    %v204 = vld [vmem:[#allocation5 + $0x154] sm:$0xf]
    %v205 = vld [vmem:[#allocation5 + $0x158] sm:$0xf]
    %v206 = vld [vmem:[#allocation5 + $0x15c] sm:$0xf]
    %v207 = vld [vmem:[#allocation5 + $0x160] sm:$0xf]
    %v208 = vld [vmem:[#allocation5 + $0x164] sm:$0xf]
    %v209 = vld [vmem:[#allocation5 + $0x168] sm:$0xf]
    %v210 = vld [vmem:[#allocation5 + $0x16c] sm:$0xf]
    %v211 = vld [vmem:[#allocation5 + $0x170] sm:$0xf]
    %v212 = vld [vmem:[#allocation5 + $0x174] sm:$0xf]
    %v213 = vld [vmem:[#allocation5 + $0x178] sm:$0xf]
    %v214 = vld [vmem:[#allocation5 + $0x17c] sm:$0xf]
    %v215 = vld [vmem:[#allocation5 + $0x180] sm:$0xf]
    %v216 = vld [vmem:[#allocation5 + $0x184] sm:$0xf]
    %v217 = vld [vmem:[#allocation5 + $0x188] sm:$0xf]
    %v218 = vld [vmem:[#allocation5 + $0x18c] sm:$0xf]
    %v219 = vld [vmem:[#allocation5 + $0x190] sm:$0xf]
    %v220 = vld [vmem:[#allocation5 + $0x194] sm:$0xf]
    %v221 = vld [vmem:[#allocation5 + $0x198] sm:$0xf]
    %v222 = vld [vmem:[#allocation5 + $0x19c] sm:$0xf]
    %v223 = vld [vmem:[#allocation5 + $0x1a0] sm:$0xf]
    %v224 = vld [vmem:[#allocation5 + $0x1a4] sm:$0xf]
    %v225 = vld [vmem:[#allocation5 + $0x1a8] sm:$0xf]
    %v226 = vld [vmem:[#allocation5 + $0x1ac] sm:$0xf]
    %v227 = vld [vmem:[#allocation7] sm:$0x1]
    %v229 = vlaneseq
    %v230 = vshrl.u32 %v229, 7
    %v231 = vsub.s32 0, %v230
    %v232 = vrot.slane %v227, %v231
    %v298 = vunpack.c.l.b16 %v55
    %v299 = vunpack.c.h.b16 %v55
    %v300 = vunpack.c.l.b16 %v56
    %v301 = vunpack.c.h.b16 %v56
    %v302 = vunpack.c.l.b16 %v57
    %v303 = vunpack.c.h.b16 %v57
    %v304 = vunpack.c.l.b16 %v58
    %v305 = vunpack.c.l.b16 %v59
    %v306 = vunpack.c.h.b16 %v59
    %v307 = vunpack.c.l.b16 %v60
    %v308 = vunpack.c.h.b16 %v60
    %v309 = vunpack.c.l.b16 %v61
    %v310 = vunpack.c.h.b16 %v61
    %v311 = vunpack.c.l.b16 %v62
    %v312 = vunpack.c.l.b16 %v63
    %v313 = vunpack.c.h.b16 %v63
    %v314 = vunpack.c.l.b16 %v64
    %v315 = vunpack.c.h.b16 %v64
    %v316 = vunpack.c.l.b16 %v65
    %v317 = vunpack.c.h.b16 %v65
    %v318 = vunpack.c.l.b16 %v66
    %v319 = vunpack.c.l.b16 %v67
    %v320 = vunpack.c.h.b16 %v67
    %v321 = vunpack.c.l.b16 %v68
    %v322 = vunpack.c.h.b16 %v68
    %v323 = vunpack.c.l.b16 %v69
    %v324 = vunpack.c.h.b16 %v69
    %v325 = vunpack.c.l.b16 %v70
    %v326 = vunpack.c.l.b16 %v71
    %v327 = vunpack.c.h.b16 %v71
    %v328 = vunpack.c.l.b16 %v72
    %v329 = vunpack.c.h.b16 %v72
    %v330 = vunpack.c.l.b16 %v73
    %v331 = vunpack.c.h.b16 %v73
    %v332 = vunpack.c.l.b16 %v74
    %v333 = vunpack.c.l.b16 %v75
    %v334 = vunpack.c.h.b16 %v75
    %v335 = vunpack.c.l.b16 %v76
    %v336 = vunpack.c.h.b16 %v76
    %v337 = vunpack.c.l.b16 %v77
    %v338 = vunpack.c.h.b16 %v77
    %v339 = vunpack.c.l.b16 %v78
    %v340 = vunpack.c.l.b16 %v79
    %v341 = vunpack.c.h.b16 %v79
    %v342 = vunpack.c.l.b16 %v80
    %v343 = vunpack.c.h.b16 %v80
    %v344 = vunpack.c.l.b16 %v81
    %v345 = vunpack.c.h.b16 %v81
    %v346 = vunpack.c.l.b16 %v82
    %v347 = vunpack.c.l.b16 %v83
    %v348 = vunpack.c.h.b16 %v83
    %v349 = vunpack.c.l.b16 %v84
    %v350 = vunpack.c.h.b16 %v84
    %v351 = vunpack.c.l.b16 %v85
    %v352 = vunpack.c.h.b16 %v85
    %v353 = vunpack.c.l.b16 %v86
    %v354 = vunpack.c.l.b16 %v87
    %v355 = vunpack.c.h.b16 %v87
    %v356 = vunpack.c.l.b16 %v88
    %v357 = vunpack.c.h.b16 %v88
    %v358 = vunpack.c.l.b16 %v89
    %v359 = vunpack.c.h.b16 %v89
    %v360 = vunpack.c.l.b16 %v90
    %v361 = vunpack.c.l.b16 %v91
    %v362 = vunpack.c.h.b16 %v91
    %v363 = vunpack.c.l.b16 %v92
    %v364 = vunpack.c.h.b16 %v92
    %v365 = vunpack.c.l.b16 %v93
    %v366 = vunpack.c.h.b16 %v93
    %v367 = vunpack.c.l.b16 %v94
    %v368 = vunpack.c.l.b16 %v95
    %v369 = vunpack.c.h.b16 %v95
    %v370 = vunpack.c.l.b16 %v96
    %v371 = vunpack.c.h.b16 %v96
    %v372 = vunpack.c.l.b16 %v97
    %v373 = vunpack.c.h.b16 %v97
    %v374 = vunpack.c.l.b16 %v98
    %v375 = vunpack.c.l.b16 %v99
    %v376 = vunpack.c.h.b16 %v99
    %v377 = vunpack.c.l.b16 %v100
    %v378 = vunpack.c.h.b16 %v100
    %v379 = vunpack.c.l.b16 %v101
    %v380 = vunpack.c.h.b16 %v101
    %v381 = vunpack.c.l.b16 %v102
    %v382 = vunpack.c.l.b16 %v103
    %v383 = vunpack.c.h.b16 %v103
    %v384 = vunpack.c.l.b16 %v104
    %v385 = vunpack.c.h.b16 %v104
    %v386 = vunpack.c.l.b16 %v105
    %v387 = vunpack.c.h.b16 %v105
    %v388 = vunpack.c.l.b16 %v106
    %v389 = vunpack.c.l.b16 %v107
    %v390 = vunpack.c.h.b16 %v107
    %v391 = vunpack.c.l.b16 %v108
    %v392 = vunpack.c.h.b16 %v108
    %v393 = vunpack.c.l.b16 %v109
    %v394 = vunpack.c.h.b16 %v109
    %v395 = vunpack.c.l.b16 %v110
    %v396 = vunpack.c.l.b16 %v111
    %v397 = vunpack.c.h.b16 %v111
    %v398 = vunpack.c.l.b16 %v112
    %v399 = vunpack.c.h.b16 %v112
    %v400 = vunpack.c.l.b16 %v113
    %v401 = vunpack.c.h.b16 %v113
    %v402 = vunpack.c.l.b16 %v114
    %v403 = vunpack.c.l.b16 %v115
    %v404 = vunpack.c.h.b16 %v115
    %v405 = vunpack.c.l.b16 %v116
    %v406 = vunpack.c.h.b16 %v116
    %v407 = vunpack.c.l.b16 %v117
    %v408 = vunpack.c.h.b16 %v117
    %v409 = vunpack.c.l.b16 %v118
    %v410 = vpack.c.b16 %v305, %v298
    %v411 = vpack.c.b16 %v306, %v299
    %v412 = vpack.c.b16 %v307, %v300
    %v413 = vpack.c.b16 %v308, %v301
    %v414 = vpack.c.b16 %v309, %v302
    %v415 = vpack.c.b16 %v310, %v303
    %v416 = vpack.c.b16 %v311, %v304
    %v417 = vpack.c.b16 %v319, %v312
    %v418 = vpack.c.b16 %v320, %v313
    %v419 = vpack.c.b16 %v321, %v314
    %v420 = vpack.c.b16 %v322, %v315
    %v421 = vpack.c.b16 %v323, %v316
    %v422 = vpack.c.b16 %v324, %v317
    %v423 = vpack.c.b16 %v325, %v318
    %v424 = vpack.c.b16 %v333, %v326
    %v425 = vpack.c.b16 %v334, %v327
    %v426 = vpack.c.b16 %v335, %v328
    %v427 = vpack.c.b16 %v336, %v329
    %v428 = vpack.c.b16 %v337, %v330
    %v429 = vpack.c.b16 %v338, %v331
    %v430 = vpack.c.b16 %v339, %v332
    %v431 = vpack.c.b16 %v347, %v340
    %v432 = vpack.c.b16 %v348, %v341
    %v433 = vpack.c.b16 %v349, %v342
    %v434 = vpack.c.b16 %v350, %v343
    %v435 = vpack.c.b16 %v351, %v344
    %v436 = vpack.c.b16 %v352, %v345
    %v437 = vpack.c.b16 %v353, %v346
    %v438 = vpack.c.b16 %v361, %v354
    %v439 = vpack.c.b16 %v362, %v355
    %v440 = vpack.c.b16 %v363, %v356
    %v441 = vpack.c.b16 %v364, %v357
    %v442 = vpack.c.b16 %v365, %v358
    %v443 = vpack.c.b16 %v366, %v359
    %v444 = vpack.c.b16 %v367, %v360
    %v445 = vpack.c.b16 %v375, %v368
    %v446 = vpack.c.b16 %v376, %v369
    %v447 = vpack.c.b16 %v377, %v370
    %v448 = vpack.c.b16 %v378, %v371
    %v449 = vpack.c.b16 %v379, %v372
    %v450 = vpack.c.b16 %v380, %v373
    %v451 = vpack.c.b16 %v381, %v374
    %v452 = vpack.c.b16 %v389, %v382
    %v453 = vpack.c.b16 %v390, %v383
    %v454 = vpack.c.b16 %v391, %v384
    %v455 = vpack.c.b16 %v392, %v385
    %v456 = vpack.c.b16 %v393, %v386
    %v457 = vpack.c.b16 %v394, %v387
    %v458 = vpack.c.b16 %v395, %v388
    %v459 = vpack.c.b16 %v403, %v396
    %v460 = vpack.c.b16 %v404, %v397
    %v461 = vpack.c.b16 %v405, %v398
    %v462 = vpack.c.b16 %v406, %v399
    %v463 = vpack.c.b16 %v407, %v400
    %v464 = vpack.c.b16 %v408, %v401
    %v465 = vpack.c.b16 %v409, %v402
    %v622 = vunpack.c.l.b16 %v119
    %v623 = vunpack.c.l.b16 %v120
    %v624 = vunpack.c.l.b16 %v121
    %v625 = vunpack.c.l.b16 %v122
    %v626 = vunpack.c.l.b16 %v123
    %v627 = vunpack.c.l.b16 %v124
    %v628 = vunpack.c.l.b16 %v125
    %v629 = vunpack.c.l.b16 %v126
    %v630 = vunpack.c.l.b16 %v127
    %v631 = vunpack.c.l.b16 %v128
    %v632 = vunpack.c.l.b16 %v129
    %v633 = vunpack.c.l.b16 %v130
    %v634 = vunpack.c.l.b16 %v131
    %v635 = vunpack.c.l.b16 %v132
    %v636 = vunpack.c.l.b16 %v133
    %v637 = vunpack.c.l.b16 %v134
    %v638 = vunpack.c.l.b16 %v135
    %v639 = vunpack.c.l.b16 %v136
    %v640 = vunpack.c.l.b16 %v137
    %v641 = vunpack.c.l.b16 %v138
    %v642 = vunpack.c.l.b16 %v139
    %v643 = vunpack.c.l.b16 %v140
    %v644 = vunpack.c.l.b16 %v141
    %v645 = vunpack.c.l.b16 %v142
    %v646 = vunpack.c.l.b16 %v143
    %v647 = vunpack.c.l.b16 %v144
    %v648 = vunpack.c.l.b16 %v145
    %v649 = vunpack.c.l.b16 %v146
    %v650 = vunpack.c.l.b16 %v147
    %v651 = vunpack.c.l.b16 %v148
    %v652 = vunpack.c.l.b16 %v149
    %v653 = vunpack.c.l.b16 %v150
    %v654 = vunpack.c.l.b16 %v151
    %v655 = vunpack.c.l.b16 %v152
    %v656 = vunpack.c.l.b16 %v153
    %v657 = vunpack.c.l.b16 %v154
    %v658 = vunpack.c.l.b16 %v155
    %v659 = vunpack.c.l.b16 %v156
    %v660 = vunpack.c.l.b16 %v157
    %v661 = vunpack.c.l.b16 %v158
    %v662 = vunpack.c.l.b16 %v159
    %v663 = vunpack.c.l.b16 %v160
    %v664 = vunpack.c.l.b16 %v161
    %v665 = vunpack.c.l.b16 %v162
    %v666 = vunpack.c.l.b16 %v163
    %v667 = vunpack.c.l.b16 %v164
    %v668 = vunpack.c.l.b16 %v165
    %v669 = vunpack.c.l.b16 %v166
    %v670 = vunpack.c.l.b16 %v167
    %v671 = vunpack.c.l.b16 %v168
    %v672 = vunpack.c.l.b16 %v169
    %v673 = vunpack.c.l.b16 %v170
    %v674 = vunpack.c.l.b16 %v171
    %v675 = vunpack.c.l.b16 %v172
    %v676 = vunpack.c.l.b16 %v173
    %v677 = vunpack.c.l.b16 %v174
    %v678 = vunpack.c.l.b16 %v175
    %v679 = vunpack.c.l.b16 %v176
    %v680 = vunpack.c.l.b16 %v177
    %v681 = vunpack.c.l.b16 %v178
    %v682 = vunpack.c.l.b16 %v179
    %v683 = vunpack.c.l.b16 %v180
    %v684 = vunpack.c.l.b16 %v181
    %v685 = vunpack.c.l.b16 %v182
    %v686 = vunpack.c.l.b16 %v183
    %v687 = vunpack.c.l.b16 %v184
    %v688 = vunpack.c.l.b16 %v185
    %v689 = vunpack.c.l.b16 %v186
    %v690 = vunpack.c.l.b16 %v187
    %v691 = vunpack.c.l.b16 %v188
    %v692 = vunpack.c.l.b16 %v189
    %v693 = vunpack.c.l.b16 %v190
    %v694 = vunpack.c.l.b16 %v191
    %v695 = vunpack.c.l.b16 %v192
    %v696 = vunpack.c.l.b16 %v193
    %v697 = vunpack.c.l.b16 %v194
    %v698 = vunpack.c.l.b16 %v195
    %v699 = vunpack.c.l.b16 %v196
    %v700 = vunpack.c.l.b16 %v197
    %v701 = vunpack.c.l.b16 %v198
    %v702 = vunpack.c.l.b16 %v199
    %v703 = vunpack.c.l.b16 %v200
    %v704 = vunpack.c.l.b16 %v201
    %v705 = vunpack.c.l.b16 %v202
    %v706 = vunpack.c.l.b16 %v203
    %v707 = vunpack.c.l.b16 %v204
    %v708 = vunpack.c.l.b16 %v205
    %v709 = vunpack.c.l.b16 %v206
    %v710 = vunpack.c.l.b16 %v207
    %v711 = vunpack.c.l.b16 %v208
    %v712 = vunpack.c.l.b16 %v209
    %v713 = vunpack.c.l.b16 %v210
    %v714 = vunpack.c.l.b16 %v211
    %v715 = vunpack.c.l.b16 %v212
    %v716 = vunpack.c.l.b16 %v213
    %v717 = vunpack.c.l.b16 %v214
    %v718 = vunpack.c.l.b16 %v215
    %v719 = vunpack.c.l.b16 %v216
    %v720 = vunpack.c.l.b16 %v217
    %v721 = vunpack.c.l.b16 %v218
    %v722 = vunpack.c.l.b16 %v219
    %v723 = vunpack.c.l.b16 %v220
    %v724 = vunpack.c.l.b16 %v221
    %v725 = vunpack.c.l.b16 %v222
    %v726 = vunpack.c.l.b16 %v223
    %v727 = vunpack.c.l.b16 %v224
    %v728 = vunpack.c.l.b16 %v225
    %v729 = vunpack.c.l.b16 %v226
    %v730 = vpack.c.b16 %v623, %v622
    %v731 = vpack.c.b16 %v625, %v624
    %v732 = vpack.c.b16 %v627, %v626
    %v733 = vpack.c.b16 %v629, %v628
    %v734 = vpack.c.b16 %v631, %v630
    %v735 = vpack.c.b16 %v633, %v632
    %v736 = vpack.c.b16 %v635, %v634
    %v737 = vpack.c.b16 %v637, %v636
    %v738 = vpack.c.b16 %v639, %v638
    %v739 = vpack.c.b16 %v641, %v640
    %v740 = vpack.c.b16 %v643, %v642
    %v741 = vpack.c.b16 %v645, %v644
    %v742 = vpack.c.b16 %v647, %v646
    %v743 = vpack.c.b16 %v649, %v648
    %v744 = vpack.c.b16 %v651, %v650
    %v745 = vpack.c.b16 %v653, %v652
    %v746 = vpack.c.b16 %v655, %v654
    %v747 = vpack.c.b16 %v657, %v656
    %v748 = vpack.c.b16 %v659, %v658
    %v749 = vpack.c.b16 %v661, %v660
    %v750 = vpack.c.b16 %v663, %v662
    %v751 = vpack.c.b16 %v665, %v664
    %v752 = vpack.c.b16 %v667, %v666
    %v753 = vpack.c.b16 %v669, %v668
    %v754 = vpack.c.b16 %v671, %v670
    %v755 = vpack.c.b16 %v673, %v672
    %v756 = vpack.c.b16 %v675, %v674
    %v757 = vpack.c.b16 %v677, %v676
    %v758 = vpack.c.b16 %v679, %v678
    %v759 = vpack.c.b16 %v681, %v680
    %v760 = vpack.c.b16 %v683, %v682
    %v761 = vpack.c.b16 %v685, %v684
    %v762 = vpack.c.b16 %v687, %v686
    %v763 = vpack.c.b16 %v689, %v688
    %v764 = vpack.c.b16 %v691, %v690
    %v765 = vpack.c.b16 %v693, %v692
    %v766 = vpack.c.b16 %v695, %v694
    %v767 = vpack.c.b16 %v697, %v696
    %v768 = vpack.c.b16 %v699, %v698
    %v769 = vpack.c.b16 %v701, %v700
    %v770 = vpack.c.b16 %v703, %v702
    %v771 = vpack.c.b16 %v705, %v704
    %v772 = vpack.c.b16 %v707, %v706
    %v773 = vpack.c.b16 %v709, %v708
    %v774 = vpack.c.b16 %v711, %v710
    %v775 = vpack.c.b16 %v713, %v712
    %v776 = vpack.c.b16 %v715, %v714
    %v777 = vpack.c.b16 %v717, %v716
    %v778 = vpack.c.b16 %v719, %v718
    %v779 = vpack.c.b16 %v721, %v720
    %v780 = vpack.c.b16 %v723, %v722
    %v781 = vpack.c.b16 %v725, %v724
    %v782 = vpack.c.b16 %v727, %v726
    %v783 = vpack.c.b16 %v729, %v728
    %vm838 = vcmask 785408
    %v840 = vsel %vm838, %v416, 0
    %v843 = vsel %vm838, %v423, 0
    %v846 = vsel %vm838, %v430, 0
    %v849 = vsel %vm838, %v437, 0
    %v852 = vsel %vm838, %v444, 0
    %v855 = vsel %vm838, %v451, 0
    %v858 = vsel %vm838, %v458, 0
    %v861 = vsel %vm838, %v465, 0
    %863 = vmatprep.subr.bf16.mxu0 0
    %864 = vmatpush1.bf16.msra.mxu0 %v730
    %865 = vmatprep.subr.bf16.mxu0 0
    %866 = vmatpush1.bf16.msra.mxu0 %v731
    %867 = vmatprep.subr.bf16.mxu0 0
    %868 = vmatpush1.bf16.msra.mxu0 %v732
    %869 = vmatprep.subr.bf16.mxu0 0
    %870 = vmatpush1.bf16.msra.mxu0 %v733
    %871 = vmatprep.subr.bf16.mxu0 0
    %872 = vmatpush1.bf16.msra.mxu0 %v734
    %873 = vmatprep.subr.bf16.mxu0 0
    %874 = vmatpush1.bf16.msra.mxu0 %v735
    %875 = vmatprep.subr.bf16.mxu0 0
    %876 = vmatpush1.bf16.msra.mxu0 %v736
    %877 = vmatprep.subr.bf16.mxu0 0
    %878 = vmatpush1.bf16.msra.mxu0 %v737
    %879 = vmatprep.subr.bf16.mxu0 0
    %880 = vmatpush1.bf16.msra.mxu0 %v738
    %881 = vmatprep.subr.bf16.mxu0 0
    %882 = vmatpush1.bf16.msra.mxu0 %v739
    %883 = vmatprep.subr.bf16.mxu0 0
    %884 = vmatpush1.bf16.msra.mxu0 %v740
    %885 = vmatprep.subr.bf16.mxu0 0
    %886 = vmatpush1.bf16.msra.mxu0 %v741
    %887 = vmatprep.subr.bf16.mxu0 0
    %888 = vmatpush1.bf16.msra.mxu0 %v742
    %889 = vmatprep.subr.bf16.mxu0 0
    %890 = vmatpush1.bf16.msra.mxu0 %v743
    %891 = vmatprep.subr.bf16.mxu0 0
    %892 = vmatpush1.bf16.msra.mxu0 %v744
    %893 = vmatprep.subr.bf16.mxu0 0
    %894 = vmatpush1.bf16.msra.mxu0 %v745
    %895 = vmatprep.mubr.bf16.mxu0 %v411
    %896 = vmatmul.mubr.bf16.gmra.mrb[0].mxu0 %v410
    %v897 = vpop.f32.mrb[0].mxu0
    %v898 = vadd.f32 %v232, %v897
    %v899 = vpop.f32.mrb[0].mxu0
    %v900 = vpop.f32.mrb[0].mxu0
    %v901 = vadd.f32 %v232, %v900
    %v902 = vpop.f32.mrb[0].mxu0
    %903 = vmatprep.mubr.bf16.mxu0 %v418
    %904 = vmatmul.mubr.bf16.gmra.mrb[0].mxu0 %v417
    %v905 = vpop.f32.mrb[0].mxu0
    %v906 = vadd.f32 %v232, %v905
    %v907 = vpop.f32.mrb[0].mxu0
    %v908 = vpop.f32.mrb[0].mxu0
    %v909 = vadd.f32 %v232, %v908
    %v910 = vpop.f32.mrb[0].mxu0
    %911 = vmatprep.mubr.bf16.mxu0 %v425
    %912 = vmatmul.mubr.bf16.gmra.mrb[0].mxu0 %v424
    %v913 = vpop.f32.mrb[0].mxu0
    %v914 = vadd.f32 %v232, %v913
    %v915 = vpop.f32.mrb[0].mxu0
    %v916 = vpop.f32.mrb[0].mxu0
    %v917 = vadd.f32 %v232, %v916
    %v918 = vpop.f32.mrb[0].mxu0
    %919 = vmatprep.mubr.bf16.mxu0 %v432
    %920 = vmatmul.mubr.bf16.gmra.mrb[0].mxu0 %v431
    %v921 = vpop.f32.mrb[0].mxu0
    %v922 = vadd.f32 %v232, %v921
    %v923 = vpop.f32.mrb[0].mxu0
    %v924 = vpop.f32.mrb[0].mxu0
    %v925 = vadd.f32 %v232, %v924
    %v926 = vpop.f32.mrb[0].mxu0
    %927 = vmatprep.mubr.bf16.mxu0 %v439
    %928 = vmatmul.mubr.bf16.gmra.mrb[0].mxu0 %v438
    %v929 = vpop.f32.mrb[0].mxu0
    %v930 = vadd.f32 %v232, %v929
    %v931 = vpop.f32.mrb[0].mxu0
    %v932 = vpop.f32.mrb[0].mxu0
    %v933 = vadd.f32 %v232, %v932
    %v934 = vpop.f32.mrb[0].mxu0
    %935 = vmatprep.mubr.bf16.mxu0 %v446
    %936 = vmatmul.mubr.bf16.gmra.mrb[0].mxu0 %v445
    %v937 = vpop.f32.mrb[0].mxu0
    %v938 = vadd.f32 %v232, %v937
    %v939 = vpop.f32.mrb[0].mxu0
    %v940 = vpop.f32.mrb[0].mxu0
    %v941 = vadd.f32 %v232, %v940
    %v942 = vpop.f32.mrb[0].mxu0
    %943 = vmatprep.mubr.bf16.mxu0 %v453
    %944 = vmatmul.mubr.bf16.gmra.mrb[0].mxu0 %v452
    %v945 = vpop.f32.mrb[0].mxu0
    %v946 = vadd.f32 %v232, %v945
    %v947 = vpop.f32.mrb[0].mxu0
    %v948 = vpop.f32.mrb[0].mxu0
    %v949 = vadd.f32 %v232, %v948
    %v950 = vpop.f32.mrb[0].mxu0
    %951 = vmatprep.mubr.bf16.mxu0 %v460
    %952 = vmatmul.mubr.bf16.gmra.mrb[0].mxu0 %v459
    %v953 = vpop.f32.mrb[0].mxu0
    %v954 = vadd.f32 %v232, %v953
    %v955 = vpop.f32.mrb[0].mxu0
    %v956 = vpop.f32.mrb[0].mxu0
    %v957 = vadd.f32 %v232, %v956
    %v958 = vpop.f32.mrb[0].mxu0
    %959 = vdwg.mxu0
    %960 = vmatprep.subr.bf16.mxu0 0
    %961 = vmatpush1.bf16.msra.mxu0 %v746
    %962 = vmatprep.subr.bf16.mxu0 0
    %963 = vmatpush1.bf16.msra.mxu0 %v747
    %964 = vmatprep.subr.bf16.mxu0 0
    %965 = vmatpush1.bf16.msra.mxu0 %v748
    %966 = vmatprep.subr.bf16.mxu0 0
    %967 = vmatpush1.bf16.msra.mxu0 %v749
    %968 = vmatprep.subr.bf16.mxu0 0
    %969 = vmatpush1.bf16.msra.mxu0 %v750
    %970 = vmatprep.subr.bf16.mxu0 0
    %971 = vmatpush1.bf16.msra.mxu0 %v751
    %972 = vmatprep.subr.bf16.mxu0 0
    %973 = vmatpush1.bf16.msra.mxu0 %v752
    %974 = vmatprep.subr.bf16.mxu0 0
    %975 = vmatpush1.bf16.msra.mxu0 %v753
    %976 = vmatprep.subr.bf16.mxu0 0
    %977 = vmatpush1.bf16.msra.mxu0 %v754
    %978 = vmatprep.subr.bf16.mxu0 0
    %979 = vmatpush1.bf16.msra.mxu0 %v755
    %980 = vmatprep.subr.bf16.mxu0 0
    %981 = vmatpush1.bf16.msra.mxu0 %v756
    %982 = vmatprep.subr.bf16.mxu0 0
    %983 = vmatpush1.bf16.msra.mxu0 %v757
    %984 = vmatprep.subr.bf16.mxu0 0
    %985 = vmatpush1.bf16.msra.mxu0 %v758
    %986 = vmatprep.subr.bf16.mxu0 0
    %987 = vmatpush1.bf16.msra.mxu0 %v759
    %988 = vmatprep.subr.bf16.mxu0 0
    %989 = vmatpush1.bf16.msra.mxu0 %v760
    %990 = vmatprep.subr.bf16.mxu0 0
    %991 = vmatpush1.bf16.msra.mxu0 %v761
    %992 = vmatprep.mubr.bf16.mxu0 %v413
    %993 = vmatmul.mubr.bf16.gmra.mrb[0].mxu0 %v412
    %v994 = vpop.f32.mrb[0].mxu0
    %v995 = vadd.f32 %v898, %v994
    %v996 = vpop.f32.mrb[0].mxu0
    %v997 = vpop.f32.mrb[0].mxu0
    %v998 = vadd.f32 %v901, %v997
    %v999 = vpop.f32.mrb[0].mxu0
    %1000 = vmatprep.mubr.bf16.mxu0 %v420
    %1001 = vmatmul.mubr.bf16.gmra.mrb[0].mxu0 %v419
    %v1002 = vpop.f32.mrb[0].mxu0
    %v1003 = vadd.f32 %v906, %v1002
    %v1004 = vpop.f32.mrb[0].mxu0
    %v1005 = vpop.f32.mrb[0].mxu0
    %v1006 = vadd.f32 %v909, %v1005
    %v1007 = vpop.f32.mrb[0].mxu0
    %1008 = vmatprep.mubr.bf16.mxu0 %v427
    %1009 = vmatmul.mubr.bf16.gmra.mrb[0].mxu0 %v426
    %v1010 = vpop.f32.mrb[0].mxu0
    %v1011 = vadd.f32 %v914, %v1010
    %v1012 = vpop.f32.mrb[0].mxu0
    %v1013 = vpop.f32.mrb[0].mxu0
    %v1014 = vadd.f32 %v917, %v1013
    %v1015 = vpop.f32.mrb[0].mxu0
    %1016 = vmatprep.mubr.bf16.mxu0 %v434
    %1017 = vmatmul.mubr.bf16.gmra.mrb[0].mxu0 %v433
    %v1018 = vpop.f32.mrb[0].mxu0
    %v1019 = vadd.f32 %v922, %v1018
    %v1020 = vpop.f32.mrb[0].mxu0
    %v1021 = vpop.f32.mrb[0].mxu0
    %v1022 = vadd.f32 %v925, %v1021
    %v1023 = vpop.f32.mrb[0].mxu0
    %1024 = vmatprep.mubr.bf16.mxu0 %v441
    %1025 = vmatmul.mubr.bf16.gmra.mrb[0].mxu0 %v440
    %v1026 = vpop.f32.mrb[0].mxu0
    %v1027 = vadd.f32 %v930, %v1026
    %v1028 = vpop.f32.mrb[0].mxu0
    %v1029 = vpop.f32.mrb[0].mxu0
    %v1030 = vadd.f32 %v933, %v1029
    %v1031 = vpop.f32.mrb[0].mxu0
    %1032 = vmatprep.mubr.bf16.mxu0 %v448
    %1033 = vmatmul.mubr.bf16.gmra.mrb[0].mxu0 %v447
    %v1034 = vpop.f32.mrb[0].mxu0
    %v1035 = vadd.f32 %v938, %v1034
    %v1036 = vpop.f32.mrb[0].mxu0
    %v1037 = vpop.f32.mrb[0].mxu0
    %v1038 = vadd.f32 %v941, %v1037
    %v1039 = vpop.f32.mrb[0].mxu0
    %1040 = vmatprep.mubr.bf16.mxu0 %v455
    %1041 = vmatmul.mubr.bf16.gmra.mrb[0].mxu0 %v454
    %v1042 = vpop.f32.mrb[0].mxu0
    %v1043 = vadd.f32 %v946, %v1042
    %v1044 = vpop.f32.mrb[0].mxu0
    %v1045 = vpop.f32.mrb[0].mxu0
    %v1046 = vadd.f32 %v949, %v1045
    %v1047 = vpop.f32.mrb[0].mxu0
    %1048 = vmatprep.mubr.bf16.mxu0 %v462
    %1049 = vmatmul.mubr.bf16.gmra.mrb[0].mxu0 %v461
    %v1050 = vpop.f32.mrb[0].mxu0
    %v1051 = vadd.f32 %v954, %v1050
    %v1052 = vpop.f32.mrb[0].mxu0
    %v1053 = vpop.f32.mrb[0].mxu0
    %v1054 = vadd.f32 %v957, %v1053
    %v1055 = vpop.f32.mrb[0].mxu0
    %1056 = vdwg.mxu0
    %1057 = vmatprep.subr.bf16.mxu0 0
    %1058 = vmatpush1.bf16.msra.mxu0 %v762
    %1059 = vmatprep.subr.bf16.mxu0 0
    %1060 = vmatpush1.bf16.msra.mxu0 %v763
    %1061 = vmatprep.subr.bf16.mxu0 0
    %1062 = vmatpush1.bf16.msra.mxu0 %v764
    %1063 = vmatprep.subr.bf16.mxu0 0
    %1064 = vmatpush1.bf16.msra.mxu0 %v765
    %1065 = vmatprep.subr.bf16.mxu0 0
    %1066 = vmatpush1.bf16.msra.mxu0 %v766
    %1067 = vmatprep.subr.bf16.mxu0 0
    %1068 = vmatpush1.bf16.msra.mxu0 %v767
    %1069 = vmatprep.subr.bf16.mxu0 0
    %1070 = vmatpush1.bf16.msra.mxu0 %v768
    %1071 = vmatprep.subr.bf16.mxu0 0
    %1072 = vmatpush1.bf16.msra.mxu0 %v769
    %1073 = vmatprep.subr.bf16.mxu0 0
    %1074 = vmatpush1.bf16.msra.mxu0 %v770
    %1075 = vmatprep.subr.bf16.mxu0 0
    %1076 = vmatpush1.bf16.msra.mxu0 %v771
    %1077 = vmatprep.subr.bf16.mxu0 0
    %1078 = vmatpush1.bf16.msra.mxu0 %v772
    %1079 = vmatprep.subr.bf16.mxu0 0
    %1080 = vmatpush1.bf16.msra.mxu0 %v773
    %1081 = vmatprep.subr.bf16.mxu0 0
    %1082 = vmatpush1.bf16.msra.mxu0 %v774
    %1083 = vmatprep.subr.bf16.mxu0 0
    %1084 = vmatpush1.bf16.msra.mxu0 %v775
    %1085 = vmatprep.subr.bf16.mxu0 0
    %1086 = vmatpush1.bf16.msra.mxu0 %v776
    %1087 = vmatprep.subr.bf16.mxu0 0
    %1088 = vmatpush1.bf16.msra.mxu0 %v777
    %1089 = vmatprep.mubr.bf16.mxu0 %v415
    %1090 = vmatmul.mubr.bf16.gmra.mrb[0].mxu0 %v414
    %v1091 = vpop.f32.mrb[0].mxu0
    %v1092 = vadd.f32 %v995, %v1091
    %v1093 = vpop.f32.mrb[0].mxu0
    %v1094 = vpop.f32.mrb[0].mxu0
    %v1095 = vadd.f32 %v998, %v1094
    %v1096 = vpop.f32.mrb[0].mxu0
    %1097 = vmatprep.mubr.bf16.mxu0 %v422
    %1098 = vmatmul.mubr.bf16.gmra.mrb[0].mxu0 %v421
    %v1099 = vpop.f32.mrb[0].mxu0
    %v1100 = vadd.f32 %v1003, %v1099
    %v1101 = vpop.f32.mrb[0].mxu0
    %v1102 = vpop.f32.mrb[0].mxu0
    %v1103 = vadd.f32 %v1006, %v1102
    %v1104 = vpop.f32.mrb[0].mxu0
    %1105 = vmatprep.mubr.bf16.mxu0 %v429
    %1106 = vmatmul.mubr.bf16.gmra.mrb[0].mxu0 %v428
    %v1107 = vpop.f32.mrb[0].mxu0
    %v1108 = vadd.f32 %v1011, %v1107
    %v1109 = vpop.f32.mrb[0].mxu0
    %v1110 = vpop.f32.mrb[0].mxu0
    %v1111 = vadd.f32 %v1014, %v1110
    %v1112 = vpop.f32.mrb[0].mxu0
    %1113 = vmatprep.mubr.bf16.mxu0 %v436
    %1114 = vmatmul.mubr.bf16.gmra.mrb[0].mxu0 %v435
    %v1115 = vpop.f32.mrb[0].mxu0
    %v1116 = vadd.f32 %v1019, %v1115
    %v1117 = vpop.f32.mrb[0].mxu0
    %v1118 = vpop.f32.mrb[0].mxu0
    %v1119 = vadd.f32 %v1022, %v1118
    %v1120 = vpop.f32.mrb[0].mxu0
    %1121 = vmatprep.mubr.bf16.mxu0 %v443
    %1122 = vmatmul.mubr.bf16.gmra.mrb[0].mxu0 %v442
    %v1123 = vpop.f32.mrb[0].mxu0
    %v1124 = vadd.f32 %v1027, %v1123
    %v1125 = vpop.f32.mrb[0].mxu0
    %v1126 = vpop.f32.mrb[0].mxu0
    %v1127 = vadd.f32 %v1030, %v1126
    %v1128 = vpop.f32.mrb[0].mxu0
    %1129 = vmatprep.mubr.bf16.mxu0 %v450
    %1130 = vmatmul.mubr.bf16.gmra.mrb[0].mxu0 %v449
    %v1131 = vpop.f32.mrb[0].mxu0
    %v1132 = vadd.f32 %v1035, %v1131
    %v1133 = vpop.f32.mrb[0].mxu0
    %v1134 = vpop.f32.mrb[0].mxu0
    %v1135 = vadd.f32 %v1038, %v1134
    %v1136 = vpop.f32.mrb[0].mxu0
    %1137 = vmatprep.mubr.bf16.mxu0 %v457
    %1138 = vmatmul.mubr.bf16.gmra.mrb[0].mxu0 %v456
    %v1139 = vpop.f32.mrb[0].mxu0
    %v1140 = vadd.f32 %v1043, %v1139
    %v1141 = vpop.f32.mrb[0].mxu0
    %v1142 = vpop.f32.mrb[0].mxu0
    %v1143 = vadd.f32 %v1046, %v1142
    %v1144 = vpop.f32.mrb[0].mxu0
    %1145 = vmatprep.mubr.bf16.mxu0 %v464
    %1146 = vmatmul.mubr.bf16.gmra.mrb[0].mxu0 %v463
    %v1147 = vpop.f32.mrb[0].mxu0
    %v1148 = vadd.f32 %v1051, %v1147
    %v1149 = vpop.f32.mrb[0].mxu0
    %v1150 = vpop.f32.mrb[0].mxu0
    %v1151 = vadd.f32 %v1054, %v1150
    %v1152 = vpop.f32.mrb[0].mxu0
    %1153 = vdwg.mxu0
    %1154 = vmatprep.subr.bf16.mxu0 0
    %1155 = vmatpush1.bf16.msra.mxu0 %v778
    %1156 = vmatprep.subr.bf16.mxu0 0
    %1157 = vmatpush1.bf16.msra.mxu0 %v779
    %1158 = vmatprep.subr.bf16.mxu0 0
    %1159 = vmatpush1.bf16.msra.mxu0 %v780
    %1160 = vmatprep.subr.bf16.mxu0 0
    %1161 = vmatpush1.bf16.msra.mxu0 %v781
    %1162 = vmatprep.subr.bf16.mxu0 0
    %1163 = vmatpush1.bf16.msra.mxu0 %v782
    %1164 = vmatprep.subr.bf16.mxu0 0
    %1165 = vmatpush1.bf16.msra.mxu0 %v783
    %1166 = vmatprep.subr.bf16.mxu0 0
    %1167 = vmatpush1.bf16.msra.mxu0 0
    %1168 = vmatprep.subr.bf16.mxu0 0
    %1169 = vmatpush1.bf16.msra.mxu0 0
    %1170 = vmatprep.subr.bf16.mxu0 0
    %1171 = vmatpush1.bf16.msra.mxu0 0
    %1172 = vmatprep.subr.bf16.mxu0 0
    %1173 = vmatpush1.bf16.msra.mxu0 0
    %1174 = vmatprep.subr.bf16.mxu0 0
    %1175 = vmatpush1.bf16.msra.mxu0 0
    %1176 = vmatprep.subr.bf16.mxu0 0
    %1177 = vmatpush1.bf16.msra.mxu0 0
    %1178 = vmatprep.subr.bf16.mxu0 0
    %1179 = vmatpush1.bf16.msra.mxu0 0
    %1180 = vmatprep.subr.bf16.mxu0 0
    %1181 = vmatpush1.bf16.msra.mxu0 0
    %1182 = vmatprep.subr.bf16.mxu0 0
    %1183 = vmatpush1.bf16.msra.mxu0 0
    %1184 = vmatprep.subr.bf16.mxu0 0
    %1185 = vmatpush1.bf16.msra.mxu0 0
    %1186 = vmatprep.mubr.bf16.mxu0 0
    %1187 = vmatmul.mubr.bf16.gmra.mrb[0].mxu0 %v840
    %v1188 = vpop.f32.mrb[0].mxu0
    %v1189 = vadd.f32 %v1092, %v1188
    %v1190 = vpop.f32.mrb[0].mxu0
    %v1191 = vpop.f32.mrb[0].mxu0
    %v1192 = vadd.f32 %v1095, %v1191
    %v1193 = vpop.f32.mrb[0].mxu0
    %1194 = vmatprep.mubr.bf16.mxu0 0
    %1195 = vmatmul.mubr.bf16.gmra.mrb[0].mxu0 %v843
    %v1196 = vpop.f32.mrb[0].mxu0
    %v1197 = vadd.f32 %v1100, %v1196
    %v1198 = vpop.f32.mrb[0].mxu0
    %v1199 = vpop.f32.mrb[0].mxu0
    %v1200 = vadd.f32 %v1103, %v1199
    %v1201 = vpop.f32.mrb[0].mxu0
    %1202 = vmatprep.mubr.bf16.mxu0 0
    %1203 = vmatmul.mubr.bf16.gmra.mrb[0].mxu0 %v846
    %v1204 = vpop.f32.mrb[0].mxu0
    %v1205 = vadd.f32 %v1108, %v1204
    %v1206 = vpop.f32.mrb[0].mxu0
    %v1207 = vpop.f32.mrb[0].mxu0
    %v1208 = vadd.f32 %v1111, %v1207
    %v1209 = vpop.f32.mrb[0].mxu0
    %1210 = vmatprep.mubr.bf16.mxu0 0
    %1211 = vmatmul.mubr.bf16.gmra.mrb[0].mxu0 %v849
    %v1212 = vpop.f32.mrb[0].mxu0
    %v1213 = vadd.f32 %v1116, %v1212
    %v1214 = vpop.f32.mrb[0].mxu0
    %v1215 = vpop.f32.mrb[0].mxu0
    %v1216 = vadd.f32 %v1119, %v1215
    %v1217 = vpop.f32.mrb[0].mxu0
    %1218 = vmatprep.mubr.bf16.mxu0 0
    %1219 = vmatmul.mubr.bf16.gmra.mrb[0].mxu0 %v852
    %v1220 = vpop.f32.mrb[0].mxu0
    %v1221 = vadd.f32 %v1124, %v1220
    %v1222 = vpop.f32.mrb[0].mxu0
    %v1223 = vpop.f32.mrb[0].mxu0
    %v1224 = vadd.f32 %v1127, %v1223
    %v1225 = vpop.f32.mrb[0].mxu0
    %1226 = vmatprep.mubr.bf16.mxu0 0
    %1227 = vmatmul.mubr.bf16.gmra.mrb[0].mxu0 %v855
    %v1228 = vpop.f32.mrb[0].mxu0
    %v1229 = vadd.f32 %v1132, %v1228
    %v1230 = vpop.f32.mrb[0].mxu0
    %v1231 = vpop.f32.mrb[0].mxu0
    %v1232 = vadd.f32 %v1135, %v1231
    %v1233 = vpop.f32.mrb[0].mxu0
    %1234 = vmatprep.mubr.bf16.mxu0 0
    %1235 = vmatmul.mubr.bf16.gmra.mrb[0].mxu0 %v858
    %v1236 = vpop.f32.mrb[0].mxu0
    %v1237 = vadd.f32 %v1140, %v1236
    %v1238 = vpop.f32.mrb[0].mxu0
    %v1239 = vpop.f32.mrb[0].mxu0
    %v1240 = vadd.f32 %v1143, %v1239
    %v1241 = vpop.f32.mrb[0].mxu0
    %1242 = vmatprep.mubr.bf16.mxu0 0
    %1243 = vmatmul.mubr.bf16.gmra.mrb[0].mxu0 %v861
    %v1244 = vpop.f32.mrb[0].mxu0
    %v1245 = vadd.f32 %v1148, %v1244
    %v1246 = vpop.f32.mrb[0].mxu0
    %v1247 = vpop.f32.mrb[0].mxu0
    %v1248 = vadd.f32 %v1151, %v1247
    %v1249 = vpop.f32.mrb[0].mxu0
    %1250 = vdwg.mxu0
    %v1251 = vmax.f32 %v1189, 0.0
    %v1252 = vmax.f32 %v1192, 0.0
    %v1253 = vmax.f32 %v1197, 0.0
    %v1254 = vmax.f32 %v1200, 0.0
    %v1255 = vmax.f32 %v1205, 0.0
    %v1256 = vmax.f32 %v1208, 0.0
    %v1257 = vmax.f32 %v1213, 0.0
    %v1258 = vmax.f32 %v1216, 0.0
    %v1259 = vmax.f32 %v1221, 0.0
    %v1260 = vmax.f32 %v1224, 0.0
    %v1261 = vmax.f32 %v1229, 0.0
    %v1262 = vmax.f32 %v1232, 0.0
    %v1263 = vmax.f32 %v1237, 0.0
    %v1264 = vmax.f32 %v1240, 0.0
    %v1265 = vmax.f32 %v1245, 0.0
    %v1266 = vmax.f32 %v1248, 0.0
    %1267 = vst [vmem:[#allocation8] sm:$0xff] %v1251
    %1268 = vst [vmem:[#allocation8 + $0x8] sm:$0xff] %v1252
    %1269 = vst [vmem:[#allocation8 + $0x10] sm:$0xff] %v1253
    %1270 = vst [vmem:[#allocation8 + $0x18] sm:$0xff] %v1254
    %1271 = vst [vmem:[#allocation8 + $0x20] sm:$0xff] %v1255
    %1272 = vst [vmem:[#allocation8 + $0x28] sm:$0xff] %v1256
    %1273 = vst [vmem:[#allocation8 + $0x30] sm:$0xff] %v1257
    %1274 = vst [vmem:[#allocation8 + $0x38] sm:$0xff] %v1258
    %1275 = vst [vmem:[#allocation8 + $0x40] sm:$0xff] %v1259
    %1276 = vst [vmem:[#allocation8 + $0x48] sm:$0xff] %v1260
    %1277 = vst [vmem:[#allocation8 + $0x50] sm:$0xff] %v1261
    %1278 = vst [vmem:[#allocation8 + $0x58] sm:$0xff] %v1262
    %1279 = vst [vmem:[#allocation8 + $0x60] sm:$0xff] %v1263
    %1280 = vst [vmem:[#allocation8 + $0x68] sm:$0xff] %v1264
    %1281 = vst [vmem:[#allocation8 + $0x70] sm:$0xff] %v1265
    %1282 = vst [vmem:[#allocation8 + $0x78] sm:$0xff] %v1266
    // Predicated region
    $region26: #{inception_b_forward.7} parent=1 // pred_check
      _
    $region27: #{inception_b_forward.7} parent=1 // pred_check_branch
      %1284 = sbr.rel (0) target = $region29
    $region28: #{inception_b_forward.7} parent=1 // pred_region
      %s1286 = ssub.s32 2048, 2048
      %1287 = vsyncadd [#allocation4], %s1286
      %s1288 = sshll.u32 [#allocation8], 4
      %s1289 = int_to_ptr.vmem [resolvable:$true] %s1288
      %1294 = dma.vmem_to_hbm [thread:$0]  %s1289, 2048, %s3, [#allocation4], 128, 128, 8
    $region29: #{inception_b_forward.7} parent=1 // pred_fallthru
      _
    // Predicated region
    $region30: #{inception_b_forward.7} parent=1 // pred_check
      _
    $region31: #{inception_b_forward.7} parent=1 // pred_check_branch
      %1296 = sbr.rel (0) target = $region33
    $region32: #{inception_b_forward.7} parent=1 // pred_region
      %1297 = dma.done [#allocation4], 2048
    $region33: #{inception_b_forward.7} parent=1 // pred_fallthru
      _
    %1298 = vsyncpa [#allocation3], 1
    %1299 = vsyncpa [#allocation6], 1
    %1300 = vsyncpa [#allocation4], 1

// kernel: inception_b_forward.4
$region0: #{inception_b_forward.4}
  #allocation0 [shape = 'u32[]', space=smem, size = 0x4, offset = 0x4, fixed_abs, tag = 'smem constant byte address 0x4 - core index']
  #allocation1 [shape = 'u32[144,128]{1,0:T(1,128)}', space=vmem, size = 0x12000, scoped, tag = 'internal scratch']
  %s0 = inlined_call_operand.hbm [shape: bf16[128,36], index: 0, kind: input, shape index: {}]
  %s1 = inlined_call_operand.hbm [shape: bf16[36,384], index: 1, kind: input, shape index: {}]
  %s2 = inlined_call_operand.hbm [shape: f32[1,384], index: 2, kind: input, shape index: {}]
  %s3 = inlined_call_operand.hbm [shape: f32[128,384], index: 3, kind: output, shape index: {}]
  %s4 = sld [smem:[#allocation0]]
  $region34: #{inception_b_forward.4} parent=0
    _
  %s6 = ssub.s32 1, %s4
  %s7 = scalar_select 0, %s6, %s4
  $region1: #{inception_b_forward.4} parent=0
    #allocation2 [shape = 'u8[32768]{0}', space=vmem, size = 0x8000, scoped, tag = 'input window, operand 0, single buffered']
    #allocation3 [shape = 's32[1]{0}', space=sflag, size = 0x4, scoped, tag = 'scoped memory for inception_b_forward.4']
    #allocation4 [shape = 's32[1]{0}', space=sflag, size = 0x4, scoped, tag = 'scoped memory for inception_b_forward.4']
    #allocation5 [shape = 'u8[30720]{0}', space=vmem, size = 0x7800, scoped, tag = 'input window, operand 1, single buffered']
    #allocation6 [shape = 's32[1]{0}', space=sflag, size = 0x4, scoped, tag = 'scoped memory for inception_b_forward.4']
    #allocation7 [shape = 'u8[1536]{0}', space=vmem, size = 0x800, scoped, tag = 'input window, operand 2, single buffered']
    #allocation8 [shape = 'u8[196608]{0}', space=vmem, size = 0x30000, scoped, tag = 'output window, operand 0, single buffered']
    %8 = vsyncpa [#allocation3], 0
    %9 = vsyncpa [#allocation6], 0
    %10 = vsyncpa [#allocation4], 0
    // Predicated region
    $region2: #{inception_b_forward.4} parent=1 // pred_check
      _
    $region3: #{inception_b_forward.4} parent=1 // pred_check_branch
      %12 = sbr.rel (0) target = $region5
    $region4: #{inception_b_forward.4} parent=1 // pred_region
      %s14 = ssub.s32 1024, 1024
      %15 = vsyncadd [#allocation3], %s14
      %s16 = sshll.u32 [#allocation2], 4
      %s17 = int_to_ptr.vmem [resolvable:$true] %s16
      %22 = dma.hbm_to_vmem [thread:$0]  %s0, 1024, %s17, [#allocation3], 64, 64, 4
    $region5: #{inception_b_forward.4} parent=1 // pred_fallthru
      _
    // Predicated region
    $region6: #{inception_b_forward.4} parent=1 // pred_check
      _
    $region7: #{inception_b_forward.4} parent=1 // pred_check_branch
      %24 = sbr.rel (0) target = $region9
    $region8: #{inception_b_forward.4} parent=1 // pred_region
      %s26 = ssub.s32 960, 960
      %27 = vsyncadd [#allocation6], %s26
      %s28 = sshll.u32 [#allocation5], 4
      %s29 = int_to_ptr.vmem [resolvable:$true] %s28
      %34 = dma.hbm_to_vmem [thread:$0]  %s1, 960, %s29, [#allocation6], 192, 192, 12
    $region9: #{inception_b_forward.4} parent=1 // pred_fallthru
      _
    // Predicated region
    $region10: #{inception_b_forward.4} parent=1 // pred_check
      _
    $region11: #{inception_b_forward.4} parent=1 // pred_check_branch
      %36 = sbr.rel (0) target = $region13
    $region12: #{inception_b_forward.4} parent=1 // pred_region
      %s38 = ssub.s32 48, 48
      %39 = vsyncadd [#allocation6], %s38
      %s41 = sshll.u32 [#allocation7], 4
      %s42 = int_to_ptr.vmem [resolvable:$true] %s41
      %44 = dma.hbm_to_vmem [thread:$0]  %s2, 48, %s42, [#allocation6]
    $region13: #{inception_b_forward.4} parent=1 // pred_fallthru
      _
    // Predicated region
    $region14: #{inception_b_forward.4} parent=1 // pred_check
      _
    $region15: #{inception_b_forward.4} parent=1 // pred_check_branch
      %46 = sbr.rel (0) target = $region17
    $region16: #{inception_b_forward.4} parent=1 // pred_region
      %47 = dma.done [#allocation3], 1024
    $region17: #{inception_b_forward.4} parent=1 // pred_fallthru
      _
    // Predicated region
    $region18: #{inception_b_forward.4} parent=1 // pred_check
      _
    $region19: #{inception_b_forward.4} parent=1 // pred_check_branch
      %49 = sbr.rel (0) target = $region21
    $region20: #{inception_b_forward.4} parent=1 // pred_region
      %50 = dma.done [#allocation6], 960
    $region21: #{inception_b_forward.4} parent=1 // pred_fallthru
      _
    // Predicated region
    $region22: #{inception_b_forward.4} parent=1 // pred_check
      _
    $region23: #{inception_b_forward.4} parent=1 // pred_check_branch
      %52 = sbr.rel (0) target = $region25
    $region24: #{inception_b_forward.4} parent=1 // pred_region
      %53 = dma.done [#allocation6], 48
    $region25: #{inception_b_forward.4} parent=1 // pred_fallthru
      _
    %v55 = vld [vmem:[#allocation2] sm:$0xf]
    %v56 = vld [vmem:[#allocation2 + $0x4] sm:$0xf]
    %v57 = vld [vmem:[#allocation2 + $0x8] sm:$0xf]
    %v58 = vld [vmem:[#allocation2 + $0xc] sm:$0xf]
    %v59 = vld [vmem:[#allocation2 + $0x10] sm:$0xf]
    %v60 = vld [vmem:[#allocation2 + $0x14] sm:$0xf]
    %v61 = vld [vmem:[#allocation2 + $0x18] sm:$0xf]
    %v62 = vld [vmem:[#allocation2 + $0x1c] sm:$0xf]
    %v63 = vld [vmem:[#allocation2 + $0x20] sm:$0xf]
    %v64 = vld [vmem:[#allocation2 + $0x24] sm:$0xf]
    %v65 = vld [vmem:[#allocation2 + $0x28] sm:$0xf]
    %v66 = vld [vmem:[#allocation2 + $0x2c] sm:$0xf]
    %v67 = vld [vmem:[#allocation2 + $0x30] sm:$0xf]
    %v68 = vld [vmem:[#allocation2 + $0x34] sm:$0xf]
    %v69 = vld [vmem:[#allocation2 + $0x38] sm:$0xf]
    %v70 = vld [vmem:[#allocation2 + $0x3c] sm:$0xf]
    %v71 = vld [vmem:[#allocation5] sm:$0xff]
    %v72 = vld [vmem:[#allocation5 + $0x8] sm:$0xf]
    %v73 = vld [vmem:[#allocation5 + $0xc] sm:$0xff]
    %v74 = vld [vmem:[#allocation5 + $0x14] sm:$0xf]
    %v75 = vld [vmem:[#allocation5 + $0x18] sm:$0xff]
    %v76 = vld [vmem:[#allocation5 + $0x20] sm:$0xf]
    %v77 = vld [vmem:[#allocation5 + $0x24] sm:$0xff]
    %v78 = vld [vmem:[#allocation5 + $0x2c] sm:$0xf]
    %v79 = vld [vmem:[#allocation5 + $0x30] sm:$0x33]
    %v80 = vld [vmem:[#allocation5 + $0x38] sm:$0x3]
    %v81 = vld [vmem:[#allocation7] sm:$0x7]
    %v83 = vlaneseq
    %v84 = vshrl.u32 %v83, 7
    %v85 = vsub.s32 0, %v84
    %v86 = vrot.slane %v81, %v85
    %v87 = vlaneseq
    %v88 = vshrl.u32 %v87, 7
    %v89 = vsub.s32 1, %v88
    %v90 = vrot.slane %v81, %v89
    %v91 = vlaneseq
    %v92 = vshrl.u32 %v91, 7
    %v93 = vsub.s32 2, %v92
    %v94 = vrot.slane %v81, %v93
    %v114 = vunpack.c.l.b16 %v55
    %v115 = vunpack.c.l.b16 %v56
    %v116 = vunpack.c.l.b16 %v57
    %v117 = vunpack.c.l.b16 %v58
    %v118 = vunpack.c.l.b16 %v59
    %v119 = vunpack.c.l.b16 %v60
    %v120 = vunpack.c.l.b16 %v61
    %v121 = vunpack.c.l.b16 %v62
    %v122 = vunpack.c.l.b16 %v63
    %v123 = vunpack.c.l.b16 %v64
    %v124 = vunpack.c.l.b16 %v65
    %v125 = vunpack.c.l.b16 %v66
    %v126 = vunpack.c.l.b16 %v67
    %v127 = vunpack.c.l.b16 %v68
    %v128 = vunpack.c.l.b16 %v69
    %v129 = vunpack.c.l.b16 %v70
    %v130 = vpack.c.b16 %v115, %v114
    %v131 = vpack.c.b16 %v117, %v116
    %v132 = vpack.c.b16 %v119, %v118
    %v133 = vpack.c.b16 %v121, %v120
    %v134 = vpack.c.b16 %v123, %v122
    %v135 = vpack.c.b16 %v125, %v124
    %v136 = vpack.c.b16 %v127, %v126
    %v137 = vpack.c.b16 %v129, %v128
    %v148 = vunpack.c.l.b16 %v71
    %v149 = vunpack.c.h.b16 %v71
    %v150 = vunpack.c.l.b16 %v72
    %v151 = vunpack.c.l.b16 %v73
    %v152 = vunpack.c.h.b16 %v73
    %v153 = vunpack.c.l.b16 %v74
    %v154 = vunpack.c.l.b16 %v75
    %v155 = vunpack.c.h.b16 %v75
    %v156 = vunpack.c.l.b16 %v76
    %v157 = vunpack.c.l.b16 %v77
    %v158 = vunpack.c.h.b16 %v77
    %v159 = vunpack.c.l.b16 %v78
    %v160 = vunpack.c.l.b16 %v79
    %v161 = vunpack.c.h.b16 %v79
    %v162 = vunpack.c.l.b16 %v80
    %v163 = vpack.c.b16 %v151, %v148
    %v164 = vpack.c.b16 %v152, %v149
    %v165 = vpack.c.b16 %v153, %v150
    %v166 = vpack.c.b16 %v157, %v154
    %v167 = vpack.c.b16 %v158, %v155
    %v168 = vpack.c.b16 %v159, %v156
    %v169 = vpack.c.b16 %v160, %v160
    %v170 = vpack.c.b16 %v161, %v161
    %v171 = vpack.c.b16 %v162, %v162
    %vm178 = vcmask 293888
    %v180 = vsel %vm178, %v130, 0
    %v183 = vsel %vm178, %v131, 0
    %v186 = vsel %vm178, %v132, 0
    %v189 = vsel %vm178, %v133, 0
    %v192 = vsel %vm178, %v134, 0
    %v195 = vsel %vm178, %v135, 0
    %v198 = vsel %vm178, %v136, 0
    %v201 = vsel %vm178, %v137, 0
    %vm203 = vcmask 1041408
    %v205 = vsel %vm203, %v169, 0
    %v208 = vsel %vm203, %v170, 0
    %v211 = vsel %vm203, %v171, 0
    %213 = vmatprep.subr.bf16.mxu0 %v164
    %214 = vmatpush1.bf16.msra.mxu0 %v163
    %215 = vmatprep.subr.bf16.mxu0 %v167
    %216 = vmatpush1.bf16.msra.mxu0 %v166
    %217 = vmatprep.subr.bf16.mxu0 %v208
    %218 = vmatpush1.bf16.msra.mxu0 %v205
    %219 = vmatprep.subr.bf16.mxu0 0
    %220 = vmatpush1.bf16.msra.mxu0 0
    %221 = vmatprep.subr.bf16.mxu0 0
    %222 = vmatpush1.bf16.msra.mxu0 0
    %223 = vmatprep.subr.bf16.mxu0 0
    %224 = vmatpush1.bf16.msra.mxu0 0
    %225 = vmatprep.subr.bf16.mxu0 0
    %226 = vmatpush1.bf16.msra.mxu0 0
    %227 = vmatprep.subr.bf16.mxu0 0
    %228 = vmatpush1.bf16.msra.mxu0 0
    %229 = vmatprep.subr.bf16.mxu0 0
    %230 = vmatpush1.bf16.msra.mxu0 0
    %231 = vmatprep.subr.bf16.mxu0 0
    %232 = vmatpush1.bf16.msra.mxu0 0
    %233 = vmatprep.subr.bf16.mxu0 0
    %234 = vmatpush1.bf16.msra.mxu0 0
    %235 = vmatprep.subr.bf16.mxu0 0
    %236 = vmatpush1.bf16.msra.mxu0 0
    %237 = vmatprep.subr.bf16.mxu0 0
    %238 = vmatpush1.bf16.msra.mxu0 0
    %239 = vmatprep.subr.bf16.mxu0 0
    %240 = vmatpush1.bf16.msra.mxu0 0
    %241 = vmatprep.subr.bf16.mxu0 0
    %242 = vmatpush1.bf16.msra.mxu0 0
    %243 = vmatprep.subr.bf16.mxu0 0
    %244 = vmatpush1.bf16.msra.mxu0 0
    %245 = vmatprep.mubr.bf16.mxu0 0
    %246 = vmatmul.mubr.bf16.gmra.mrb[0].mxu0 %v180
    %v247 = vpop.f32.mrb[0].mxu0
    %v248 = vadd.f32 %v86, %v247
    %v249 = vpop.f32.mrb[0].mxu0
    %v250 = vadd.f32 %v90, %v249
    %v251 = vpop.f32.mrb[0].mxu0
    %v252 = vadd.f32 %v86, %v251
    %v253 = vpop.f32.mrb[0].mxu0
    %v254 = vadd.f32 %v90, %v253
    %255 = vmatprep.mubr.bf16.mxu0 0
    %256 = vmatmul.mubr.bf16.gmra.mrb[0].mxu0 %v183
    %v257 = vpop.f32.mrb[0].mxu0
    %v258 = vadd.f32 %v86, %v257
    %v259 = vpop.f32.mrb[0].mxu0
    %v260 = vadd.f32 %v90, %v259
    %v261 = vpop.f32.mrb[0].mxu0
    %v262 = vadd.f32 %v86, %v261
    %v263 = vpop.f32.mrb[0].mxu0
    %v264 = vadd.f32 %v90, %v263
    %265 = vmatprep.mubr.bf16.mxu0 0
    %266 = vmatmul.mubr.bf16.gmra.mrb[0].mxu0 %v186
    %v267 = vpop.f32.mrb[0].mxu0
    %v268 = vadd.f32 %v86, %v267
    %v269 = vpop.f32.mrb[0].mxu0
    %v270 = vadd.f32 %v90, %v269
    %v271 = vpop.f32.mrb[0].mxu0
    %v272 = vadd.f32 %v86, %v271
    %v273 = vpop.f32.mrb[0].mxu0
    %v274 = vadd.f32 %v90, %v273
    %275 = vmatprep.mubr.bf16.mxu0 0
    %276 = vmatmul.mubr.bf16.gmra.mrb[0].mxu0 %v189
    %v277 = vpop.f32.mrb[0].mxu0
    %v278 = vadd.f32 %v86, %v277
    %v279 = vpop.f32.mrb[0].mxu0
    %v280 = vadd.f32 %v90, %v279
    %v281 = vpop.f32.mrb[0].mxu0
    %v282 = vadd.f32 %v86, %v281
    %v283 = vpop.f32.mrb[0].mxu0
    %v284 = vadd.f32 %v90, %v283
    %285 = vmatprep.mubr.bf16.mxu0 0
    %286 = vmatmul.mubr.bf16.gmra.mrb[0].mxu0 %v192
    %v287 = vpop.f32.mrb[0].mxu0
    %v288 = vadd.f32 %v86, %v287
    %v289 = vpop.f32.mrb[0].mxu0
    %v290 = vadd.f32 %v90, %v289
    %v291 = vpop.f32.mrb[0].mxu0
    %v292 = vadd.f32 %v86, %v291
    %v293 = vpop.f32.mrb[0].mxu0
    %v294 = vadd.f32 %v90, %v293
    %295 = vmatprep.mubr.bf16.mxu0 0
    %296 = vmatmul.mubr.bf16.gmra.mrb[0].mxu0 %v195
    %v297 = vpop.f32.mrb[0].mxu0
    %v298 = vadd.f32 %v86, %v297
    %v299 = vpop.f32.mrb[0].mxu0
    %v300 = vadd.f32 %v90, %v299
    %v301 = vpop.f32.mrb[0].mxu0
    %v302 = vadd.f32 %v86, %v301
    %v303 = vpop.f32.mrb[0].mxu0
    %v304 = vadd.f32 %v90, %v303
    %305 = vmatprep.mubr.bf16.mxu0 0
    %306 = vmatmul.mubr.bf16.gmra.mrb[0].mxu0 %v198
    %v307 = vpop.f32.mrb[0].mxu0
    %v308 = vadd.f32 %v86, %v307
    %v309 = vpop.f32.mrb[0].mxu0
    %v310 = vadd.f32 %v90, %v309
    %v311 = vpop.f32.mrb[0].mxu0
    %v312 = vadd.f32 %v86, %v311
    %v313 = vpop.f32.mrb[0].mxu0
    %v314 = vadd.f32 %v90, %v313
    %315 = vmatprep.mubr.bf16.mxu0 0
    %316 = vmatmul.mubr.bf16.gmra.mrb[0].mxu0 %v201
    %v317 = vpop.f32.mrb[0].mxu0
    %v318 = vadd.f32 %v86, %v317
    %v319 = vpop.f32.mrb[0].mxu0
    %v320 = vadd.f32 %v90, %v319
    %v321 = vpop.f32.mrb[0].mxu0
    %v322 = vadd.f32 %v86, %v321
    %v323 = vpop.f32.mrb[0].mxu0
    %v324 = vadd.f32 %v90, %v323
    %325 = vdwg.mxu0
    %326 = vmatprep.subr.bf16.mxu0 0
    %327 = vmatpush1.bf16.msra.mxu0 %v165
    %328 = vmatprep.subr.bf16.mxu0 0
    %329 = vmatpush1.bf16.msra.mxu0 %v168
    %330 = vmatprep.subr.bf16.mxu0 0
    %331 = vmatpush1.bf16.msra.mxu0 %v211
    %332 = vmatprep.subr.bf16.mxu0 0
    %333 = vmatpush1.bf16.msra.mxu0 0
    %334 = vmatprep.subr.bf16.mxu0 0
    %335 = vmatpush1.bf16.msra.mxu0 0
    %336 = vmatprep.subr.bf16.mxu0 0
    %337 = vmatpush1.bf16.msra.mxu0 0
    %338 = vmatprep.subr.bf16.mxu0 0
    %339 = vmatpush1.bf16.msra.mxu0 0
    %340 = vmatprep.subr.bf16.mxu0 0
    %341 = vmatpush1.bf16.msra.mxu0 0
    %342 = vmatprep.subr.bf16.mxu0 0
    %343 = vmatpush1.bf16.msra.mxu0 0
    %344 = vmatprep.subr.bf16.mxu0 0
    %345 = vmatpush1.bf16.msra.mxu0 0
    %346 = vmatprep.subr.bf16.mxu0 0
    %347 = vmatpush1.bf16.msra.mxu0 0
    %348 = vmatprep.subr.bf16.mxu0 0
    %349 = vmatpush1.bf16.msra.mxu0 0
    %350 = vmatprep.subr.bf16.mxu0 0
    %351 = vmatpush1.bf16.msra.mxu0 0
    %352 = vmatprep.subr.bf16.mxu0 0
    %353 = vmatpush1.bf16.msra.mxu0 0
    %354 = vmatprep.subr.bf16.mxu0 0
    %355 = vmatpush1.bf16.msra.mxu0 0
    %356 = vmatprep.subr.bf16.mxu0 0
    %357 = vmatpush1.bf16.msra.mxu0 0
    %358 = vmatprep.mubr.bf16.mxu0 0
    %359 = vmatmul.mubr.bf16.gmra.mrb[0].mxu0 %v180
    %v360 = vpop.f32.mrb[0].mxu0
    %v361 = vadd.f32 %v94, %v360
    %v362 = vpop.f32.mrb[0].mxu0
    %v363 = vpop.f32.mrb[0].mxu0
    %v364 = vadd.f32 %v94, %v363
    %v365 = vpop.f32.mrb[0].mxu0
    %366 = vmatprep.mubr.bf16.mxu0 0
    %367 = vmatmul.mubr.bf16.gmra.mrb[0].mxu0 %v183
    %v368 = vpop.f32.mrb[0].mxu0
    %v369 = vadd.f32 %v94, %v368
    %v370 = vpop.f32.mrb[0].mxu0
    %v371 = vpop.f32.mrb[0].mxu0
    %v372 = vadd.f32 %v94, %v371
    %v373 = vpop.f32.mrb[0].mxu0
    %374 = vmatprep.mubr.bf16.mxu0 0
    %375 = vmatmul.mubr.bf16.gmra.mrb[0].mxu0 %v186
    %v376 = vpop.f32.mrb[0].mxu0
    %v377 = vadd.f32 %v94, %v376
    %v378 = vpop.f32.mrb[0].mxu0
    %v379 = vpop.f32.mrb[0].mxu0
    %v380 = vadd.f32 %v94, %v379
    %v381 = vpop.f32.mrb[0].mxu0
    %382 = vmatprep.mubr.bf16.mxu0 0
    %383 = vmatmul.mubr.bf16.gmra.mrb[0].mxu0 %v189
    %v384 = vpop.f32.mrb[0].mxu0
    %v385 = vadd.f32 %v94, %v384
    %v386 = vpop.f32.mrb[0].mxu0
    %v387 = vpop.f32.mrb[0].mxu0
    %v388 = vadd.f32 %v94, %v387
    %v389 = vpop.f32.mrb[0].mxu0
    %390 = vmatprep.mubr.bf16.mxu0 0
    %391 = vmatmul.mubr.bf16.gmra.mrb[0].mxu0 %v192
    %v392 = vpop.f32.mrb[0].mxu0
    %v393 = vadd.f32 %v94, %v392
    %v394 = vpop.f32.mrb[0].mxu0
    %v395 = vpop.f32.mrb[0].mxu0
    %v396 = vadd.f32 %v94, %v395
    %v397 = vpop.f32.mrb[0].mxu0
    %398 = vmatprep.mubr.bf16.mxu0 0
    %399 = vmatmul.mubr.bf16.gmra.mrb[0].mxu0 %v195
    %v400 = vpop.f32.mrb[0].mxu0
    %v401 = vadd.f32 %v94, %v400
    %v402 = vpop.f32.mrb[0].mxu0
    %v403 = vpop.f32.mrb[0].mxu0
    %v404 = vadd.f32 %v94, %v403
    %v405 = vpop.f32.mrb[0].mxu0
    %406 = vmatprep.mubr.bf16.mxu0 0
    %407 = vmatmul.mubr.bf16.gmra.mrb[0].mxu0 %v198
    %v408 = vpop.f32.mrb[0].mxu0
    %v409 = vadd.f32 %v94, %v408
    %v410 = vpop.f32.mrb[0].mxu0
    %v411 = vpop.f32.mrb[0].mxu0
    %v412 = vadd.f32 %v94, %v411
    %v413 = vpop.f32.mrb[0].mxu0
    %414 = vmatprep.mubr.bf16.mxu0 0
    %415 = vmatmul.mubr.bf16.gmra.mrb[0].mxu0 %v201
    %v416 = vpop.f32.mrb[0].mxu0
    %v417 = vadd.f32 %v94, %v416
    %v418 = vpop.f32.mrb[0].mxu0
    %v419 = vpop.f32.mrb[0].mxu0
    %v420 = vadd.f32 %v94, %v419
    %v421 = vpop.f32.mrb[0].mxu0
    %422 = vdwg.mxu0
    %v423 = vmax.f32 %v248, 0.0
    %v424 = vmax.f32 %v250, 0.0
    %v425 = vmax.f32 %v361, 0.0
    %v426 = vmax.f32 %v252, 0.0
    %v427 = vmax.f32 %v254, 0.0
    %v428 = vmax.f32 %v364, 0.0
    %v429 = vmax.f32 %v258, 0.0
    %v430 = vmax.f32 %v260, 0.0
    %v431 = vmax.f32 %v369, 0.0
    %v432 = vmax.f32 %v262, 0.0
    %v433 = vmax.f32 %v264, 0.0
    %v434 = vmax.f32 %v372, 0.0
    %v435 = vmax.f32 %v268, 0.0
    %v436 = vmax.f32 %v270, 0.0
    %v437 = vmax.f32 %v377, 0.0
    %v438 = vmax.f32 %v272, 0.0
    %v439 = vmax.f32 %v274, 0.0
    %v440 = vmax.f32 %v380, 0.0
    %v441 = vmax.f32 %v278, 0.0
    %v442 = vmax.f32 %v280, 0.0
    %v443 = vmax.f32 %v385, 0.0
    %v444 = vmax.f32 %v282, 0.0
    %v445 = vmax.f32 %v284, 0.0
    %v446 = vmax.f32 %v388, 0.0
    %v447 = vmax.f32 %v288, 0.0
    %v448 = vmax.f32 %v290, 0.0
    %v449 = vmax.f32 %v393, 0.0
    %v450 = vmax.f32 %v292, 0.0
    %v451 = vmax.f32 %v294, 0.0
    %v452 = vmax.f32 %v396, 0.0
    %v453 = vmax.f32 %v298, 0.0
    %v454 = vmax.f32 %v300, 0.0
    %v455 = vmax.f32 %v401, 0.0
    %v456 = vmax.f32 %v302, 0.0
    %v457 = vmax.f32 %v304, 0.0
    %v458 = vmax.f32 %v404, 0.0
    %v459 = vmax.f32 %v308, 0.0
    %v460 = vmax.f32 %v310, 0.0
    %v461 = vmax.f32 %v409, 0.0
    %v462 = vmax.f32 %v312, 0.0
    %v463 = vmax.f32 %v314, 0.0
    %v464 = vmax.f32 %v412, 0.0
    %v465 = vmax.f32 %v318, 0.0
    %v466 = vmax.f32 %v320, 0.0
    %v467 = vmax.f32 %v417, 0.0
    %v468 = vmax.f32 %v322, 0.0
    %v469 = vmax.f32 %v324, 0.0
    %v470 = vmax.f32 %v420, 0.0
    %471 = vst [vmem:[#allocation8] sm:$0xff] %v423
    %472 = vst [vmem:[#allocation8 + $0x8] sm:$0xff] %v424
    %473 = vst [vmem:[#allocation8 + $0x10] sm:$0xff] %v425
    %474 = vst [vmem:[#allocation8 + $0x18] sm:$0xff] %v426
    %475 = vst [vmem:[#allocation8 + $0x20] sm:$0xff] %v427
    %476 = vst [vmem:[#allocation8 + $0x28] sm:$0xff] %v428
    %477 = vst [vmem:[#allocation8 + $0x30] sm:$0xff] %v429
    %478 = vst [vmem:[#allocation8 + $0x38] sm:$0xff] %v430
    %479 = vst [vmem:[#allocation8 + $0x40] sm:$0xff] %v431
    %480 = vst [vmem:[#allocation8 + $0x48] sm:$0xff] %v432
    %481 = vst [vmem:[#allocation8 + $0x50] sm:$0xff] %v433
    %482 = vst [vmem:[#allocation8 + $0x58] sm:$0xff] %v434
    %483 = vst [vmem:[#allocation8 + $0x60] sm:$0xff] %v435
    %484 = vst [vmem:[#allocation8 + $0x68] sm:$0xff] %v436
    %485 = vst [vmem:[#allocation8 + $0x70] sm:$0xff] %v437
    %486 = vst [vmem:[#allocation8 + $0x78] sm:$0xff] %v438
    %487 = vst [vmem:[#allocation8 + $0x80] sm:$0xff] %v439
    %488 = vst [vmem:[#allocation8 + $0x88] sm:$0xff] %v440
    %489 = vst [vmem:[#allocation8 + $0x90] sm:$0xff] %v441
    %490 = vst [vmem:[#allocation8 + $0x98] sm:$0xff] %v442
    %491 = vst [vmem:[#allocation8 + $0xa0] sm:$0xff] %v443
    %492 = vst [vmem:[#allocation8 + $0xa8] sm:$0xff] %v444
    %493 = vst [vmem:[#allocation8 + $0xb0] sm:$0xff] %v445
    %494 = vst [vmem:[#allocation8 + $0xb8] sm:$0xff] %v446
    %495 = vst [vmem:[#allocation8 + $0xc0] sm:$0xff] %v447
    %496 = vst [vmem:[#allocation8 + $0xc8] sm:$0xff] %v448
    %497 = vst [vmem:[#allocation8 + $0xd0] sm:$0xff] %v449
    %498 = vst [vmem:[#allocation8 + $0xd8] sm:$0xff] %v450
    %499 = vst [vmem:[#allocation8 + $0xe0] sm:$0xff] %v451
    %500 = vst [vmem:[#allocation8 + $0xe8] sm:$0xff] %v452
    %501 = vst [vmem:[#allocation8 + $0xf0] sm:$0xff] %v453
    %502 = vst [vmem:[#allocation8 + $0xf8] sm:$0xff] %v454
    %503 = vst [vmem:[#allocation8 + $0x100] sm:$0xff] %v455
    %504 = vst [vmem:[#allocation8 + $0x108] sm:$0xff] %v456
    %505 = vst [vmem:[#allocation8 + $0x110] sm:$0xff] %v457
    %506 = vst [vmem:[#allocation8 + $0x118] sm:$0xff] %v458
    %507 = vst [vmem:[#allocation8 + $0x120] sm:$0xff] %v459
    %508 = vst [vmem:[#allocation8 + $0x128] sm:$0xff] %v460
    %509 = vst [vmem:[#allocation8 + $0x130] sm:$0xff] %v461
    %510 = vst [vmem:[#allocation8 + $0x138] sm:$0xff] %v462
    %511 = vst [vmem:[#allocation8 + $0x140] sm:$0xff] %v463
    %512 = vst [vmem:[#allocation8 + $0x148] sm:$0xff] %v464
    %513 = vst [vmem:[#allocation8 + $0x150] sm:$0xff] %v465
    %514 = vst [vmem:[#allocation8 + $0x158] sm:$0xff] %v466
    %515 = vst [vmem:[#allocation8 + $0x160] sm:$0xff] %v467
    %516 = vst [vmem:[#allocation8 + $0x168] sm:$0xff] %v468
    %517 = vst [vmem:[#allocation8 + $0x170] sm:$0xff] %v469
    %518 = vst [vmem:[#allocation8 + $0x178] sm:$0xff] %v470
    // Predicated region
    $region26: #{inception_b_forward.4} parent=1 // pred_check
      _
    $region27: #{inception_b_forward.4} parent=1 // pred_check_branch
      %520 = sbr.rel (0) target = $region29
    $region28: #{inception_b_forward.4} parent=1 // pred_region
      %s522 = ssub.s32 6144, 6144
      %523 = vsyncadd [#allocation4], %s522
      %s524 = sshll.u32 [#allocation8], 4
      %s525 = int_to_ptr.vmem [resolvable:$true] %s524
      %530 = dma.vmem_to_hbm [thread:$0]  %s525, 6144, %s3, [#allocation4], 384, 384, 24
    $region29: #{inception_b_forward.4} parent=1 // pred_fallthru
      _
    // Predicated region
    $region30: #{inception_b_forward.4} parent=1 // pred_check
      _
    $region31: #{inception_b_forward.4} parent=1 // pred_check_branch
      %532 = sbr.rel (0) target = $region33
    $region32: #{inception_b_forward.4} parent=1 // pred_region
      %533 = dma.done [#allocation4], 6144
    $region33: #{inception_b_forward.4} parent=1 // pred_fallthru
      _
    %534 = vsyncpa [#allocation3], 1
    %535 = vsyncpa [#allocation6], 1
    %536 = vsyncpa [#allocation4], 1

</llo_original>
